<compile_context>
chip_gen: v5e
topology: v5e:2x2
jax: 0.10.0
libtpu: 0.0.40
codegen_flags: <defaults>
</compile_context>

<pallas_src>
import functools
import numpy as np
import jax
import jax.numpy as jnp
from jax import lax
from jax.experimental import pallas as pl
from jax.experimental.pallas import tpu as pltpu

# ----------------------------- configuration --------------------------------
SR = 16000
N_FFT = 32
BANDSPLITS = [(2000, 1000), (8000, 2000)]
T_TIMESTEPS = 8
FC_DIM = 32
MLP_DIM = 32
FREQUENCY_MUL = 8          # 4 * 2 (complex_as_channel=True), is_mono=True
BATCH = 2
SAM_KS = 7                 # SAM Conv1d kernel size (padding=3)


# ------------------------- band-split bookkeeping ---------------------------
def get_fftfreq(sr, n_fft):
    out = sr * np.fft.fftfreq(n_fft)[: n_fft // 2 + 1]
    out[-1] = sr // 2
    return out


def get_subband_indices(freqs, splits):
    indices = []
    start_freq, start_index = 0, 0
    for end_freq, step in splits:
        bands = np.arange(start_freq + step, end_freq + step, step)
        start_freq = end_freq
        for band in bands:
            end_index = int((freqs < band).sum())
            indices.append((start_index, end_index))
            start_index = end_index
    indices.append((start_index, int(freqs.shape[0])))
    return indices


def freq2bands(bandsplits, sr, n_fft):
    return get_subband_indices(get_fftfreq(sr, n_fft), bandsplits)


# ----------------------------- parameter init -------------------------------
def init_linear(key, fan_in, fan_out):
    k1, k2 = jax.random.split(key)
    bound = 1.0 / np.sqrt(fan_in)
    w = jax.random.uniform(k1, (fan_in, fan_out), jnp.float32, -bound, bound)
    b = jax.random.uniform(k2, (1, fan_out), jnp.float32, -bound, bound)
    return w, b


def init_band_params(key, fc_dim, mlp_dim, F):
    ks = jax.random.split(key, 9)
    # MLP: Linear(fc,mlp) -> tanh -> Linear(mlp,F) -> GLU(F, sigmoid)
    w1, b1 = init_linear(ks[0], fc_dim, mlp_dim)
    w2, b2 = init_linear(ks[1], mlp_dim, F)
    wg, bg = init_linear(ks[2], F, 2 * F)          # GLU Linear(F, 2F): value | gate
    # CAM: 1x1 conv transform, shared mlp(F->mlp_dim->F, relu), GLU(F, sigmoid)
    wt, bt = init_linear(ks[3], F, F)               # conv1x1 stored as [F_in, F_out]
    wm1, bm1 = init_linear(ks[4], F, mlp_dim)
    wm2, bm2 = init_linear(ks[5], mlp_dim, F)
    wc, bc = init_linear(ks[6], F, 2 * F)
    # SAM: Conv1d(2, 1, 7, padding=3) — raw taps + scalar bias
    bound = 1.0 / np.sqrt(2 * SAM_KS)
    wsam = jax.random.uniform(ks[7], (2, SAM_KS), jnp.float32, -bound, bound)
    bsam = jax.random.uniform(ks[8], (1, 1), jnp.float32, -bound, bound)
    return dict(
        w1=w1, b1=b1, w2=w2, b2=b2,
        wgv=wg[:, :F], bgv=bg[:, :F], wgg=wg[:, F:], bgg=bg[:, F:],
        wt=wt, bt=bt, wm1=wm1, bm1=bm1, wm2=wm2, bm2=bm2,
        wcv=wc[:, :F], bcv=bc[:, :F], wcg=wc[:, F:], bcg=bc[:, F:],
        wsam=wsam, bsam=bsam,
    )


# ---------------------------- packing utilities ------------------------------
def _block_diag(mats):
    mats = [np.asarray(m, np.float32) for m in mats]
    R = sum(m.shape[0] for m in mats)
    C = sum(m.shape[1] for m in mats)
    out = np.zeros((R, C), np.float32)
    r = c = 0
    for m in mats:
        out[r:r + m.shape[0], c:c + m.shape[1]] = m
        r += m.shape[0]
        c += m.shape[1]
    return out


def build_perm(band_indices, fm):
    """0/1 matrix mapping the band-major slab columns to (re/im, channel, freq) order.
    Applying it in-kernel makes the wrapper 'Merge' a pure reshape/transpose."""
    C = fm // 2
    n_freq = band_indices[-1][1]
    FS = 2 * C * n_freq
    P = np.zeros((FS, FS), np.float32)
    off = 0
    for (s, e) in band_indices:
        bw = e - s
        for c in range(C):
            for ri in range(2):
                src0 = off + (2 * c + ri) * bw
                dst0 = ri * (C * n_freq) + c * n_freq + s
                for fb in range(bw):
                    P[src0 + fb, dst0 + fb] = 1.0
        off += bw * fm
    return P


def pack_small(band_params, band_slices, B, T, NB):
    """One f32 slab holding every small operand (biases, SAM taps, pooling / expansion
    matrices, validity masks).  One DMA instead of six tile-padded ones."""
    BT = B * T
    g = lambda n: [np.asarray(p[n], np.float32) for p in band_params]
    cat = lambda n: np.concatenate(g(n), axis=1)

    blocks = [('b1', cat('b1')), ('bm1', cat('bm1'))]
    for n in ('b2', 'bgv', 'bgg', 'bt', 'bm2', 'bcv', 'bcg'):
        blocks.append((n, cat(n)))
    sam1 = np.stack([np.asarray(p['wsam'], np.float32)[0] for p in band_params], axis=1)
    sam2 = np.stack([np.asarray(p['wsam'], np.float32)[1] for p in band_params], axis=1)
    samb = np.concatenate([np.asarray(p['bsam'], np.float32) for p in band_params], axis=1)
    blocks += [('sam1', sam1), ('sam2', sam2), ('samb', samb)]

    a_avg = np.zeros((B, BT), np.float32)            # CAM time-average pooling matrix
    for b in range(B):
        a_avg[b, b * T:(b + 1) * T] = 1.0 / T
    blocks.append(('a_avg', a_avg))

    G = np.zeros((NB, sum(f for _, f in band_slices)), np.float32)   # band expansion
    for k, (off, Fk) in enumerate(band_slices):
        G[k, off:off + Fk] = 1.0
    blocks.append(('G', G))

    masks = np.zeros((BT, SAM_KS), np.float32)        # Conv1d zero-padding validity
    t_idx = np.arange(BT) % T
    for j in range(SAM_KS):
        d = j - SAM_KS // 2
        masks[:, j] = ((t_idx + d >= 0) & (t_idx + d < T)).astype(np.float32)
    blocks.append(('masks', masks))

    cols = max(b.shape[1] for _, b in blocks)
    rows = sum(b.shape[0] for _, b in blocks)
    rows_pad = ((rows + 7) // 8) * 8
    small = np.zeros((rows_pad, cols), np.float32)
    layout = {}
    r = 0
    for name, b in blocks:
        small[r:r + b.shape[0], :b.shape[1]] = b
        layout[name] = (r, r + b.shape[0], b.shape[1])
        r += b.shape[0]
    return small, layout


def pack_params(band_params, band_indices, fm, B, T):
    NB = len(band_params)
    widths = [(e - s) * fm for s, e in band_indices]
    FS = sum(widths)
    D = band_params[0]['w1'].shape[0]
    M = band_params[0]['w1'].shape[1]
    KD, KM = NB * D, NB * M
    assert KD == KM, "w1 / w2 row dims must match to share a packed weight slab"

    band_slices, off = [], 0
    for Fk in widths:
        band_slices.append((off, Fk))
        off += Fk

    g = lambda n: [np.asarray(p[n], np.float32) for p in band_params]

    # --- weight slab 1: everything with 192 (K*D == K*M) rows ---
    w192 = np.concatenate([_block_diag(g('w1')),
                           _block_diag(g('w2')),
                           _block_diag(g('wm2'))], axis=1)        # [KD, KM + 2*FS]
    c192 = {'w1': (0, KM), 'w2': (KM, KM + FS), 'wm2': (KM + FS, KM + 2 * FS)}

    # --- weight slab 2: everything with Fsum rows ---
    wg = np.concatenate([_block_diag(g('wgv')), _block_diag(g('wgg'))], axis=1)  # fused GLU
    wc = np.concatenate([_block_diag(g('wcv')), _block_diag(g('wcg'))], axis=1)  # fused GLU
    wt = _block_diag(g('wt'))
    wup = _block_diag(g('wm1'))
    P = build_perm(band_indices, fm)
    m_mean = np.zeros((FS, NB), np.float32)           # per-band channel-mean matrix
    for k, (o, Fk) in enumerate(band_slices):
        m_mean[o:o + Fk, k] = 1.0 / Fk
    segs = [('wg', wg), ('wt', wt), ('wup', wup), ('wc', wc), ('P', P), ('mmean', m_mean)]
    c136, o = {}, 0
    for name, w in segs:
        c136[name] = (o, o + w.shape[1])
        o += w.shape[1]
    w136 = np.concatenate([w for _, w in segs], axis=1)            # [FS, 1014]

    small, s_lay = pack_small(band_params, band_slices, B, T, NB)

    # Weight slabs stored in bf16: band params were pre-rounded to bf16-representable
    # values and 0/1 / power-of-two constants are exact, so this is lossless.
    packed = dict(
        w192=jnp.asarray(w192, jnp.bfloat16),
        w136=jnp.asarray(w136, jnp.bfloat16),
        small=jnp.asarray(small, jnp.float32),
    )
    meta = dict(B=B, T=T, NB=NB, FS=FS, KM=KM,
                band_slices=tuple(band_slices), c192=c192, c136=c136, s_lay=s_lay)
    return packed, meta


# ------------------------------ Pallas kernel --------------------------------
def make_kernel(meta):
    B, T, NB, FS = meta['B'], meta['T'], meta['NB'], meta['FS']
    BT = B * T
    band_slices = meta['band_slices']
    c192, c136, sl = meta['c192'], meta['c136'], meta['s_lay']

    def cW(Wv, lay, name):
        a, b = lay[name]
        return Wv[:, a:b]

    def kernel(x_ref, w192_ref, w136_ref, small_ref, out_ref):
        f32 = jnp.float32
        dot = lambda a, b: jnp.dot(a, b, preferred_element_type=f32)

        x = x_ref[...]                                  # [BT, K*D] f32
        Wa = w192_ref[...].astype(f32)                  # [KD, KM+2FS]
        Wb = w136_ref[...].astype(f32)                  # [FS, 1014]
        S = small_ref[...]                              # [48, 192] f32

        w1, w2, wm2 = cW(Wa, c192, 'w1'), cW(Wa, c192, 'w2'), cW(Wa, c192, 'wm2')
        wg, wt = cW(Wb, c136, 'wg'), cW(Wb, c136, 'wt')
        wup, wc = cW(Wb, c136, 'wup'), cW(Wb, c136, 'wc')
        P, mmean = cW(Wb, c136, 'P'), cW(Wb, c136, 'mmean')

        def srow(name):
            r0, r1, w = sl[name]
            return S[r0:r1, 0:w]

        b1, bm1 = srow('b1'), srow('bm1')
        b2, bgv, bgg = srow('b2'), srow('bgv'), srow('bgg')
        bt_, bm2, bcv, bcg = srow('bt'), srow('bm2'), srow('bcv'), srow('bcg')
        sam1, sam2, samb = srow('sam1'), srow('sam2'), srow('samb')
        a_avg, G, masks = srow('a_avg'), srow('G'), srow('masks')

        # ---- MLP: Linear -> tanh -> Linear -> fused GLU(value|gate), all bands ----
        h = jnp.tanh(dot(x, w1) + b1)                             # [BT, KM]
        y0 = dot(h, w2) + b2                                      # [BT, FS]
        zg = dot(y0, wg)                                          # [BT, 2FS]  fused GLU
        y = (zg[:, 0:FS] + bgv) * jax.nn.sigmoid(zg[:, FS:2 * FS] + bgg)

        # ---- CAM: avg pool via constant matmul (MXU), max pool via sublane reduce ----
        avg = dot(a_avg, y)                                       # [B, FS]
        mx = jnp.concatenate(
            [jnp.max(y[b * T:(b + 1) * T, :], axis=0, keepdims=True) for b in range(B)],
            axis=0)                                               # [B, FS]
        pool = jnp.concatenate([avg, mx], axis=0)                 # [2B, FS]
        hh = jnp.maximum(dot(pool, wup) + bm1, 0.0)               # shared MLP, batched
        camo = dot(hh, wm2) + bm2                                 # [2B, FS]
        feats0 = camo[0:B, :] + camo[B:2 * B, :]                  # [B, FS]
        zc = dot(feats0, wc)                                      # [B, 2FS]  fused GLU
        feats = (zc[:, 0:FS] + bcv) * jax.nn.sigmoid(zc[:, FS:2 * FS] + bcg)

        # 1x1-conv transform (consumes post-GLU y -> cannot be fused with the GLU matmul)
        tr = dot(y, wt) + bt_                                     # [BT, FS]
        feats_exp = jnp.concatenate(
            [jnp.broadcast_to(feats[b:b + 1, :], (T, FS)) for b in range(B)], axis=0)
        tr = tr * feats_exp

        # ---- SAM: channel mean via constant matmul, channel max via lane reduce,
        #      7-tap time conv via XLU sublane rolls + per-batch validity masks ----
        x1 = dot(tr, mmean)                                       # [BT, NB]
        x2 = jnp.concatenate(
            [jnp.max(tr[:, o:o + Fk], axis=1, keepdims=True) for o, Fk in band_slices],
            axis=1)                                               # [BT, NB]
        acc = jnp.broadcast_to(samb, (BT, NB))                    # conv bias
        for j in range(SAM_KS):
            d = j - SAM_KS // 2
            if d == 0:
                s1, s2 = x1, x2
            else:
                s1 = pltpu.roll(x1, shift=(-d) % BT, axis=0)      # row r <- row r+d (cyclic)
                s2 = pltpu.roll(x2, shift=(-d) % BT, axis=0)
            contrib = sam1[j:j + 1, :] * s1 + sam2[j:j + 1, :] * s2
            if d != 0:
                contrib = contrib * masks[:, j:j + 1]             # zero-padding / wrap kill
            acc = acc + contrib
        sgate = jax.nn.sigmoid(acc)                               # [BT, NB]

        # ---- per-band spatial gate via 0/1 expansion matmul + baked-in Merge permutation
        slab = tr * dot(sgate, G)                                 # [BT, FS] band-major
        out_ref[...] = dot(slab, P)                               # [BT, FS] (re/im, ch, freq)

    return kernel


# ------------------------------ full forward ---------------------------------
def forward_pallas(x, packed, *, meta, fm):
    """Input [B, K, T, fc_dim] -> complex [B, fm//2, n_fft//2+1, T] with ONE Pallas call."""
    B, K, T, D = x.shape
    FS = meta['FS']
    # 'Before Split' (act1/norm1/act2) and 'After Split' (act3/norm2/act4) are Identity.
    x_flat = jnp.transpose(x, (0, 2, 1, 3)).reshape(B * T, K * D)    # band-major lanes
    out = pl.pallas_call(
        make_kernel(meta),
        out_shape=jax.ShapeDtypeStruct((B * T, FS), jnp.float32),
        in_specs=[pl.BlockSpec(memory_space=pltpu.MemorySpace.VMEM)] * 4,
        out_specs=pl.BlockSpec(memory_space=pltpu.MemorySpace.VMEM),
    )(x_flat, packed['w192'], packed['w136'], packed['small'])
    # Merge: kernel already emitted (re/im, channel, freq)-ordered lanes -> reshape only.
    # 'After Merge' view_as_real round trip with Identity acts/norm is a no-op.
    C = fm // 2
    n_freq = FS // (2 * C)
    o = out.reshape(B, T, 2, C, n_freq)
    re = jnp.transpose(o[:, :, 0], (0, 2, 3, 1))
    im = jnp.transpose(o[:, :, 1], (0, 2, 3, 1))
    return lax.complex(re, im)


# ------------------------- pure-JAX reference (check) ------------------------
def band_reference(x_band, p, F):
    B, T, D = x_band.shape
    x = x_band.reshape(B * T, D)
    h = jnp.tanh(x @ p['w1'] + p['b1'])
    y = h @ p['w2'] + p['b2']
    y = (y @ p['wgv'] + p['bgv']) * jax.nn.sigmoid(y @ p['wgg'] + p['bgg'])
    y3 = y.reshape(B, T, F)
    avg, mx = jnp.mean(y3, axis=1), jnp.max(y3, axis=1)
    cam = lambda v: jnp.maximum(v @ p['wm1'] + p['bm1'], 0.0) @ p['wm2'] + p['bm2']
    feats = cam(avg) + cam(mx)
    feats = (feats @ p['wcv'] + p['bcv']) * jax.nn.sigmoid(feats @ p['wcg'] + p['bcg'])
    tr = (y @ p['wt'] + p['bt']).reshape(B, T, F) * feats[:, None, :]
    x1, x2 = jnp.mean(tr, axis=2), jnp.max(tr, axis=2)          # [B, T]
    pad = SAM_KS // 2
    x1p = jnp.pad(x1, ((0, 0), (pad, pad)))
    x2p = jnp.pad(x2, ((0, 0), (pad, pad)))
    conv = p['bsam'] + sum(p['wsam'][0, j] * x1p[:, j:j + T] +
                           p['wsam'][1, j] * x2p[:, j:j + T] for j in range(SAM_KS))
    return tr * jax.nn.sigmoid(conv)[:, :, None]


def merge_bands_reference(o, band_indices, fm):
    """[B, T, sum(F)] real -> complex [B, fm//2, n_freq, T] (gather formulation)."""
    B, T, _ = o.shape
    C = fm // 2
    n_freq = band_indices[-1][1]
    perm_re = np.zeros((C, n_freq), np.int32)
    perm_im = np.zeros((C, n_freq), np.int32)
    off = 0
    for s, e in band_indices:
        bw = e - s
        for c in range(C):
            perm_re[c, s:e] = off + (2 * c) * bw + np.arange(bw)
            perm_im[c, s:e] = off + (2 * c + 1) * bw + np.arange(bw)
        off += bw * fm
    re = jnp.take(o, jnp.asarray(perm_re.reshape(-1)), axis=2).reshape(B, T, C, n_freq)
    im = jnp.take(o, jnp.asarray(perm_im.reshape(-1)), axis=2).reshape(B, T, C, n_freq)
    return lax.complex(jnp.transpose(re, (0, 2, 3, 1)), jnp.transpose(im, (0, 2, 3, 1)))


def forward_reference(x, band_params, band_indices, fm):
    outs = [band_reference(x[:, i], band_params[i], (e - s) * fm)
            for i, (s, e) in enumerate(band_indices)]
    return merge_bands_reference(jnp.concatenate(outs, axis=-1), band_indices, fm)


# ----------------------------------- main ------------------------------------
if __name__ == "__main__":
    key = jax.random.PRNGKey(0)
    band_indices = freq2bands(BANDSPLITS, SR, N_FFT)        # 6 bands, widths sum to 17
    bandwidths = [e - s for s, e in band_indices]

    kx, kp = jax.random.split(key)
    x = jax.random.normal(kx, (BATCH, len(bandwidths), T_TIMESTEPS, FC_DIM), jnp.float32)
    band_params = [init_band_params(jax.random.fold_in(kp, i), FC_DIM, MLP_DIM,
                                    bw * FREQUENCY_MUL)
                   for i, bw in enumerate(bandwidths)]
    # Pre-round every parameter to a bf16-representable f32 value so the bf16-packed
    # weight slabs in the kernel are bit-exact against the f32 reference below.
    band_params = [jax.tree_util.tree_map(
        lambda a: a.astype(jnp.bfloat16).astype(jnp.float32), p) for p in band_params]

    packed, meta = pack_params(band_params, band_indices, FREQUENCY_MUL,
                               BATCH, T_TIMESTEPS)

    fwd = jax.jit(functools.partial(forward_pallas, meta=meta, fm=FREQUENCY_MUL))
    out = jax.block_until_ready(fwd(x, packed))

    ref = forward_reference(x, band_params, band_indices, FREQUENCY_MUL)
    np.testing.assert_allclose(np.asarray(out), np.asarray(ref), rtol=1e-3, atol=1e-3)
    assert out.shape == (BATCH, FREQUENCY_MUL // 2, N_FFT // 2 + 1, T_TIMESTEPS)
    assert out.dtype == jnp.complex64
    print("KERNEL_OK")
</pallas_src>

<mosaic_0001>
module attributes {stable_mosaic.version = 11 : i64} {
  func.func @kernel(%arg0: memref<16x192xf32, #tpu.memory_space<vmem>>, %arg1: memref<192x464xbf16, #tpu.memory_space<vmem>>, %arg2: memref<136x1014xbf16, #tpu.memory_space<vmem>>, %arg3: memref<48x192xf32, #tpu.memory_space<vmem>>, %arg4: memref<16x136xf32, #tpu.memory_space<vmem>>) attributes {dimension_semantics = [], scalar_prefetch = 0 : i64, scratch_operands = 0 : i64, tpu.core_type = #tpu.core_type<tc>} {
    %c0 = arith.constant 0 : index
    %c0_0 = arith.constant 0 : index
    %0 = vector.load %arg0[%c0, %c0_0] : memref<16x192xf32, #tpu.memory_space<vmem>>, vector<16x192xf32>
    %c0_1 = arith.constant 0 : index
    %c0_2 = arith.constant 0 : index
    %1 = vector.load %arg1[%c0_1, %c0_2] : memref<192x464xbf16, #tpu.memory_space<vmem>>, vector<192x464xbf16>
    %2 = arith.extf %1 : vector<192x464xbf16> to vector<192x464xf32>
    %c0_3 = arith.constant 0 : index
    %c0_4 = arith.constant 0 : index
    %3 = vector.load %arg2[%c0_3, %c0_4] : memref<136x1014xbf16, #tpu.memory_space<vmem>>, vector<136x1014xbf16>
    %4 = arith.extf %3 : vector<136x1014xbf16> to vector<136x1014xf32>
    %c0_5 = arith.constant 0 : index
    %c0_6 = arith.constant 0 : index
    %5 = vector.load %arg3[%c0_5, %c0_6] : memref<48x192xf32, #tpu.memory_space<vmem>>, vector<48x192xf32>
    %6 = vector.extract_strided_slice %2 {offsets = [0, 0], sizes = [192, 192], strides = [1, 1]} : vector<192x464xf32> to vector<192x192xf32>
    %7 = vector.extract_strided_slice %2 {offsets = [0, 192], sizes = [192, 136], strides = [1, 1]} : vector<192x464xf32> to vector<192x136xf32>
    %8 = vector.extract_strided_slice %2 {offsets = [0, 328], sizes = [192, 136], strides = [1, 1]} : vector<192x464xf32> to vector<192x136xf32>
    %9 = vector.extract_strided_slice %4 {offsets = [0, 0], sizes = [136, 272], strides = [1, 1]} : vector<136x1014xf32> to vector<136x272xf32>
    %10 = vector.extract_strided_slice %4 {offsets = [0, 272], sizes = [136, 136], strides = [1, 1]} : vector<136x1014xf32> to vector<136x136xf32>
    %11 = vector.extract_strided_slice %4 {offsets = [0, 408], sizes = [136, 192], strides = [1, 1]} : vector<136x1014xf32> to vector<136x192xf32>
    %12 = vector.extract_strided_slice %4 {offsets = [0, 600], sizes = [136, 272], strides = [1, 1]} : vector<136x1014xf32> to vector<136x272xf32>
    %13 = vector.extract_strided_slice %4 {offsets = [0, 872], sizes = [136, 136], strides = [1, 1]} : vector<136x1014xf32> to vector<136x136xf32>
    %14 = vector.extract_strided_slice %4 {offsets = [0, 1008], sizes = [136, 6], strides = [1, 1]} : vector<136x1014xf32> to vector<136x6xf32>
    %15 = vector.extract_strided_slice %5 {offsets = [0, 0], sizes = [1, 192], strides = [1, 1]} : vector<48x192xf32> to vector<1x192xf32>
    %16 = vector.extract_strided_slice %5 {offsets = [1, 0], sizes = [1, 192], strides = [1, 1]} : vector<48x192xf32> to vector<1x192xf32>
    %17 = vector.extract_strided_slice %5 {offsets = [2, 0], sizes = [1, 136], strides = [1, 1]} : vector<48x192xf32> to vector<1x136xf32>
    %18 = vector.extract_strided_slice %5 {offsets = [3, 0], sizes = [1, 136], strides = [1, 1]} : vector<48x192xf32> to vector<1x136xf32>
    %19 = vector.extract_strided_slice %5 {offsets = [4, 0], sizes = [1, 136], strides = [1, 1]} : vector<48x192xf32> to vector<1x136xf32>
    %20 = vector.extract_strided_slice %5 {offsets = [5, 0], sizes = [1, 136], strides = [1, 1]} : vector<48x192xf32> to vector<1x136xf32>
    %21 = vector.extract_strided_slice %5 {offsets = [6, 0], sizes = [1, 136], strides = [1, 1]} : vector<48x192xf32> to vector<1x136xf32>
    %22 = vector.extract_strided_slice %5 {offsets = [7, 0], sizes = [1, 136], strides = [1, 1]} : vector<48x192xf32> to vector<1x136xf32>
    %23 = vector.extract_strided_slice %5 {offsets = [8, 0], sizes = [1, 136], strides = [1, 1]} : vector<48x192xf32> to vector<1x136xf32>
    %24 = vector.extract_strided_slice %5 {offsets = [9, 0], sizes = [7, 6], strides = [1, 1]} : vector<48x192xf32> to vector<7x6xf32>
    %25 = vector.extract_strided_slice %5 {offsets = [16, 0], sizes = [7, 6], strides = [1, 1]} : vector<48x192xf32> to vector<7x6xf32>
    %26 = vector.extract_strided_slice %5 {offsets = [23, 0], sizes = [1, 6], strides = [1, 1]} : vector<48x192xf32> to vector<1x6xf32>
    %27 = vector.extract_strided_slice %5 {offsets = [24, 0], sizes = [2, 16], strides = [1, 1]} : vector<48x192xf32> to vector<2x16xf32>
    %28 = vector.extract_strided_slice %5 {offsets = [26, 0], sizes = [6, 136], strides = [1, 1]} : vector<48x192xf32> to vector<6x136xf32>
    %29 = vector.extract_strided_slice %5 {offsets = [32, 0], sizes = [16, 7], strides = [1, 1]} : vector<48x192xf32> to vector<16x7xf32>
    %cst = arith.constant dense<0.000000e+00> : vector<16x192xf32>
    %30 = tpu.matmul %0, %6, %cst {dimension_numbers = #tpu.dot_dimension_numbers<[1], [0], [0], [1], [0, 0, 1, 1], [], []>} : vector<16x192xf32>, vector<192x192xf32>, vector<16x192xf32> -> vector<16x192xf32>
    %31 = vector.broadcast %15 : vector<1x192xf32> to vector<16x192xf32>
    %32 = arith.addf %30, %31 : vector<16x192xf32>
    %33 = math.tanh %32 : vector<16x192xf32>
    %cst_7 = arith.constant dense<0.000000e+00> : vector<16x136xf32>
    %34 = tpu.matmul %33, %7, %cst_7 {dimension_numbers = #tpu.dot_dimension_numbers<[1], [0], [0], [1], [0, 0, 1, 1], [], []>} : vector<16x192xf32>, vector<192x136xf32>, vector<16x136xf32> -> vector<16x136xf32>
    %35 = vector.broadcast %17 : vector<1x136xf32> to vector<16x136xf32>
    %36 = arith.addf %34, %35 : vector<16x136xf32>
    %cst_8 = arith.constant dense<0.000000e+00> : vector<16x272xf32>
    %37 = tpu.matmul %36, %9, %cst_8 {dimension_numbers = #tpu.dot_dimension_numbers<[1], [0], [0], [1], [0, 0, 1, 1], [], []>} : vector<16x136xf32>, vector<136x272xf32>, vector<16x272xf32> -> vector<16x272xf32>
    %38 = vector.extract_strided_slice %37 {offsets = [0, 0], sizes = [16, 136], strides = [1, 1]} : vector<16x272xf32> to vector<16x136xf32>
    %39 = vector.broadcast %18 : vector<1x136xf32> to vector<16x136xf32>
    %40 = arith.addf %38, %39 : vector<16x136xf32>
    %41 = vector.extract_strided_slice %37 {offsets = [0, 136], sizes = [16, 136], strides = [1, 1]} : vector<16x272xf32> to vector<16x136xf32>
    %42 = vector.broadcast %19 : vector<1x136xf32> to vector<16x136xf32>
    %43 = arith.addf %41, %42 : vector<16x136xf32>
    %44 = arith.negf %43 : vector<16x136xf32>
    %45 = math.exp %44 : vector<16x136xf32>
    %cst_9 = arith.constant 1.000000e+00 : f32
    %46 = vector.broadcast %cst_9 : f32 to vector<16x136xf32>
    %47 = arith.addf %46, %45 : vector<16x136xf32>
    %48 = arith.divf %46, %47 : vector<16x136xf32>
    %49 = arith.mulf %40, %48 : vector<16x136xf32>
    %cst_10 = arith.constant dense<0.000000e+00> : vector<2x136xf32>
    %50 = tpu.matmul %27, %49, %cst_10 {dimension_numbers = #tpu.dot_dimension_numbers<[1], [0], [0], [1], [0, 0, 1, 1], [], []>} : vector<2x16xf32>, vector<16x136xf32>, vector<2x136xf32> -> vector<2x136xf32>
    %51 = vector.extract_strided_slice %49 {offsets = [0, 0], sizes = [8, 136], strides = [1, 1]} : vector<16x136xf32> to vector<8x136xf32>
    %cst_11 = arith.constant dense<0xFF800000> : vector<136xf32>
    %52 = vector.multi_reduction <maximumf>, %51, %cst_11 [0] : vector<8x136xf32> to vector<136xf32>
    %53 = vector.shape_cast %52 : vector<136xf32> to vector<1x136xf32>
    %54 = vector.extract_strided_slice %49 {offsets = [8, 0], sizes = [8, 136], strides = [1, 1]} : vector<16x136xf32> to vector<8x136xf32>
    %cst_12 = arith.constant dense<0xFF800000> : vector<136xf32>
    %55 = vector.multi_reduction <maximumf>, %54, %cst_12 [0] : vector<8x136xf32> to vector<136xf32>
    %56 = vector.shape_cast %55 : vector<136xf32> to vector<1x136xf32>
    %57 = tpu.concatenate %53, %56 in 0 : vector<1x136xf32>, vector<1x136xf32> -> vector<2x136xf32>
    %58 = tpu.concatenate %50, %57 in 0 : vector<2x136xf32>, vector<2x136xf32> -> vector<4x136xf32>
    %cst_13 = arith.constant dense<0.000000e+00> : vector<4x192xf32>
    %59 = tpu.matmul %58, %11, %cst_13 {dimension_numbers = #tpu.dot_dimension_numbers<[1], [0], [0], [1], [0, 0, 1, 1], [], []>} : vector<4x136xf32>, vector<136x192xf32>, vector<4x192xf32> -> vector<4x192xf32>
    %60 = vector.broadcast %16 : vector<1x192xf32> to vector<4x192xf32>
    %61 = arith.addf %59, %60 : vector<4x192xf32>
    %cst_14 = arith.constant 0.000000e+00 : f32
    %62 = vector.broadcast %cst_14 : f32 to vector<4x192xf32>
    %63 = arith.maximumf %61, %62 : vector<4x192xf32>
    %cst_15 = arith.constant dense<0.000000e+00> : vector<4x136xf32>
    %64 = tpu.matmul %63, %8, %cst_15 {dimension_numbers = #tpu.dot_dimension_numbers<[1], [0], [0], [1], [0, 0, 1, 1], [], []>} : vector<4x192xf32>, vector<192x136xf32>, vector<4x136xf32> -> vector<4x136xf32>
    %65 = vector.broadcast %21 : vector<1x136xf32> to vector<4x136xf32>
    %66 = arith.addf %64, %65 : vector<4x136xf32>
    %67 = vector.extract_strided_slice %66 {offsets = [0, 0], sizes = [2, 136], strides = [1, 1]} : vector<4x136xf32> to vector<2x136xf32>
    %68 = vector.extract_strided_slice %66 {offsets = [2, 0], sizes = [2, 136], strides = [1, 1]} : vector<4x136xf32> to vector<2x136xf32>
    %69 = arith.addf %67, %68 : vector<2x136xf32>
    %cst_16 = arith.constant dense<0.000000e+00> : vector<2x272xf32>
    %70 = tpu.matmul %69, %12, %cst_16 {dimension_numbers = #tpu.dot_dimension_numbers<[1], [0], [0], [1], [0, 0, 1, 1], [], []>} : vector<2x136xf32>, vector<136x272xf32>, vector<2x272xf32> -> vector<2x272xf32>
    %71 = vector.extract_strided_slice %70 {offsets = [0, 0], sizes = [2, 136], strides = [1, 1]} : vector<2x272xf32> to vector<2x136xf32>
    %72 = vector.broadcast %22 : vector<1x136xf32> to vector<2x136xf32>
    %73 = arith.addf %71, %72 : vector<2x136xf32>
    %74 = vector.extract_strided_slice %70 {offsets = [0, 136], sizes = [2, 136], strides = [1, 1]} : vector<2x272xf32> to vector<2x136xf32>
    %75 = vector.broadcast %23 : vector<1x136xf32> to vector<2x136xf32>
    %76 = arith.addf %74, %75 : vector<2x136xf32>
    %77 = arith.negf %76 : vector<2x136xf32>
    %78 = math.exp %77 : vector<2x136xf32>
    %cst_17 = arith.constant 1.000000e+00 : f32
    %79 = vector.broadcast %cst_17 : f32 to vector<2x136xf32>
    %80 = arith.addf %79, %78 : vector<2x136xf32>
    %81 = arith.divf %79, %80 : vector<2x136xf32>
    %82 = arith.mulf %73, %81 : vector<2x136xf32>
    %cst_18 = arith.constant dense<0.000000e+00> : vector<16x136xf32>
    %83 = tpu.matmul %49, %10, %cst_18 {dimension_numbers = #tpu.dot_dimension_numbers<[1], [0], [0], [1], [0, 0, 1, 1], [], []>} : vector<16x136xf32>, vector<136x136xf32>, vector<16x136xf32> -> vector<16x136xf32>
    %84 = vector.broadcast %20 : vector<1x136xf32> to vector<16x136xf32>
    %85 = arith.addf %83, %84 : vector<16x136xf32>
    %86 = vector.extract_strided_slice %82 {offsets = [0, 0], sizes = [1, 136], strides = [1, 1]} : vector<2x136xf32> to vector<1x136xf32>
    %87 = vector.shape_cast %86 : vector<1x136xf32> to vector<1x136xf32>
    %88 = vector.broadcast %87 : vector<1x136xf32> to vector<8x136xf32>
    %89 = vector.extract_strided_slice %82 {offsets = [1, 0], sizes = [1, 136], strides = [1, 1]} : vector<2x136xf32> to vector<1x136xf32>
    %90 = vector.shape_cast %89 : vector<1x136xf32> to vector<1x136xf32>
    %91 = vector.broadcast %90 : vector<1x136xf32> to vector<8x136xf32>
    %92 = tpu.concatenate %88, %91 in 0 : vector<8x136xf32>, vector<8x136xf32> -> vector<16x136xf32>
    %93 = arith.mulf %85, %92 : vector<16x136xf32>
    %cst_19 = arith.constant dense<0.000000e+00> : vector<16x6xf32>
    %94 = tpu.matmul %93, %14, %cst_19 {dimension_numbers = #tpu.dot_dimension_numbers<[1], [0], [0], [1], [0, 0, 1, 1], [], []>} : vector<16x136xf32>, vector<136x6xf32>, vector<16x6xf32> -> vector<16x6xf32>
    %95 = vector.extract_strided_slice %93 {offsets = [0, 0], sizes = [16, 16], strides = [1, 1]} : vector<16x136xf32> to vector<16x16xf32>
    %cst_20 = arith.constant dense<0xFF800000> : vector<16xf32>
    %96 = vector.multi_reduction <maximumf>, %95, %cst_20 [1] : vector<16x16xf32> to vector<16xf32>
    %97 = vector.shape_cast %96 : vector<16xf32> to vector<16x1xf32>
    %98 = vector.extract_strided_slice %93 {offsets = [0, 16], sizes = [16, 16], strides = [1, 1]} : vector<16x136xf32> to vector<16x16xf32>
    %cst_21 = arith.constant dense<0xFF800000> : vector<16xf32>
    %99 = vector.multi_reduction <maximumf>, %98, %cst_21 [1] : vector<16x16xf32> to vector<16xf32>
    %100 = vector.shape_cast %99 : vector<16xf32> to vector<16x1xf32>
    %101 = vector.extract_strided_slice %93 {offsets = [0, 32], sizes = [16, 32], strides = [1, 1]} : vector<16x136xf32> to vector<16x32xf32>
    %cst_22 = arith.constant dense<0xFF800000> : vector<16xf32>
    %102 = vector.multi_reduction <maximumf>, %101, %cst_22 [1] : vector<16x32xf32> to vector<16xf32>
    %103 = vector.shape_cast %102 : vector<16xf32> to vector<16x1xf32>
    %104 = vector.extract_strided_slice %93 {offsets = [0, 64], sizes = [16, 32], strides = [1, 1]} : vector<16x136xf32> to vector<16x32xf32>
    %cst_23 = arith.constant dense<0xFF800000> : vector<16xf32>
    %105 = vector.multi_reduction <maximumf>, %104, %cst_23 [1] : vector<16x32xf32> to vector<16xf32>
    %106 = vector.shape_cast %105 : vector<16xf32> to vector<16x1xf32>
    %107 = vector.extract_strided_slice %93 {offsets = [0, 96], sizes = [16, 32], strides = [1, 1]} : vector<16x136xf32> to vector<16x32xf32>
    %cst_24 = arith.constant dense<0xFF800000> : vector<16xf32>
    %108 = vector.multi_reduction <maximumf>, %107, %cst_24 [1] : vector<16x32xf32> to vector<16xf32>
    %109 = vector.shape_cast %108 : vector<16xf32> to vector<16x1xf32>
    %110 = vector.extract_strided_slice %93 {offsets = [0, 128], sizes = [16, 8], strides = [1, 1]} : vector<16x136xf32> to vector<16x8xf32>
    %cst_25 = arith.constant dense<0xFF800000> : vector<16xf32>
    %111 = vector.multi_reduction <maximumf>, %110, %cst_25 [1] : vector<16x8xf32> to vector<16xf32>
    %112 = vector.shape_cast %111 : vector<16xf32> to vector<16x1xf32>
    %113 = tpu.concatenate %97, %100, %103, %106, %109, %112 in 1 : vector<16x1xf32>, vector<16x1xf32>, vector<16x1xf32>, vector<16x1xf32>, vector<16x1xf32>, vector<16x1xf32> -> vector<16x6xf32>
    %114 = vector.shape_cast %26 : vector<1x6xf32> to vector<1x6xf32>
    %115 = vector.broadcast %114 : vector<1x6xf32> to vector<16x6xf32>
    %c3_i32 = arith.constant 3 : i32
    %116 = tpu.dynamic_rotate %94 by %c3_i32 dim 0 : vector<16x6xf32>, i32 -> vector<16x6xf32>
    %c3_i32_26 = arith.constant 3 : i32
    %117 = tpu.dynamic_rotate %113 by %c3_i32_26 dim 0 : vector<16x6xf32>, i32 -> vector<16x6xf32>
    %118 = vector.extract_strided_slice %24 {offsets = [0, 0], sizes = [1, 6], strides = [1, 1]} : vector<7x6xf32> to vector<1x6xf32>
    %119 = vector.broadcast %118 : vector<1x6xf32> to vector<16x6xf32>
    %120 = arith.mulf %119, %116 : vector<16x6xf32>
    %121 = vector.extract_strided_slice %25 {offsets = [0, 0], sizes = [1, 6], strides = [1, 1]} : vector<7x6xf32> to vector<1x6xf32>
    %122 = vector.broadcast %121 : vector<1x6xf32> to vector<16x6xf32>
    %123 = arith.mulf %122, %117 : vector<16x6xf32>
    %124 = arith.addf %120, %123 : vector<16x6xf32>
    %125 = vector.extract_strided_slice %29 {offsets = [0, 0], sizes = [16, 1], strides = [1, 1]} : vector<16x7xf32> to vector<16x1xf32>
    %126 = vector.broadcast %125 : vector<16x1xf32> to vector<16x6xf32>
    %127 = arith.mulf %124, %126 : vector<16x6xf32>
    %128 = arith.addf %115, %127 : vector<16x6xf32>
    %c2_i32 = arith.constant 2 : i32
    %129 = tpu.dynamic_rotate %94 by %c2_i32 dim 0 : vector<16x6xf32>, i32 -> vector<16x6xf32>
    %c2_i32_27 = arith.constant 2 : i32
    %130 = tpu.dynamic_rotate %113 by %c2_i32_27 dim 0 : vector<16x6xf32>, i32 -> vector<16x6xf32>
    %131 = vector.extract_strided_slice %24 {offsets = [1, 0], sizes = [1, 6], strides = [1, 1]} : vector<7x6xf32> to vector<1x6xf32>
    %132 = vector.broadcast %131 : vector<1x6xf32> to vector<16x6xf32>
    %133 = arith.mulf %132, %129 : vector<16x6xf32>
    %134 = vector.extract_strided_slice %25 {offsets = [1, 0], sizes = [1, 6], strides = [1, 1]} : vector<7x6xf32> to vector<1x6xf32>
    %135 = vector.broadcast %134 : vector<1x6xf32> to vector<16x6xf32>
    %136 = arith.mulf %135, %130 : vector<16x6xf32>
    %137 = arith.addf %133, %136 : vector<16x6xf32>
    %138 = vector.extract_strided_slice %29 {offsets = [0, 1], sizes = [16, 1], strides = [1, 1]} : vector<16x7xf32> to vector<16x1xf32>
    %139 = vector.broadcast %138 : vector<16x1xf32> to vector<16x6xf32>
    %140 = arith.mulf %137, %139 : vector<16x6xf32>
    %141 = arith.addf %128, %140 : vector<16x6xf32>
    %c1_i32 = arith.constant 1 : i32
    %142 = tpu.dynamic_rotate %94 by %c1_i32 dim 0 : vector<16x6xf32>, i32 -> vector<16x6xf32>
    %c1_i32_28 = arith.constant 1 : i32
    %143 = tpu.dynamic_rotate %113 by %c1_i32_28 dim 0 : vector<16x6xf32>, i32 -> vector<16x6xf32>
    %144 = vector.extract_strided_slice %24 {offsets = [2, 0], sizes = [1, 6], strides = [1, 1]} : vector<7x6xf32> to vector<1x6xf32>
    %145 = vector.broadcast %144 : vector<1x6xf32> to vector<16x6xf32>
    %146 = arith.mulf %145, %142 : vector<16x6xf32>
    %147 = vector.extract_strided_slice %25 {offsets = [2, 0], sizes = [1, 6], strides = [1, 1]} : vector<7x6xf32> to vector<1x6xf32>
    %148 = vector.broadcast %147 : vector<1x6xf32> to vector<16x6xf32>
    %149 = arith.mulf %148, %143 : vector<16x6xf32>
    %150 = arith.addf %146, %149 : vector<16x6xf32>
    %151 = vector.extract_strided_slice %29 {offsets = [0, 2], sizes = [16, 1], strides = [1, 1]} : vector<16x7xf32> to vector<16x1xf32>
    %152 = vector.broadcast %151 : vector<16x1xf32> to vector<16x6xf32>
    %153 = arith.mulf %150, %152 : vector<16x6xf32>
    %154 = arith.addf %141, %153 : vector<16x6xf32>
    %155 = vector.extract_strided_slice %24 {offsets = [3, 0], sizes = [1, 6], strides = [1, 1]} : vector<7x6xf32> to vector<1x6xf32>
    %156 = vector.broadcast %155 : vector<1x6xf32> to vector<16x6xf32>
    %157 = arith.mulf %156, %94 : vector<16x6xf32>
    %158 = vector.extract_strided_slice %25 {offsets = [3, 0], sizes = [1, 6], strides = [1, 1]} : vector<7x6xf32> to vector<1x6xf32>
    %159 = vector.broadcast %158 : vector<1x6xf32> to vector<16x6xf32>
    %160 = arith.mulf %159, %113 : vector<16x6xf32>
    %161 = arith.addf %157, %160 : vector<16x6xf32>
    %162 = arith.addf %154, %161 : vector<16x6xf32>
    %c15_i32 = arith.constant 15 : i32
    %163 = tpu.dynamic_rotate %94 by %c15_i32 dim 0 : vector<16x6xf32>, i32 -> vector<16x6xf32>
    %c15_i32_29 = arith.constant 15 : i32
    %164 = tpu.dynamic_rotate %113 by %c15_i32_29 dim 0 : vector<16x6xf32>, i32 -> vector<16x6xf32>
    %165 = vector.extract_strided_slice %24 {offsets = [4, 0], sizes = [1, 6], strides = [1, 1]} : vector<7x6xf32> to vector<1x6xf32>
    %166 = vector.broadcast %165 : vector<1x6xf32> to vector<16x6xf32>
    %167 = arith.mulf %166, %163 : vector<16x6xf32>
    %168 = vector.extract_strided_slice %25 {offsets = [4, 0], sizes = [1, 6], strides = [1, 1]} : vector<7x6xf32> to vector<1x6xf32>
    %169 = vector.broadcast %168 : vector<1x6xf32> to vector<16x6xf32>
    %170 = arith.mulf %169, %164 : vector<16x6xf32>
    %171 = arith.addf %167, %170 : vector<16x6xf32>
    %172 = vector.extract_strided_slice %29 {offsets = [0, 4], sizes = [16, 1], strides = [1, 1]} : vector<16x7xf32> to vector<16x1xf32>
    %173 = vector.broadcast %172 : vector<16x1xf32> to vector<16x6xf32>
    %174 = arith.mulf %171, %173 : vector<16x6xf32>
    %175 = arith.addf %162, %174 : vector<16x6xf32>
    %c14_i32 = arith.constant 14 : i32
    %176 = tpu.dynamic_rotate %94 by %c14_i32 dim 0 : vector<16x6xf32>, i32 -> vector<16x6xf32>
    %c14_i32_30 = arith.constant 14 : i32
    %177 = tpu.dynamic_rotate %113 by %c14_i32_30 dim 0 : vector<16x6xf32>, i32 -> vector<16x6xf32>
    %178 = vector.extract_strided_slice %24 {offsets = [5, 0], sizes = [1, 6], strides = [1, 1]} : vector<7x6xf32> to vector<1x6xf32>
    %179 = vector.broadcast %178 : vector<1x6xf32> to vector<16x6xf32>
    %180 = arith.mulf %179, %176 : vector<16x6xf32>
    %181 = vector.extract_strided_slice %25 {offsets = [5, 0], sizes = [1, 6], strides = [1, 1]} : vector<7x6xf32> to vector<1x6xf32>
    %182 = vector.broadcast %181 : vector<1x6xf32> to vector<16x6xf32>
    %183 = arith.mulf %182, %177 : vector<16x6xf32>
    %184 = arith.addf %180, %183 : vector<16x6xf32>
    %185 = vector.extract_strided_slice %29 {offsets = [0, 5], sizes = [16, 1], strides = [1, 1]} : vector<16x7xf32> to vector<16x1xf32>
    %186 = vector.broadcast %185 : vector<16x1xf32> to vector<16x6xf32>
    %187 = arith.mulf %184, %186 : vector<16x6xf32>
    %188 = arith.addf %175, %187 : vector<16x6xf32>
    %c13_i32 = arith.constant 13 : i32
    %189 = tpu.dynamic_rotate %94 by %c13_i32 dim 0 : vector<16x6xf32>, i32 -> vector<16x6xf32>
    %c13_i32_31 = arith.constant 13 : i32
    %190 = tpu.dynamic_rotate %113 by %c13_i32_31 dim 0 : vector<16x6xf32>, i32 -> vector<16x6xf32>
    %191 = vector.extract_strided_slice %24 {offsets = [6, 0], sizes = [1, 6], strides = [1, 1]} : vector<7x6xf32> to vector<1x6xf32>
    %192 = vector.broadcast %191 : vector<1x6xf32> to vector<16x6xf32>
    %193 = arith.mulf %192, %189 : vector<16x6xf32>
    %194 = vector.extract_strided_slice %25 {offsets = [6, 0], sizes = [1, 6], strides = [1, 1]} : vector<7x6xf32> to vector<1x6xf32>
    %195 = vector.broadcast %194 : vector<1x6xf32> to vector<16x6xf32>
    %196 = arith.mulf %195, %190 : vector<16x6xf32>
    %197 = arith.addf %193, %196 : vector<16x6xf32>
    %198 = vector.extract_strided_slice %29 {offsets = [0, 6], sizes = [16, 1], strides = [1, 1]} : vector<16x7xf32> to vector<16x1xf32>
    %199 = vector.broadcast %198 : vector<16x1xf32> to vector<16x6xf32>
    %200 = arith.mulf %197, %199 : vector<16x6xf32>
    %201 = arith.addf %188, %200 : vector<16x6xf32>
    %202 = arith.negf %201 : vector<16x6xf32>
    %203 = math.exp %202 : vector<16x6xf32>
    %cst_32 = arith.constant 1.000000e+00 : f32
    %204 = vector.broadcast %cst_32 : f32 to vector<16x6xf32>
    %205 = arith.addf %204, %203 : vector<16x6xf32>
    %206 = arith.divf %204, %205 : vector<16x6xf32>
    %cst_33 = arith.constant dense<0.000000e+00> : vector<16x136xf32>
    %207 = tpu.matmul %206, %28, %cst_33 {dimension_numbers = #tpu.dot_dimension_numbers<[1], [0], [0], [1], [0, 0, 1, 1], [], []>} : vector<16x6xf32>, vector<6x136xf32>, vector<16x136xf32> -> vector<16x136xf32>
    %208 = arith.mulf %93, %207 : vector<16x136xf32>
    %cst_34 = arith.constant dense<0.000000e+00> : vector<16x136xf32>
    %209 = tpu.matmul %208, %13, %cst_34 {dimension_numbers = #tpu.dot_dimension_numbers<[1], [0], [0], [1], [0, 0, 1, 1], [], []>} : vector<16x136xf32>, vector<136x136xf32>, vector<16x136xf32> -> vector<16x136xf32>
    %c0_35 = arith.constant 0 : index
    %c0_36 = arith.constant 0 : index
    %210 = vector.load %arg4[%c0_35, %c0_36] : memref<16x136xf32, #tpu.memory_space<vmem>>, vector<16x136xf32>
    tpu.vector_store %arg4[%c0_35, %c0_36], %209 {strides = array<i32>} : memref<16x136xf32, #tpu.memory_space<vmem>>, vector<16x136xf32>,
    return
  }
}

</mosaic_0001>

<llo_original>
// kernel: custom-call
$region0: #{custom-call}
  %s0 = inlined_call_operand.vmem [shape: f32[2,4,17,8], index: 0, kind: input, shape index: {}]
  %s1 = inlined_call_operand.vmem [shape: f32[2,4,17,8], index: 1, kind: input, shape index: {}]
  %s2 = inlined_call_operand.hbm [shape: c64[2,4,17,8], index: 2, kind: output, shape index: {}]
  %s3 = scalar_lea.hbm %s2, 64
  $region1: #{custom-call} parent=0
    #allocation0 [shape = 's32[1]{0}', space=sflag, size = 0x4, scoped, tag = 'scoped memory for custom-call']
    %4 = vsyncpa [#allocation0], 0
    %s6 = sshll.u32 %s0, 4
    %s7 = int_to_ptr.vmem [resolvable:$true] %s6
    %s8 = sshll.u32 %s2, 4
    %s9 = int_to_ptr.hbm [resolvable:$true] %s8
    %11 = dma.vmem_to_hbm [thread:$0]  %s7, 1024, %s9, [#allocation0]
    %13 = dma.done [#allocation0], 1024
    %14 = vsyncpa [#allocation0], 1
  $region2: #{custom-call} parent=0
    #allocation1 [shape = 's32[1]{0}', space=sflag, size = 0x4, scoped, tag = 'scoped memory for custom-call']
    %15 = vsyncpa [#allocation1], 0
    %s17 = sshll.u32 %s1, 4
    %s18 = int_to_ptr.vmem [resolvable:$true] %s17
    %s19 = sshll.u32 %s3, 4
    %s20 = int_to_ptr.hbm [resolvable:$true] %s19
    %22 = dma.vmem_to_hbm [thread:$0]  %s18, 1024, %s20, [#allocation1]
    %24 = dma.done [#allocation1], 1024
    %25 = vsyncpa [#allocation1], 1

// kernel: forward_pallas.1
$region0: #{forward_pallas.1}
  #allocation0 [shape = 'u32[]', space=smem, size = 0x4, offset = 0x4, fixed_abs, tag = 'smem constant byte address 0x4 - core index']
  #allocation1 [shape = 'u32[72,128]{1,0:T(1,128)}', space=vmem, size = 0x9000, scoped, tag = 'internal scratch']
  %s0 = inlined_call_operand.vmem [shape: f32[16,192], index: 0, kind: input, shape index: {}]
  %s1 = inlined_call_operand.vmem [shape: bf16[192,464], index: 1, kind: input, shape index: {}]
  %s2 = inlined_call_operand.hbm [shape: bf16[136,1014], index: 2, kind: input, shape index: {}]
  %s3 = inlined_call_operand.hbm [shape: f32[48,192], index: 3, kind: input, shape index: {}]
  %s4 = inlined_call_operand.vmem [shape: f32[16,136], index: 4, kind: output, shape index: {}]
  %s5 = sld [smem:[#allocation0]]
  $region34: #{forward_pallas.1} parent=0
    _
  %s7 = ssub.s32 1, %s5
  %s8 = scalar_select 0, %s7, %s5
  $region1: #{forward_pallas.1} parent=0
    #allocation2 [shape = 'u8[278528]{0}', space=vmem, size = 0x44000, scoped, tag = 'input window, operand 2, single buffered']
    #allocation3 [shape = 's32[1]{0}', space=sflag, size = 0x4, scoped, tag = 'scoped memory for forward_pallas.1']
    #allocation4 [shape = 'u8[49152]{0}', space=vmem, size = 0xc000, scoped, tag = 'input window, operand 3, single buffered']
    #allocation5 [shape = 's32[1]{0}', space=sflag, size = 0x4, scoped, tag = 'scoped memory for forward_pallas.1']
    %9 = vsyncpa [#allocation3], 0
    %10 = vsyncpa [#allocation5], 0
    // Predicated region
    $region2: #{forward_pallas.1} parent=1 // pred_check
      _
    $region3: #{forward_pallas.1} parent=1 // pred_check_branch
      %12 = sbr.rel (0) target = $region5
    $region4: #{forward_pallas.1} parent=1 // pred_region
      _
    $region5: #{forward_pallas.1} parent=1 // pred_fallthru
      _
    // Predicated region
    $region6: #{forward_pallas.1} parent=1 // pred_check
      _
    $region7: #{forward_pallas.1} parent=1 // pred_check_branch
      %14 = sbr.rel (0) target = $region9
    $region8: #{forward_pallas.1} parent=1 // pred_region
      _
    $region9: #{forward_pallas.1} parent=1 // pred_fallthru
      _
    // Predicated region
    $region10: #{forward_pallas.1} parent=1 // pred_check
      _
    $region11: #{forward_pallas.1} parent=1 // pred_check_branch
      %16 = sbr.rel (0) target = $region13
    $region12: #{forward_pallas.1} parent=1 // pred_region
      %18 = vsyncadd [#allocation3], 0
      %s19 = sshll.u32 %s2, 4
      %s20 = int_to_ptr.hbm [resolvable:$true] %s19
      %s21 = sshll.u32 [#allocation2], 4
      %s22 = int_to_ptr.vmem [resolvable:$true] %s21
      %27 = dma.hbm_to_vmem [thread:$0]  %s20, 8704, %s22, [#allocation3], 512, 512, 32
    $region13: #{forward_pallas.1} parent=1 // pred_fallthru
      _
    // Predicated region
    $region14: #{forward_pallas.1} parent=1 // pred_check
      _
    $region15: #{forward_pallas.1} parent=1 // pred_check_branch
      %29 = sbr.rel (0) target = $region17
    $region16: #{forward_pallas.1} parent=1 // pred_region
      %31 = vsyncadd [#allocation5], 0
      %s32 = sshll.u32 %s3, 4
      %s33 = int_to_ptr.hbm [resolvable:$true] %s32
      %s34 = sshll.u32 [#allocation4], 4
      %s35 = int_to_ptr.vmem [resolvable:$true] %s34
      %40 = dma.hbm_to_vmem [thread:$0]  %s33, 1536, %s35, [#allocation5], 256, 256, 16
    $region17: #{forward_pallas.1} parent=1 // pred_fallthru
      _
    // Predicated region
    $region18: #{forward_pallas.1} parent=1 // pred_check
      _
    $region19: #{forward_pallas.1} parent=1 // pred_check_branch
      %42 = sbr.rel (0) target = $region21
    $region20: #{forward_pallas.1} parent=1 // pred_region
      %44 = dma.done [#allocation3], 8704
    $region21: #{forward_pallas.1} parent=1 // pred_fallthru
      _
    // Predicated region
    $region22: #{forward_pallas.1} parent=1 // pred_check
      _
    $region23: #{forward_pallas.1} parent=1 // pred_check_branch
      %46 = sbr.rel (0) target = $region25
    $region24: #{forward_pallas.1} parent=1 // pred_region
      %48 = dma.done [#allocation5], 1536
    $region25: #{forward_pallas.1} parent=1 // pred_fallthru
      _
    %v49 = vld [vmem:[%s0] sm:$0xff]
    %v50 = vld [vmem:[%s0 + $0x8] sm:$0xff]
    %v51 = vld [vmem:[%s0 + $0x10] sm:$0xff]
    %v52 = vld [vmem:[%s0 + $0x18] sm:$0xff]
    %v53 = vld [vmem:[%s1] sm:$0xff]
    %v54 = vld [vmem:[%s1 + $0x8] sm:$0xff]
    %v55 = vld [vmem:[%s1 + $0x10] sm:$0xff]
    %v56 = vld [vmem:[%s1 + $0x18] sm:$0xff]
    %v57 = vld [vmem:[%s1 + $0x20] sm:$0xff]
    %v58 = vld [vmem:[%s1 + $0x28] sm:$0xff]
    %v59 = vld [vmem:[%s1 + $0x30] sm:$0xff]
    %v60 = vld [vmem:[%s1 + $0x38] sm:$0xff]
    %v61 = vld [vmem:[%s1 + $0x40] sm:$0xff]
    %v62 = vld [vmem:[%s1 + $0x48] sm:$0xff]
    %v63 = vld [vmem:[%s1 + $0x50] sm:$0xff]
    %v64 = vld [vmem:[%s1 + $0x58] sm:$0xff]
    %v65 = vld [vmem:[%s1 + $0x60] sm:$0xff]
    %v66 = vld [vmem:[%s1 + $0x68] sm:$0xff]
    %v67 = vld [vmem:[%s1 + $0x70] sm:$0xff]
    %v68 = vld [vmem:[%s1 + $0x78] sm:$0xff]
    %v69 = vld [vmem:[%s1 + $0x80] sm:$0xff]
    %v70 = vld [vmem:[%s1 + $0x88] sm:$0xff]
    %v71 = vld [vmem:[%s1 + $0x90] sm:$0xff]
    %v72 = vld [vmem:[%s1 + $0x98] sm:$0xff]
    %v73 = vld [vmem:[%s1 + $0xa0] sm:$0xff]
    %v74 = vld [vmem:[%s1 + $0xa8] sm:$0xff]
    %v75 = vld [vmem:[%s1 + $0xb0] sm:$0xff]
    %v76 = vld [vmem:[%s1 + $0xb8] sm:$0xff]
    %v77 = vld [vmem:[%s1 + $0xc0] sm:$0xff]
    %v78 = vld [vmem:[%s1 + $0xc8] sm:$0xff]
    %v79 = vld [vmem:[%s1 + $0xd0] sm:$0xff]
    %v80 = vld [vmem:[%s1 + $0xd8] sm:$0xff]
    %v81 = vld [vmem:[%s1 + $0xe0] sm:$0xff]
    %v82 = vld [vmem:[%s1 + $0xe8] sm:$0xff]
    %v83 = vld [vmem:[%s1 + $0xf0] sm:$0xff]
    %v84 = vld [vmem:[%s1 + $0xf8] sm:$0xff]
    %v85 = vld [vmem:[%s1 + $0x100] sm:$0xff]
    %v86 = vld [vmem:[%s1 + $0x108] sm:$0xff]
    %v87 = vld [vmem:[%s1 + $0x110] sm:$0xff]
    %v88 = vld [vmem:[%s1 + $0x118] sm:$0xff]
    %v89 = vld [vmem:[%s1 + $0x120] sm:$0xff]
    %v90 = vld [vmem:[%s1 + $0x128] sm:$0xff]
    %v91 = vld [vmem:[%s1 + $0x130] sm:$0xff]
    %v92 = vld [vmem:[%s1 + $0x138] sm:$0xff]
    %v93 = vld [vmem:[%s1 + $0x140] sm:$0xff]
    %v94 = vld [vmem:[%s1 + $0x148] sm:$0xff]
    %v95 = vld [vmem:[%s1 + $0x150] sm:$0xff]
    %v96 = vld [vmem:[%s1 + $0x158] sm:$0xff]
    %v97 = vld [vmem:[%s1 + $0x160] sm:$0xff]
    %v98 = vld [vmem:[%s1 + $0x168] sm:$0xff]
    %v99 = vld [vmem:[%s1 + $0x170] sm:$0xff]
    %v100 = vld [vmem:[%s1 + $0x178] sm:$0xff]
    %v101 = vunpack.c.l.bf16 %v53
    %v102 = vunpack.c.h.bf16 %v53
    %v103 = vunpack.c.l.bf16 %v54
    %v104 = vunpack.c.h.bf16 %v54
    %v105 = vunpack.c.l.bf16 %v55
    %v106 = vunpack.c.h.bf16 %v55
    %v107 = vunpack.c.l.bf16 %v56
    %v108 = vunpack.c.h.bf16 %v56
    %v109 = vunpack.c.l.bf16 %v57
    %v110 = vunpack.c.h.bf16 %v57
    %v111 = vunpack.c.l.bf16 %v58
    %v112 = vunpack.c.h.bf16 %v58
    %v113 = vunpack.c.l.bf16 %v59
    %v114 = vunpack.c.h.bf16 %v59
    %v115 = vunpack.c.l.bf16 %v60
    %v116 = vunpack.c.h.bf16 %v60
    %v117 = vunpack.c.l.bf16 %v61
    %v118 = vunpack.c.h.bf16 %v61
    %v119 = vunpack.c.l.bf16 %v62
    %v120 = vunpack.c.h.bf16 %v62
    %v121 = vunpack.c.l.bf16 %v63
    %v122 = vunpack.c.h.bf16 %v63
    %v123 = vunpack.c.l.bf16 %v64
    %v124 = vunpack.c.h.bf16 %v64
    %v125 = vunpack.c.l.bf16 %v65
    %v126 = vunpack.c.h.bf16 %v65
    %v127 = vunpack.c.l.bf16 %v66
    %v128 = vunpack.c.h.bf16 %v66
    %v129 = vunpack.c.l.bf16 %v67
    %v130 = vunpack.c.h.bf16 %v67
    %v131 = vunpack.c.l.bf16 %v68
    %v132 = vunpack.c.h.bf16 %v68
    %v133 = vunpack.c.l.bf16 %v69
    %v134 = vunpack.c.h.bf16 %v69
    %v135 = vunpack.c.l.bf16 %v70
    %v136 = vunpack.c.h.bf16 %v70
    %v137 = vunpack.c.l.bf16 %v71
    %v138 = vunpack.c.h.bf16 %v71
    %v139 = vunpack.c.l.bf16 %v72
    %v140 = vunpack.c.h.bf16 %v72
    %v141 = vunpack.c.l.bf16 %v73
    %v142 = vunpack.c.h.bf16 %v73
    %v143 = vunpack.c.l.bf16 %v74
    %v144 = vunpack.c.h.bf16 %v74
    %v145 = vunpack.c.l.bf16 %v75
    %v146 = vunpack.c.h.bf16 %v75
    %v147 = vunpack.c.l.bf16 %v76
    %v148 = vunpack.c.h.bf16 %v76
    %v149 = vunpack.c.l.bf16 %v77
    %v150 = vunpack.c.h.bf16 %v77
    %v151 = vunpack.c.l.bf16 %v78
    %v152 = vunpack.c.h.bf16 %v78
    %v153 = vunpack.c.l.bf16 %v79
    %v154 = vunpack.c.h.bf16 %v79
    %v155 = vunpack.c.l.bf16 %v80
    %v156 = vunpack.c.h.bf16 %v80
    %v157 = vunpack.c.l.bf16 %v81
    %v158 = vunpack.c.h.bf16 %v81
    %v159 = vunpack.c.l.bf16 %v82
    %v160 = vunpack.c.h.bf16 %v82
    %v161 = vunpack.c.l.bf16 %v83
    %v162 = vunpack.c.h.bf16 %v83
    %v163 = vunpack.c.l.bf16 %v84
    %v164 = vunpack.c.h.bf16 %v84
    %v165 = vunpack.c.l.bf16 %v85
    %v166 = vunpack.c.h.bf16 %v85
    %v167 = vunpack.c.l.bf16 %v86
    %v168 = vunpack.c.h.bf16 %v86
    %v169 = vunpack.c.l.bf16 %v87
    %v170 = vunpack.c.h.bf16 %v87
    %v171 = vunpack.c.l.bf16 %v88
    %v172 = vunpack.c.h.bf16 %v88
    %v173 = vunpack.c.l.bf16 %v89
    %v174 = vunpack.c.h.bf16 %v89
    %v175 = vunpack.c.l.bf16 %v90
    %v176 = vunpack.c.h.bf16 %v90
    %v177 = vunpack.c.l.bf16 %v91
    %v178 = vunpack.c.h.bf16 %v91
    %v179 = vunpack.c.l.bf16 %v92
    %v180 = vunpack.c.h.bf16 %v92
    %v181 = vunpack.c.l.bf16 %v93
    %v182 = vunpack.c.h.bf16 %v93
    %v183 = vunpack.c.l.bf16 %v94
    %v184 = vunpack.c.h.bf16 %v94
    %v185 = vunpack.c.l.bf16 %v95
    %v186 = vunpack.c.h.bf16 %v95
    %v187 = vunpack.c.l.bf16 %v96
    %v188 = vunpack.c.h.bf16 %v96
    %v189 = vunpack.c.l.bf16 %v97
    %v190 = vunpack.c.h.bf16 %v97
    %v191 = vunpack.c.l.bf16 %v98
    %v192 = vunpack.c.h.bf16 %v98
    %v193 = vunpack.c.l.bf16 %v99
    %v194 = vunpack.c.h.bf16 %v99
    %v195 = vunpack.c.l.bf16 %v100
    %v196 = vunpack.c.h.bf16 %v100
    %v197 = vld [vmem:[#allocation2] sm:$0xff]
    %v198 = vld [vmem:[#allocation2 + $0x8] sm:$0xff]
    %v199 = vld [vmem:[#allocation2 + $0x10] sm:$0xff]
    %v200 = vld [vmem:[#allocation2 + $0x18] sm:$0xff]
    %v201 = vld [vmem:[#allocation2 + $0x20] sm:$0xff]
    %v202 = vld [vmem:[#allocation2 + $0x28] sm:$0xff]
    %v203 = vld [vmem:[#allocation2 + $0x30] sm:$0xff]
    %v204 = vld [vmem:[#allocation2 + $0x38] sm:$0xff]
    %v205 = vld [vmem:[#allocation2 + $0x40] sm:$0xff]
    %v206 = vld [vmem:[#allocation2 + $0x48] sm:$0xff]
    %v207 = vld [vmem:[#allocation2 + $0x50] sm:$0xff]
    %v208 = vld [vmem:[#allocation2 + $0x58] sm:$0xff]
    %v209 = vld [vmem:[#allocation2 + $0x60] sm:$0xff]
    %v210 = vld [vmem:[#allocation2 + $0x68] sm:$0xff]
    %v211 = vld [vmem:[#allocation2 + $0x70] sm:$0xff]
    %v212 = vld [vmem:[#allocation2 + $0x78] sm:$0xff]
    %v213 = vld [vmem:[#allocation2 + $0x80] sm:$0xff]
    %v214 = vld [vmem:[#allocation2 + $0x88] sm:$0xff]
    %v215 = vld [vmem:[#allocation2 + $0x90] sm:$0xff]
    %v216 = vld [vmem:[#allocation2 + $0x98] sm:$0xff]
    %v217 = vld [vmem:[#allocation2 + $0xa0] sm:$0xff]
    %v218 = vld [vmem:[#allocation2 + $0xa8] sm:$0xff]
    %v219 = vld [vmem:[#allocation2 + $0xb0] sm:$0xff]
    %v220 = vld [vmem:[#allocation2 + $0xb8] sm:$0xff]
    %v221 = vld [vmem:[#allocation2 + $0xc0] sm:$0xff]
    %v222 = vld [vmem:[#allocation2 + $0xc8] sm:$0xff]
    %v223 = vld [vmem:[#allocation2 + $0xd0] sm:$0xff]
    %v224 = vld [vmem:[#allocation2 + $0xd8] sm:$0xff]
    %v225 = vld [vmem:[#allocation2 + $0xe0] sm:$0xff]
    %v226 = vld [vmem:[#allocation2 + $0xe8] sm:$0xff]
    %v227 = vld [vmem:[#allocation2 + $0xf0] sm:$0xff]
    %v228 = vld [vmem:[#allocation2 + $0xf8] sm:$0xff]
    %v229 = vld [vmem:[#allocation2 + $0x100] sm:$0xff]
    %v230 = vld [vmem:[#allocation2 + $0x108] sm:$0xff]
    %v231 = vld [vmem:[#allocation2 + $0x110] sm:$0xff]
    %v232 = vld [vmem:[#allocation2 + $0x118] sm:$0xff]
    %v233 = vld [vmem:[#allocation2 + $0x120] sm:$0xff]
    %v234 = vld [vmem:[#allocation2 + $0x128] sm:$0xff]
    %v235 = vld [vmem:[#allocation2 + $0x130] sm:$0xff]
    %v236 = vld [vmem:[#allocation2 + $0x138] sm:$0xff]
    %v237 = vld [vmem:[#allocation2 + $0x140] sm:$0xff]
    %v238 = vld [vmem:[#allocation2 + $0x148] sm:$0xff]
    %v239 = vld [vmem:[#allocation2 + $0x150] sm:$0xff]
    %v240 = vld [vmem:[#allocation2 + $0x158] sm:$0xff]
    %v241 = vld [vmem:[#allocation2 + $0x160] sm:$0xff]
    %v242 = vld [vmem:[#allocation2 + $0x168] sm:$0xff]
    %v243 = vld [vmem:[#allocation2 + $0x170] sm:$0xff]
    %v244 = vld [vmem:[#allocation2 + $0x178] sm:$0xff]
    %v245 = vld [vmem:[#allocation2 + $0x180] sm:$0xff]
    %v246 = vld [vmem:[#allocation2 + $0x188] sm:$0xff]
    %v247 = vld [vmem:[#allocation2 + $0x190] sm:$0xff]
    %v248 = vld [vmem:[#allocation2 + $0x198] sm:$0xff]
    %v249 = vld [vmem:[#allocation2 + $0x1a0] sm:$0xff]
    %v250 = vld [vmem:[#allocation2 + $0x1a8] sm:$0xff]
    %v251 = vld [vmem:[#allocation2 + $0x1b0] sm:$0xff]
    %v252 = vld [vmem:[#allocation2 + $0x1b8] sm:$0xff]
    %v253 = vld [vmem:[#allocation2 + $0x1c0] sm:$0xff]
    %v254 = vld [vmem:[#allocation2 + $0x1c8] sm:$0xff]
    %v255 = vld [vmem:[#allocation2 + $0x1d0] sm:$0xff]
    %v256 = vld [vmem:[#allocation2 + $0x1d8] sm:$0xff]
    %v257 = vld [vmem:[#allocation2 + $0x1e0] sm:$0xff]
    %v258 = vld [vmem:[#allocation2 + $0x1e8] sm:$0xff]
    %v259 = vld [vmem:[#allocation2 + $0x1f0] sm:$0xff]
    %v260 = vld [vmem:[#allocation2 + $0x1f8] sm:$0xff]
    %v261 = vld [vmem:[#allocation2 + $0x200] sm:$0xff]
    %v262 = vld [vmem:[#allocation2 + $0x208] sm:$0xff]
    %v263 = vld [vmem:[#allocation2 + $0x210] sm:$0xff]
    %v264 = vld [vmem:[#allocation2 + $0x218] sm:$0xff]
    %v265 = vunpack.c.l.bf16 %v197
    %v266 = vunpack.c.h.bf16 %v197
    %v267 = vunpack.c.l.bf16 %v198
    %v268 = vunpack.c.h.bf16 %v198
    %v269 = vunpack.c.l.bf16 %v199
    %v270 = vunpack.c.h.bf16 %v199
    %v271 = vunpack.c.l.bf16 %v200
    %v272 = vunpack.c.h.bf16 %v200
    %v273 = vunpack.c.l.bf16 %v201
    %v274 = vunpack.c.h.bf16 %v201
    %v275 = vunpack.c.l.bf16 %v202
    %v276 = vunpack.c.h.bf16 %v202
    %v277 = vunpack.c.l.bf16 %v203
    %v278 = vunpack.c.h.bf16 %v203
    %v279 = vunpack.c.l.bf16 %v204
    %v280 = vunpack.c.h.bf16 %v204
    %v281 = vunpack.c.l.bf16 %v205
    %v282 = vunpack.c.h.bf16 %v205
    %v283 = vunpack.c.l.bf16 %v206
    %v284 = vunpack.c.h.bf16 %v206
    %v285 = vunpack.c.l.bf16 %v207
    %v286 = vunpack.c.h.bf16 %v207
    %v287 = vunpack.c.l.bf16 %v208
    %v288 = vunpack.c.h.bf16 %v208
    %v289 = vunpack.c.l.bf16 %v209
    %v290 = vunpack.c.h.bf16 %v209
    %v291 = vunpack.c.l.bf16 %v210
    %v292 = vunpack.c.h.bf16 %v210
    %v293 = vunpack.c.l.bf16 %v211
    %v294 = vunpack.c.h.bf16 %v211
    %v295 = vunpack.c.l.bf16 %v212
    %v296 = vunpack.c.h.bf16 %v212
    %v297 = vunpack.c.l.bf16 %v213
    %v298 = vunpack.c.h.bf16 %v213
    %v299 = vunpack.c.l.bf16 %v214
    %v300 = vunpack.c.h.bf16 %v214
    %v301 = vunpack.c.l.bf16 %v215
    %v302 = vunpack.c.h.bf16 %v215
    %v303 = vunpack.c.l.bf16 %v216
    %v304 = vunpack.c.h.bf16 %v216
    %v305 = vunpack.c.l.bf16 %v217
    %v306 = vunpack.c.h.bf16 %v217
    %v307 = vunpack.c.l.bf16 %v218
    %v308 = vunpack.c.h.bf16 %v218
    %v309 = vunpack.c.l.bf16 %v219
    %v310 = vunpack.c.h.bf16 %v219
    %v311 = vunpack.c.l.bf16 %v220
    %v312 = vunpack.c.h.bf16 %v220
    %v313 = vunpack.c.l.bf16 %v221
    %v314 = vunpack.c.h.bf16 %v221
    %v315 = vunpack.c.l.bf16 %v222
    %v316 = vunpack.c.h.bf16 %v222
    %v317 = vunpack.c.l.bf16 %v223
    %v318 = vunpack.c.h.bf16 %v223
    %v319 = vunpack.c.l.bf16 %v224
    %v320 = vunpack.c.h.bf16 %v224
    %v321 = vunpack.c.l.bf16 %v225
    %v322 = vunpack.c.h.bf16 %v225
    %v323 = vunpack.c.l.bf16 %v226
    %v324 = vunpack.c.h.bf16 %v226
    %v325 = vunpack.c.l.bf16 %v227
    %v326 = vunpack.c.h.bf16 %v227
    %v327 = vunpack.c.l.bf16 %v228
    %v328 = vunpack.c.h.bf16 %v228
    %v329 = vunpack.c.l.bf16 %v229
    %v330 = vunpack.c.h.bf16 %v229
    %v331 = vunpack.c.l.bf16 %v230
    %v332 = vunpack.c.h.bf16 %v230
    %v333 = vunpack.c.l.bf16 %v231
    %v334 = vunpack.c.h.bf16 %v231
    %v335 = vunpack.c.l.bf16 %v232
    %v336 = vunpack.c.h.bf16 %v232
    %v337 = vunpack.c.l.bf16 %v233
    %v338 = vunpack.c.h.bf16 %v233
    %v339 = vunpack.c.l.bf16 %v234
    %v340 = vunpack.c.h.bf16 %v234
    %v341 = vunpack.c.l.bf16 %v235
    %v342 = vunpack.c.h.bf16 %v235
    %v343 = vunpack.c.l.bf16 %v236
    %v344 = vunpack.c.h.bf16 %v236
    %v345 = vunpack.c.l.bf16 %v237
    %v346 = vunpack.c.h.bf16 %v237
    %v347 = vunpack.c.l.bf16 %v238
    %v348 = vunpack.c.h.bf16 %v238
    %v349 = vunpack.c.l.bf16 %v239
    %v350 = vunpack.c.h.bf16 %v239
    %v351 = vunpack.c.l.bf16 %v240
    %v352 = vunpack.c.h.bf16 %v240
    %v353 = vunpack.c.l.bf16 %v241
    %v354 = vunpack.c.h.bf16 %v241
    %v355 = vunpack.c.l.bf16 %v242
    %v356 = vunpack.c.h.bf16 %v242
    %v357 = vunpack.c.l.bf16 %v243
    %v358 = vunpack.c.h.bf16 %v243
    %v359 = vunpack.c.l.bf16 %v244
    %v360 = vunpack.c.h.bf16 %v244
    %v361 = vunpack.c.l.bf16 %v245
    %v362 = vunpack.c.h.bf16 %v245
    %v363 = vunpack.c.l.bf16 %v246
    %v364 = vunpack.c.h.bf16 %v246
    %v365 = vunpack.c.l.bf16 %v247
    %v366 = vunpack.c.h.bf16 %v247
    %v367 = vunpack.c.l.bf16 %v248
    %v368 = vunpack.c.h.bf16 %v248
    %v369 = vunpack.c.l.bf16 %v249
    %v370 = vunpack.c.h.bf16 %v249
    %v371 = vunpack.c.l.bf16 %v250
    %v372 = vunpack.c.h.bf16 %v250
    %v373 = vunpack.c.l.bf16 %v251
    %v374 = vunpack.c.h.bf16 %v251
    %v375 = vunpack.c.l.bf16 %v252
    %v376 = vunpack.c.h.bf16 %v252
    %v377 = vunpack.c.l.bf16 %v253
    %v378 = vunpack.c.h.bf16 %v253
    %v379 = vunpack.c.l.bf16 %v254
    %v380 = vunpack.c.h.bf16 %v254
    %v381 = vunpack.c.l.bf16 %v255
    %v382 = vunpack.c.h.bf16 %v255
    %v383 = vunpack.c.l.bf16 %v256
    %v384 = vunpack.c.h.bf16 %v256
    %v385 = vunpack.c.l.bf16 %v257
    %v386 = vunpack.c.h.bf16 %v257
    %v387 = vunpack.c.l.bf16 %v258
    %v388 = vunpack.c.h.bf16 %v258
    %v389 = vunpack.c.l.bf16 %v259
    %v390 = vunpack.c.h.bf16 %v259
    %v391 = vunpack.c.l.bf16 %v260
    %v392 = vunpack.c.h.bf16 %v260
    %v393 = vunpack.c.l.bf16 %v261
    %v394 = vunpack.c.h.bf16 %v261
    %v395 = vunpack.c.l.bf16 %v262
    %v396 = vunpack.c.h.bf16 %v262
    %v397 = vunpack.c.l.bf16 %v263
    %v398 = vunpack.c.h.bf16 %v263
    %v399 = vunpack.c.l.bf16 %v264
    %v400 = vunpack.c.h.bf16 %v264
    %v401 = vld [vmem:[#allocation4] sm:$0xff]
    %v402 = vld [vmem:[#allocation4 + $0x8] sm:$0xff]
    %v403 = vld [vmem:[#allocation4 + $0x10] sm:$0xff]
    %v404 = vld [vmem:[#allocation4 + $0x18] sm:$0xff]
    %v405 = vld [vmem:[#allocation4 + $0x20] sm:$0xff]
    %v406 = vld [vmem:[#allocation4 + $0x30] sm:$0xff]
    %v407 = vld [vmem:[#allocation4 + $0x38] sm:$0xff]
    %v408 = vld [vmem:[#allocation4 + $0x40] sm:$0xff]
    %v409 = vld [vmem:[#allocation4 + $0x50] sm:$0xff]
    %v410 = vperm.slane %v401, 0
    %v411 = vperm.slane %v402, 0
    %vm412 = vcmask 523264
    %v414 = vsel %vm412, %v50, 0
    %v417 = vsel %vm412, %v52, 0
    %419 = vmatpush.msra.mxu0 %v161
    %420 = vmatpush.msra.mxu0 %v157
    %421 = vmatpush.msra.mxu0 %v153
    %422 = vmatpush.msra.mxu0 %v149
    %423 = vmatpush.msra.mxu0 %v145
    %424 = vmatpush.msra.mxu0 %v141
    %425 = vmatpush.msra.mxu0 %v137
    %426 = vmatpush.msra.mxu0 %v133
    %427 = vmatpush.msra.mxu0 %v129
    %428 = vmatpush.msra.mxu0 %v125
    %429 = vmatpush.msra.mxu0 %v121
    %430 = vmatpush.msra.mxu0 %v117
    %431 = vmatpush.msra.mxu0 %v113
    %432 = vmatpush.msra.mxu0 %v109
    %433 = vmatpush.msra.mxu0 %v105
    %434 = vmatpush.msra.mxu0 %v101
    %435 = vmatmul.f32.gmra.mxu0 %v49
    %v436 = vpop.f32.mrf.mxu0
    %v437 = vadd.f32 %v410, %v436
    %438 = vmatmul.f32.gmra.mxu0 %v51
    %v439 = vpop.f32.mrf.mxu0
    %v440 = vadd.f32 %v410, %v439
    %441 = vdwg.mxu0
    %442 = vmatpush.msra.mxu0 0.0
    %443 = vmatpush.msra.mxu0 0.0
    %444 = vmatpush.msra.mxu0 0.0
    %445 = vmatpush.msra.mxu0 0.0
    %446 = vmatpush.msra.mxu0 0.0
    %447 = vmatpush.msra.mxu0 0.0
    %448 = vmatpush.msra.mxu0 0.0
    %449 = vmatpush.msra.mxu0 0.0
    %450 = vmatpush.msra.mxu0 %v193
    %451 = vmatpush.msra.mxu0 %v189
    %452 = vmatpush.msra.mxu0 %v185
    %453 = vmatpush.msra.mxu0 %v181
    %454 = vmatpush.msra.mxu0 %v177
    %455 = vmatpush.msra.mxu0 %v173
    %456 = vmatpush.msra.mxu0 %v169
    %457 = vmatpush.msra.mxu0 %v165
    %458 = vmatmul.f32.gmra.mxu0 %v414
    %v459 = vpop.f32.mrf.mxu0
    %v460 = vadd.f32 %v437, %v459
    %461 = vmatmul.f32.gmra.mxu0 %v417
    %v462 = vpop.f32.mrf.mxu0
    %v463 = vadd.f32 %v440, %v462
    %464 = vdwg.mxu0
    %465 = vmatpush.msra.mxu0 %v162
    %466 = vmatpush.msra.mxu0 %v158
    %467 = vmatpush.msra.mxu0 %v154
    %468 = vmatpush.msra.mxu0 %v150
    %469 = vmatpush.msra.mxu0 %v146
    %470 = vmatpush.msra.mxu0 %v142
    %471 = vmatpush.msra.mxu0 %v138
    %472 = vmatpush.msra.mxu0 %v134
    %473 = vmatpush.msra.mxu0 %v130
    %474 = vmatpush.msra.mxu0 %v126
    %475 = vmatpush.msra.mxu0 %v122
    %476 = vmatpush.msra.mxu0 %v118
    %477 = vmatpush.msra.mxu0 %v114
    %478 = vmatpush.msra.mxu0 %v110
    %479 = vmatpush.msra.mxu0 %v106
    %480 = vmatpush.msra.mxu0 %v102
    %481 = vmatmul.f32.gmra.mxu0 %v49
    %v482 = vpop.f32.mrf.mxu0
    %v483 = vadd.f32 %v411, %v482
    %484 = vmatmul.f32.gmra.mxu0 %v51
    %v485 = vpop.f32.mrf.mxu0
    %v486 = vadd.f32 %v411, %v485
    %487 = vdwg.mxu0
    %488 = vmatpush.msra.mxu0 0.0
    %489 = vmatpush.msra.mxu0 0.0
    %490 = vmatpush.msra.mxu0 0.0
    %491 = vmatpush.msra.mxu0 0.0
    %492 = vmatpush.msra.mxu0 0.0
    %493 = vmatpush.msra.mxu0 0.0
    %494 = vmatpush.msra.mxu0 0.0
    %495 = vmatpush.msra.mxu0 0.0
    %496 = vmatpush.msra.mxu0 %v194
    %497 = vmatpush.msra.mxu0 %v190
    %498 = vmatpush.msra.mxu0 %v186
    %499 = vmatpush.msra.mxu0 %v182
    %500 = vmatpush.msra.mxu0 %v178
    %501 = vmatpush.msra.mxu0 %v174
    %502 = vmatpush.msra.mxu0 %v170
    %503 = vmatpush.msra.mxu0 %v166
    %504 = vmatmul.f32.gmra.mxu0 %v414
    %v505 = vpop.f32.mrf.mxu0
    %v506 = vadd.f32 %v483, %v505
    %507 = vmatmul.f32.gmra.mxu0 %v417
    %v508 = vpop.f32.mrf.mxu0
    %v509 = vadd.f32 %v486, %v508
    %510 = vdwg.mxu0
    %v511 = vtanh.pop %v460
    %v512 = vtanh.pop %v506
    %v513 = vtanh.pop %v463
    %v514 = vtanh.pop %v509
    %v515 = vperm.slane %v401, 2
    %v516 = vperm.slane %v402, 2
    %565 = vrot.lane.b32.xlu0 %v102, 64
    %v566 = vpop.permute.xlu0 %565
    %567 = vrot.lane.b32.xlu0 %v103, 64
    %v568 = vpop.permute.xlu0 %567
    %569 = vrot.lane.b32.xlu0 %v106, 64
    %v570 = vpop.permute.xlu0 %569
    %571 = vrot.lane.b32.xlu0 %v107, 64
    %v572 = vpop.permute.xlu0 %571
    %573 = vrot.lane.b32.xlu0 %v110, 64
    %v574 = vpop.permute.xlu0 %573
    %575 = vrot.lane.b32.xlu0 %v111, 64
    %v576 = vpop.permute.xlu0 %575
    %577 = vrot.lane.b32.xlu0 %v114, 64
    %v578 = vpop.permute.xlu0 %577
    %579 = vrot.lane.b32.xlu0 %v115, 64
    %v580 = vpop.permute.xlu0 %579
    %581 = vrot.lane.b32.xlu0 %v118, 64
    %v582 = vpop.permute.xlu0 %581
    %583 = vrot.lane.b32.xlu0 %v119, 64
    %v584 = vpop.permute.xlu0 %583
    %585 = vrot.lane.b32.xlu0 %v122, 64
    %v586 = vpop.permute.xlu0 %585
    %587 = vrot.lane.b32.xlu0 %v123, 64
    %v588 = vpop.permute.xlu0 %587
    %589 = vrot.lane.b32.xlu0 %v126, 64
    %v590 = vpop.permute.xlu0 %589
    %591 = vrot.lane.b32.xlu0 %v127, 64
    %v592 = vpop.permute.xlu0 %591
    %593 = vrot.lane.b32.xlu0 %v130, 64
    %v594 = vpop.permute.xlu0 %593
    %595 = vrot.lane.b32.xlu0 %v131, 64
    %v596 = vpop.permute.xlu0 %595
    %597 = vrot.lane.b32.xlu0 %v134, 64
    %v598 = vpop.permute.xlu0 %597
    %599 = vrot.lane.b32.xlu0 %v135, 64
    %v600 = vpop.permute.xlu0 %599
    %601 = vrot.lane.b32.xlu0 %v138, 64
    %v602 = vpop.permute.xlu0 %601
    %603 = vrot.lane.b32.xlu0 %v139, 64
    %v604 = vpop.permute.xlu0 %603
    %605 = vrot.lane.b32.xlu0 %v142, 64
    %v606 = vpop.permute.xlu0 %605
    %607 = vrot.lane.b32.xlu0 %v143, 64
    %v608 = vpop.permute.xlu0 %607
    %609 = vrot.lane.b32.xlu0 %v146, 64
    %v610 = vpop.permute.xlu0 %609
    %611 = vrot.lane.b32.xlu0 %v147, 64
    %v612 = vpop.permute.xlu0 %611
    %613 = vrot.lane.b32.xlu0 %v150, 64
    %v614 = vpop.permute.xlu0 %613
    %615 = vrot.lane.b32.xlu0 %v151, 64
    %v616 = vpop.permute.xlu0 %615
    %617 = vrot.lane.b32.xlu0 %v154, 64
    %v618 = vpop.permute.xlu0 %617
    %619 = vrot.lane.b32.xlu0 %v155, 64
    %v620 = vpop.permute.xlu0 %619
    %621 = vrot.lane.b32.xlu0 %v158, 64
    %v622 = vpop.permute.xlu0 %621
    %623 = vrot.lane.b32.xlu0 %v159, 64
    %v624 = vpop.permute.xlu0 %623
    %625 = vrot.lane.b32.xlu0 %v162, 64
    %v626 = vpop.permute.xlu0 %625
    %627 = vrot.lane.b32.xlu0 %v163, 64
    %v628 = vpop.permute.xlu0 %627
    %629 = vrot.lane.b32.xlu0 %v166, 64
    %v630 = vpop.permute.xlu0 %629
    %631 = vrot.lane.b32.xlu0 %v167, 64
    %v632 = vpop.permute.xlu0 %631
    %633 = vrot.lane.b32.xlu0 %v170, 64
    %v634 = vpop.permute.xlu0 %633
    %635 = vrot.lane.b32.xlu0 %v171, 64
    %v636 = vpop.permute.xlu0 %635
    %637 = vrot.lane.b32.xlu0 %v174, 64
    %v638 = vpop.permute.xlu0 %637
    %639 = vrot.lane.b32.xlu0 %v175, 64
    %v640 = vpop.permute.xlu0 %639
    %641 = vrot.lane.b32.xlu0 %v178, 64
    %v642 = vpop.permute.xlu0 %641
    %643 = vrot.lane.b32.xlu0 %v179, 64
    %v644 = vpop.permute.xlu0 %643
    %645 = vrot.lane.b32.xlu0 %v182, 64
    %v646 = vpop.permute.xlu0 %645
    %647 = vrot.lane.b32.xlu0 %v183, 64
    %v648 = vpop.permute.xlu0 %647
    %649 = vrot.lane.b32.xlu0 %v186, 64
    %v650 = vpop.permute.xlu0 %649
    %651 = vrot.lane.b32.xlu0 %v187, 64
    %v652 = vpop.permute.xlu0 %651
    %653 = vrot.lane.b32.xlu0 %v190, 64
    %v654 = vpop.permute.xlu0 %653
    %655 = vrot.lane.b32.xlu0 %v191, 64
    %v656 = vpop.permute.xlu0 %655
    %657 = vrot.lane.b32.xlu0 %v194, 64
    %v658 = vpop.permute.xlu0 %657
    %659 = vrot.lane.b32.xlu0 %v195, 64
    %v660 = vpop.permute.xlu0 %659
    %v661 = vsel %vm412, %v566, %v568
    %v662 = vsel %vm412, %v570, %v572
    %v663 = vsel %vm412, %v574, %v576
    %v664 = vsel %vm412, %v578, %v580
    %v665 = vsel %vm412, %v582, %v584
    %v666 = vsel %vm412, %v586, %v588
    %v667 = vsel %vm412, %v590, %v592
    %v668 = vsel %vm412, %v594, %v596
    %v669 = vsel %vm412, %v598, %v600
    %v670 = vsel %vm412, %v602, %v604
    %v671 = vsel %vm412, %v606, %v608
    %v672 = vsel %vm412, %v610, %v612
    %v673 = vsel %vm412, %v614, %v616
    %v674 = vsel %vm412, %v618, %v620
    %v675 = vsel %vm412, %v622, %v624
    %v676 = vsel %vm412, %v626, %v628
    %v677 = vsel %vm412, %v630, %v632
    %v678 = vsel %vm412, %v634, %v636
    %v679 = vsel %vm412, %v638, %v640
    %v680 = vsel %vm412, %v642, %v644
    %v681 = vsel %vm412, %v646, %v648
    %v682 = vsel %vm412, %v650, %v652
    %v683 = vsel %vm412, %v654, %v656
    %v684 = vsel %vm412, %v658, %v660
    %v734 = vsel %vm412, %v512, 0
    %v737 = vsel %vm412, %v514, 0
    %739 = vmatpush.msra.mxu0 %v676
    %740 = vmatpush.msra.mxu0 %v675
    %741 = vmatpush.msra.mxu0 %v674
    %742 = vmatpush.msra.mxu0 %v673
    %743 = vmatpush.msra.mxu0 %v672
    %744 = vmatpush.msra.mxu0 %v671
    %745 = vmatpush.msra.mxu0 %v670
    %746 = vmatpush.msra.mxu0 %v669
    %747 = vmatpush.msra.mxu0 %v668
    %748 = vmatpush.msra.mxu0 %v667
    %749 = vmatpush.msra.mxu0 %v666
    %750 = vmatpush.msra.mxu0 %v665
    %751 = vmatpush.msra.mxu0 %v664
    %752 = vmatpush.msra.mxu0 %v663
    %753 = vmatpush.msra.mxu0 %v662
    %754 = vmatpush.msra.mxu0 %v661
    %755 = vmatmul.f32.gmra.mxu0 %v511
    %v756 = vpop.f32.mrf.mxu0
    %v757 = vadd.f32 %v515, %v756
    %758 = vmatmul.f32.gmra.mxu0 %v513
    %v759 = vpop.f32.mrf.mxu0
    %v760 = vadd.f32 %v515, %v759
    %761 = vdwg.mxu0
    %762 = vmatpush.msra.mxu0 0.0
    %763 = vmatpush.msra.mxu0 0.0
    %764 = vmatpush.msra.mxu0 0.0
    %765 = vmatpush.msra.mxu0 0.0
    %766 = vmatpush.msra.mxu0 0.0
    %767 = vmatpush.msra.mxu0 0.0
    %768 = vmatpush.msra.mxu0 0.0
    %769 = vmatpush.msra.mxu0 0.0
    %770 = vmatpush.msra.mxu0 %v684
    %771 = vmatpush.msra.mxu0 %v683
    %772 = vmatpush.msra.mxu0 %v682
    %773 = vmatpush.msra.mxu0 %v681
    %774 = vmatpush.msra.mxu0 %v680
    %775 = vmatpush.msra.mxu0 %v679
    %776 = vmatpush.msra.mxu0 %v678
    %777 = vmatpush.msra.mxu0 %v677
    %778 = vmatmul.f32.gmra.mxu0 %v734
    %v779 = vpop.f32.mrf.mxu0
    %v780 = vadd.f32 %v757, %v779
    %781 = vmatmul.f32.gmra.mxu0 %v737
    %v782 = vpop.f32.mrf.mxu0
    %v783 = vadd.f32 %v760, %v782
    %784 = vdwg.mxu0
    %785 = vmatpush.msra.mxu0 %v628
    %786 = vmatpush.msra.mxu0 %v624
    %787 = vmatpush.msra.mxu0 %v620
    %788 = vmatpush.msra.mxu0 %v616
    %789 = vmatpush.msra.mxu0 %v612
    %790 = vmatpush.msra.mxu0 %v608
    %791 = vmatpush.msra.mxu0 %v604
    %792 = vmatpush.msra.mxu0 %v600
    %793 = vmatpush.msra.mxu0 %v596
    %794 = vmatpush.msra.mxu0 %v592
    %795 = vmatpush.msra.mxu0 %v588
    %796 = vmatpush.msra.mxu0 %v584
    %797 = vmatpush.msra.mxu0 %v580
    %798 = vmatpush.msra.mxu0 %v576
    %799 = vmatpush.msra.mxu0 %v572
    %800 = vmatpush.msra.mxu0 %v568
    %801 = vmatmul.f32.gmra.mxu0 %v511
    %v802 = vpop.f32.mrf.mxu0
    %v803 = vadd.f32 %v516, %v802
    %804 = vmatmul.f32.gmra.mxu0 %v513
    %v805 = vpop.f32.mrf.mxu0
    %v806 = vadd.f32 %v516, %v805
    %807 = vdwg.mxu0
    %808 = vmatpush.msra.mxu0 0.0
    %809 = vmatpush.msra.mxu0 0.0
    %810 = vmatpush.msra.mxu0 0.0
    %811 = vmatpush.msra.mxu0 0.0
    %812 = vmatpush.msra.mxu0 0.0
    %813 = vmatpush.msra.mxu0 0.0
    %814 = vmatpush.msra.mxu0 0.0
    %815 = vmatpush.msra.mxu0 0.0
    %816 = vmatpush.msra.mxu0 %v660
    %817 = vmatpush.msra.mxu0 %v656
    %818 = vmatpush.msra.mxu0 %v652
    %819 = vmatpush.msra.mxu0 %v648
    %820 = vmatpush.msra.mxu0 %v644
    %821 = vmatpush.msra.mxu0 %v640
    %822 = vmatpush.msra.mxu0 %v636
    %823 = vmatpush.msra.mxu0 %v632
    %824 = vmatmul.f32.gmra.mxu0 %v734
    %v825 = vpop.f32.mrf.mxu0
    %v826 = vadd.f32 %v803, %v825
    %827 = vmatmul.f32.gmra.mxu0 %v737
    %v828 = vpop.f32.mrf.mxu0
    %v829 = vadd.f32 %v806, %v828
    %830 = vdwg.mxu0
    %vm831 = vcmask 64512
    %v833 = vsel %vm831, %v826, 0
    %v836 = vsel %vm831, %v829, 0
    %838 = vmatpush.msra.mxu0 %v385
    %839 = vmatpush.msra.mxu0 %v377
    %840 = vmatpush.msra.mxu0 %v369
    %841 = vmatpush.msra.mxu0 %v361
    %842 = vmatpush.msra.mxu0 %v353
    %843 = vmatpush.msra.mxu0 %v345
    %844 = vmatpush.msra.mxu0 %v337
    %845 = vmatpush.msra.mxu0 %v329
    %846 = vmatpush.msra.mxu0 %v321
    %847 = vmatpush.msra.mxu0 %v313
    %848 = vmatpush.msra.mxu0 %v305
    %849 = vmatpush.msra.mxu0 %v297
    %850 = vmatpush.msra.mxu0 %v289
    %851 = vmatpush.msra.mxu0 %v281
    %852 = vmatpush.msra.mxu0 %v273
    %853 = vmatpush.msra.mxu0 %v265
    %854 = vmatmul.f32.gmra.mxu0 %v780
    %v855 = vpop.f32.mrf.mxu0
    %v856 = vadd.f32 0.0, %v855
    %857 = vmatmul.f32.gmra.mxu0 %v783
    %v858 = vpop.f32.mrf.mxu0
    %v859 = vadd.f32 0.0, %v858
    %860 = vdwg.mxu0
    %861 = vmatpush.msra.mxu0 0.0
    %862 = vmatpush.msra.mxu0 0.0
    %863 = vmatpush.msra.mxu0 0.0
    %864 = vmatpush.msra.mxu0 0.0
    %865 = vmatpush.msra.mxu0 0.0
    %866 = vmatpush.msra.mxu0 0.0
    %867 = vmatpush.msra.mxu0 0.0
    %868 = vmatpush.msra.mxu0 0.0
    %869 = vmatpush.msra.mxu0 0.0
    %870 = vmatpush.msra.mxu0 0.0
    %871 = vmatpush.msra.mxu0 0.0
    %872 = vmatpush.msra.mxu0 0.0
    %873 = vmatpush.msra.mxu0 0.0
    %874 = vmatpush.msra.mxu0 0.0
    %875 = vmatpush.msra.mxu0 0.0
    %876 = vmatpush.msra.mxu0 %v393
    %877 = vmatmul.f32.gmra.mxu0 %v833
    %v878 = vpop.f32.mrf.mxu0
    %v879 = vadd.f32 %v856, %v878
    %880 = vmatmul.f32.gmra.mxu0 %v836
    %v881 = vpop.f32.mrf.mxu0
    %v882 = vadd.f32 %v859, %v881
    %883 = vdwg.mxu0
    %884 = vmatpush.msra.mxu0 %v386
    %885 = vmatpush.msra.mxu0 %v378
    %886 = vmatpush.msra.mxu0 %v370
    %887 = vmatpush.msra.mxu0 %v362
    %888 = vmatpush.msra.mxu0 %v354
    %889 = vmatpush.msra.mxu0 %v346
    %890 = vmatpush.msra.mxu0 %v338
    %891 = vmatpush.msra.mxu0 %v330
    %892 = vmatpush.msra.mxu0 %v322
    %893 = vmatpush.msra.mxu0 %v314
    %894 = vmatpush.msra.mxu0 %v306
    %895 = vmatpush.msra.mxu0 %v298
    %896 = vmatpush.msra.mxu0 %v290
    %897 = vmatpush.msra.mxu0 %v282
    %898 = vmatpush.msra.mxu0 %v274
    %899 = vmatpush.msra.mxu0 %v266
    %900 = vmatmul.f32.gmra.mxu0 %v780
    %v901 = vpop.f32.mrf.mxu0
    %v902 = vadd.f32 0.0, %v901
    %903 = vmatmul.f32.gmra.mxu0 %v783
    %v904 = vpop.f32.mrf.mxu0
    %v905 = vadd.f32 0.0, %v904
    %906 = vdwg.mxu0
    %907 = vmatpush.msra.mxu0 0.0
    %908 = vmatpush.msra.mxu0 0.0
    %909 = vmatpush.msra.mxu0 0.0
    %910 = vmatpush.msra.mxu0 0.0
    %911 = vmatpush.msra.mxu0 0.0
    %912 = vmatpush.msra.mxu0 0.0
    %913 = vmatpush.msra.mxu0 0.0
    %914 = vmatpush.msra.mxu0 0.0
    %915 = vmatpush.msra.mxu0 0.0
    %916 = vmatpush.msra.mxu0 0.0
    %917 = vmatpush.msra.mxu0 0.0
    %918 = vmatpush.msra.mxu0 0.0
    %919 = vmatpush.msra.mxu0 0.0
    %920 = vmatpush.msra.mxu0 0.0
    %921 = vmatpush.msra.mxu0 0.0
    %922 = vmatpush.msra.mxu0 %v394
    %923 = vmatmul.f32.gmra.mxu0 %v833
    %v924 = vpop.f32.mrf.mxu0
    %v925 = vadd.f32 %v902, %v924
    %926 = vmatmul.f32.gmra.mxu0 %v836
    %v927 = vpop.f32.mrf.mxu0
    %v928 = vadd.f32 %v905, %v927
    %929 = vdwg.mxu0
    %930 = vmatpush.msra.mxu0 %v387
    %931 = vmatpush.msra.mxu0 %v379
    %932 = vmatpush.msra.mxu0 %v371
    %933 = vmatpush.msra.mxu0 %v363
    %934 = vmatpush.msra.mxu0 %v355
    %935 = vmatpush.msra.mxu0 %v347
    %936 = vmatpush.msra.mxu0 %v339
    %937 = vmatpush.msra.mxu0 %v331
    %938 = vmatpush.msra.mxu0 %v323
    %939 = vmatpush.msra.mxu0 %v315
    %940 = vmatpush.msra.mxu0 %v307
    %941 = vmatpush.msra.mxu0 %v299
    %942 = vmatpush.msra.mxu0 %v291
    %943 = vmatpush.msra.mxu0 %v283
    %944 = vmatpush.msra.mxu0 %v275
    %945 = vmatpush.msra.mxu0 %v267
    %946 = vmatmul.f32.gmra.mxu0 %v780
    %v947 = vpop.f32.mrf.mxu0
    %v948 = vadd.f32 0.0, %v947
    %949 = vmatmul.f32.gmra.mxu0 %v783
    %v950 = vpop.f32.mrf.mxu0
    %v951 = vadd.f32 0.0, %v950
    %952 = vdwg.mxu0
    %953 = vmatpush.msra.mxu0 0.0
    %954 = vmatpush.msra.mxu0 0.0
    %955 = vmatpush.msra.mxu0 0.0
    %956 = vmatpush.msra.mxu0 0.0
    %957 = vmatpush.msra.mxu0 0.0
    %958 = vmatpush.msra.mxu0 0.0
    %959 = vmatpush.msra.mxu0 0.0
    %960 = vmatpush.msra.mxu0 0.0
    %961 = vmatpush.msra.mxu0 0.0
    %962 = vmatpush.msra.mxu0 0.0
    %963 = vmatpush.msra.mxu0 0.0
    %964 = vmatpush.msra.mxu0 0.0
    %965 = vmatpush.msra.mxu0 0.0
    %966 = vmatpush.msra.mxu0 0.0
    %967 = vmatpush.msra.mxu0 0.0
    %968 = vmatpush.msra.mxu0 %v395
    %969 = vmatmul.f32.gmra.mxu0 %v833
    %v970 = vpop.f32.mrf.mxu0
    %v971 = vadd.f32 %v948, %v970
    %972 = vmatmul.f32.gmra.mxu0 %v836
    %v973 = vpop.f32.mrf.mxu0
    %v974 = vadd.f32 %v951, %v973
    %975 = vdwg.mxu0
    %v976 = vperm.slane %v401, 3
    %v977 = vperm.slane %v402, 3
    %v978 = vadd.f32 %v879, %v976
    %v979 = vadd.f32 %v925, %v977
    %v980 = vadd.f32 %v882, %v976
    %v981 = vadd.f32 %v928, %v977
    %v982 = vperm.slane %v401, 4
    %v983 = vperm.slane %v402, 4
    %986 = vrot.lane.b32.xlu0 %v982, 8
    %v987 = vpop.permute.xlu0 %986
    %988 = vrot.lane.b32.xlu0 %v983, 8
    %v989 = vpop.permute.xlu0 %988
    %v990 = vsel %vm831, %v987, %v989
    %v993 = vadd.f32 %v925, %v987
    %v994 = vadd.f32 %v971, %v990
    %v995 = vadd.f32 %v928, %v987
    %v996 = vadd.f32 %v974, %v990
    %v997 = vxor.u32 %v993, 2147483648
    %v998 = vxor.u32 %v994, 2147483648
    %v999 = vxor.u32 %v995, 2147483648
    %v1000 = vxor.u32 %v996, 2147483648
    %v1001 = vmul.f32 %v997, 1.442695
    %v1002 = vpow.pop %v1001
    %v1003 = vmul.f32 %v998, 1.442695
    %v1004 = vpow.pop %v1003
    %v1005 = vmul.f32 %v999, 1.442695
    %v1006 = vpow.pop %v1005
    %v1007 = vmul.f32 %v1000, 1.442695
    %v1008 = vpow.pop %v1007
    %v1009 = vadd.f32 %v1002, 1.0
    %v1010 = vadd.f32 %v1004, 1.0
    %v1011 = vadd.f32 %v1006, 1.0
    %v1012 = vadd.f32 %v1008, 1.0
    %v1013 = vrcp.pop %v1009
    %v1014 = vmul.f32 %v1009, %v1013
    %v1015 = vsub.f32 1.0, %v1014
    %v1016 = vmul.f32 %v1013, %v1015
    %v1017 = vadd.f32 %v1013, %v1016
    %vm1018 = vweird.f32 %v1009
    %vm1019 = vweird.f32 %v1013
    %vm1020 = vmor %vm1018, %vm1019
    %v1021 = vsel %vm1020, %v1013, %v1017
    %v1022 = vand.u32 2147483647, %v1009
    %vm1023 = vcmp.eq.f32.partialorder %v1022, 8.507059e+37
    %v1024 = vand.u32 %v1009, 2147483648
    %v1025 = vor.u32 1.1754944e-38, %v1024
    %v1026 = vsel %vm1023, %v1025, %v1021
    %v1027 = vmul.f32 1.0, %v1026
    %v1028 = vrcp.pop %v1010
    %v1029 = vmul.f32 %v1010, %v1028
    %v1030 = vsub.f32 1.0, %v1029
    %v1031 = vmul.f32 %v1028, %v1030
    %v1032 = vadd.f32 %v1028, %v1031
    %vm1033 = vweird.f32 %v1010
    %vm1034 = vweird.f32 %v1028
    %vm1035 = vmor %vm1033, %vm1034
    %v1036 = vsel %vm1035, %v1028, %v1032
    %v1037 = vand.u32 2147483647, %v1010
    %vm1038 = vcmp.eq.f32.partialorder %v1037, 8.507059e+37
    %v1039 = vand.u32 %v1010, 2147483648
    %v1040 = vor.u32 1.1754944e-38, %v1039
    %v1041 = vsel %vm1038, %v1040, %v1036
    %v1042 = vmul.f32 1.0, %v1041
    %v1043 = vrcp.pop %v1011
    %v1044 = vmul.f32 %v1011, %v1043
    %v1045 = vsub.f32 1.0, %v1044
    %v1046 = vmul.f32 %v1043, %v1045
    %v1047 = vadd.f32 %v1043, %v1046
    %vm1048 = vweird.f32 %v1011
    %vm1049 = vweird.f32 %v1043
    %vm1050 = vmor %vm1048, %vm1049
    %v1051 = vsel %vm1050, %v1043, %v1047
    %v1052 = vand.u32 2147483647, %v1011
    %vm1053 = vcmp.eq.f32.partialorder %v1052, 8.507059e+37
    %v1054 = vand.u32 %v1011, 2147483648
    %v1055 = vor.u32 1.1754944e-38, %v1054
    %v1056 = vsel %vm1053, %v1055, %v1051
    %v1057 = vmul.f32 1.0, %v1056
    %v1058 = vrcp.pop %v1012
    %v1059 = vmul.f32 %v1012, %v1058
    %v1060 = vsub.f32 1.0, %v1059
    %v1061 = vmul.f32 %v1058, %v1060
    %v1062 = vadd.f32 %v1058, %v1061
    %vm1063 = vweird.f32 %v1012
    %vm1064 = vweird.f32 %v1058
    %vm1065 = vmor %vm1063, %vm1064
    %v1066 = vsel %vm1065, %v1058, %v1062
    %v1067 = vand.u32 2147483647, %v1012
    %vm1068 = vcmp.eq.f32.partialorder %v1067, 8.507059e+37
    %v1069 = vand.u32 %v1012, 2147483648
    %v1070 = vor.u32 1.1754944e-38, %v1069
    %v1071 = vsel %vm1068, %v1070, %v1066
    %v1072 = vmul.f32 1.0, %v1071
    %1077 = vrot.lane.b32.xlu0 %v1027, 120
    %v1078 = vpop.permute.xlu0 %1077
    %1079 = vrot.lane.b32.xlu0 %v1042, 120
    %v1080 = vpop.permute.xlu0 %1079
    %1081 = vrot.lane.b32.xlu0 %v1057, 120
    %v1082 = vpop.permute.xlu0 %1081
    %1083 = vrot.lane.b32.xlu0 %v1072, 120
    %v1084 = vpop.permute.xlu0 %1083
    %vm1085 = vcmask 982016
    %v1086 = vsel %vm1085, %v1078, %v1080
    %v1087 = vsel %vm1085, %v1082, %v1084
    %v1092 = vmul.f32 %v978, %v1086
    %v1093 = vmul.f32 %v979, %v1080
    %v1094 = vmul.f32 %v980, %v1087
    %v1095 = vmul.f32 %v981, %v1084
    %vm1096 = vcmask 130048
    %v1098 = vsel %vm1096, %v406, 0
    %1100 = vmatpush.msra.mxu0 0.0
    %1101 = vmatpush.msra.mxu0 0.0
    %1102 = vmatpush.msra.mxu0 0.0
    %1103 = vmatpush.msra.mxu0 0.0
    %1104 = vmatpush.msra.mxu0 0.0
    %1105 = vmatpush.msra.mxu0 0.0
    %1106 = vmatpush.msra.mxu0 0.0
    %1107 = vmatpush.msra.mxu0 0.0
    %1108 = vmatpush.msra.mxu0 0.0
    %1109 = vmatpush.msra.mxu0 0.0
    %1110 = vmatpush.msra.mxu0 0.0
    %1111 = vmatpush.msra.mxu0 0.0
    %1112 = vmatpush.msra.mxu0 0.0
    %1113 = vmatpush.msra.mxu0 0.0
    %1114 = vmatpush.msra.mxu0 %v1094
    %1115 = vmatpush.msra.mxu0 %v1092
    %1116 = vmatmul.f32.gmra.mxu0 %v1098
    %v1117 = vpop.f32.mrf.mxu0
    %v1118 = vadd.f32 0.0, %v1117
    %1119 = vdwg.mxu0
    %1120 = vmatpush.msra.mxu0 0.0
    %1121 = vmatpush.msra.mxu0 0.0
    %1122 = vmatpush.msra.mxu0 0.0
    %1123 = vmatpush.msra.mxu0 0.0
    %1124 = vmatpush.msra.mxu0 0.0
    %1125 = vmatpush.msra.mxu0 0.0
    %1126 = vmatpush.msra.mxu0 0.0
    %1127 = vmatpush.msra.mxu0 0.0
    %1128 = vmatpush.msra.mxu0 0.0
    %1129 = vmatpush.msra.mxu0 0.0
    %1130 = vmatpush.msra.mxu0 0.0
    %1131 = vmatpush.msra.mxu0 0.0
    %1132 = vmatpush.msra.mxu0 0.0
    %1133 = vmatpush.msra.mxu0 0.0
    %1134 = vmatpush.msra.mxu0 %v1095
    %1135 = vmatpush.msra.mxu0 %v1093
    %1136 = vmatmul.f32.gmra.mxu0 %v1098
    %v1137 = vpop.f32.mrf.mxu0
    %v1138 = vadd.f32 0.0, %v1137
    %1139 = vdwg.mxu0
    %v1140 = vrot.slane %v1092, 4
    %v1141 = vmax.f32 %v1092, %v1140
    %v1142 = vrot.slane %v1141, 2
    %v1143 = vmax.f32 %v1141, %v1142
    %v1144 = vrot.slane %v1143, 1
    %v1145 = vmax.f32 %v1143, %v1144
    %v1146 = vsel %vm831, %v1093, -inf
    %v1147 = vrot.slane %v1146, 4
    %v1148 = vmax.f32 %v1146, %v1147
    %v1149 = vrot.slane %v1148, 2
    %v1150 = vmax.f32 %v1148, %v1149
    %v1151 = vrot.slane %v1150, 1
    %v1152 = vmax.f32 %v1150, %v1151
    %v1153 = vrot.slane %v1094, 4
    %v1154 = vmax.f32 %v1094, %v1153
    %v1155 = vrot.slane %v1154, 2
    %v1156 = vmax.f32 %v1154, %v1155
    %v1157 = vrot.slane %v1156, 1
    %v1158 = vmax.f32 %v1156, %v1157
    %v1159 = vsel %vm831, %v1095, -inf
    %v1160 = vrot.slane %v1159, 4
    %v1161 = vmax.f32 %v1159, %v1160
    %v1162 = vrot.slane %v1161, 2
    %v1163 = vmax.f32 %v1161, %v1162
    %v1164 = vrot.slane %v1163, 1
    %v1165 = vmax.f32 %v1163, %v1164
    %vm1166 = vcmask 1040384
    %v1167 = vsel %vm1166, %v1145, %v1158
    %v1168 = vsel %vm1166, %v1152, %v1165
    %v1171 = vrot.slane %v1167, 6
    %v1172 = vrot.slane %v1168, 6
    %vm1175 = vcmask 1041408
    %v1176 = vsel %vm1175, %v1118, %v1171
    %v1177 = vsel %vm1175, %v1138, %v1172
    %v1178 = vperm.slane %v401, 1
    %v1179 = vperm.slane %v402, 1
    %1214 = vrot.lane.b32.xlu0 %v268, 104
    %v1215 = vpop.permute.xlu0 %1214
    %1216 = vrot.lane.b32.xlu0 %v269, 104
    %v1217 = vpop.permute.xlu0 %1216
    %1218 = vrot.lane.b32.xlu0 %v276, 104
    %v1219 = vpop.permute.xlu0 %1218
    %1220 = vrot.lane.b32.xlu0 %v277, 104
    %v1221 = vpop.permute.xlu0 %1220
    %1222 = vrot.lane.b32.xlu0 %v284, 104
    %v1223 = vpop.permute.xlu0 %1222
    %1224 = vrot.lane.b32.xlu0 %v285, 104
    %v1225 = vpop.permute.xlu0 %1224
    %1226 = vrot.lane.b32.xlu0 %v292, 104
    %v1227 = vpop.permute.xlu0 %1226
    %1228 = vrot.lane.b32.xlu0 %v293, 104
    %v1229 = vpop.permute.xlu0 %1228
    %1230 = vrot.lane.b32.xlu0 %v300, 104
    %v1231 = vpop.permute.xlu0 %1230
    %1232 = vrot.lane.b32.xlu0 %v301, 104
    %v1233 = vpop.permute.xlu0 %1232
    %1234 = vrot.lane.b32.xlu0 %v308, 104
    %v1235 = vpop.permute.xlu0 %1234
    %1236 = vrot.lane.b32.xlu0 %v309, 104
    %v1237 = vpop.permute.xlu0 %1236
    %1238 = vrot.lane.b32.xlu0 %v316, 104
    %v1239 = vpop.permute.xlu0 %1238
    %1240 = vrot.lane.b32.xlu0 %v317, 104
    %v1241 = vpop.permute.xlu0 %1240
    %1242 = vrot.lane.b32.xlu0 %v324, 104
    %v1243 = vpop.permute.xlu0 %1242
    %1244 = vrot.lane.b32.xlu0 %v325, 104
    %v1245 = vpop.permute.xlu0 %1244
    %1246 = vrot.lane.b32.xlu0 %v332, 104
    %v1247 = vpop.permute.xlu0 %1246
    %1248 = vrot.lane.b32.xlu0 %v333, 104
    %v1249 = vpop.permute.xlu0 %1248
    %1250 = vrot.lane.b32.xlu0 %v340, 104
    %v1251 = vpop.permute.xlu0 %1250
    %1252 = vrot.lane.b32.xlu0 %v341, 104
    %v1253 = vpop.permute.xlu0 %1252
    %1254 = vrot.lane.b32.xlu0 %v348, 104
    %v1255 = vpop.permute.xlu0 %1254
    %1256 = vrot.lane.b32.xlu0 %v349, 104
    %v1257 = vpop.permute.xlu0 %1256
    %1258 = vrot.lane.b32.xlu0 %v356, 104
    %v1259 = vpop.permute.xlu0 %1258
    %1260 = vrot.lane.b32.xlu0 %v357, 104
    %v1261 = vpop.permute.xlu0 %1260
    %1262 = vrot.lane.b32.xlu0 %v364, 104
    %v1263 = vpop.permute.xlu0 %1262
    %1264 = vrot.lane.b32.xlu0 %v365, 104
    %v1265 = vpop.permute.xlu0 %1264
    %1266 = vrot.lane.b32.xlu0 %v372, 104
    %v1267 = vpop.permute.xlu0 %1266
    %1268 = vrot.lane.b32.xlu0 %v373, 104
    %v1269 = vpop.permute.xlu0 %1268
    %1270 = vrot.lane.b32.xlu0 %v380, 104
    %v1271 = vpop.permute.xlu0 %1270
    %1272 = vrot.lane.b32.xlu0 %v381, 104
    %v1273 = vpop.permute.xlu0 %1272
    %1274 = vrot.lane.b32.xlu0 %v388, 104
    %v1275 = vpop.permute.xlu0 %1274
    %1276 = vrot.lane.b32.xlu0 %v389, 104
    %v1277 = vpop.permute.xlu0 %1276
    %1278 = vrot.lane.b32.xlu0 %v396, 104
    %v1279 = vpop.permute.xlu0 %1278
    %1280 = vrot.lane.b32.xlu0 %v397, 104
    %v1281 = vpop.permute.xlu0 %1280
    %vm1282 = vcmask 850944
    %v1283 = vsel %vm1282, %v1215, %v1217
    %v1284 = vsel %vm1282, %v1219, %v1221
    %v1285 = vsel %vm1282, %v1223, %v1225
    %v1286 = vsel %vm1282, %v1227, %v1229
    %v1287 = vsel %vm1282, %v1231, %v1233
    %v1288 = vsel %vm1282, %v1235, %v1237
    %v1289 = vsel %vm1282, %v1239, %v1241
    %v1290 = vsel %vm1282, %v1243, %v1245
    %v1291 = vsel %vm1282, %v1247, %v1249
    %v1292 = vsel %vm1282, %v1251, %v1253
    %v1293 = vsel %vm1282, %v1255, %v1257
    %v1294 = vsel %vm1282, %v1259, %v1261
    %v1295 = vsel %vm1282, %v1263, %v1265
    %v1296 = vsel %vm1282, %v1267, %v1269
    %v1297 = vsel %vm1282, %v1271, %v1273
    %v1298 = vsel %vm1282, %v1275, %v1277
    %v1299 = vsel %vm1282, %v1279, %v1281
    %v1335 = vsel %vm831, %v1177, 0
    %1337 = vmatpush.msra.mxu0 %v1298
    %1338 = vmatpush.msra.mxu0 %v1297
    %1339 = vmatpush.msra.mxu0 %v1296
    %1340 = vmatpush.msra.mxu0 %v1295
    %1341 = vmatpush.msra.mxu0 %v1294
    %1342 = vmatpush.msra.mxu0 %v1293
    %1343 = vmatpush.msra.mxu0 %v1292
    %1344 = vmatpush.msra.mxu0 %v1291
    %1345 = vmatpush.msra.mxu0 %v1290
    %1346 = vmatpush.msra.mxu0 %v1289
    %1347 = vmatpush.msra.mxu0 %v1288
    %1348 = vmatpush.msra.mxu0 %v1287
    %1349 = vmatpush.msra.mxu0 %v1286
    %1350 = vmatpush.msra.mxu0 %v1285
    %1351 = vmatpush.msra.mxu0 %v1284
    %1352 = vmatpush.msra.mxu0 %v1283
    %1353 = vmatmul.f32.gmra.mxu0 %v1176
    %v1354 = vpop.f32.mrf.mxu0
    %v1355 = vadd.f32 %v1178, %v1354
    %1356 = vdwg.mxu0
    %1357 = vmatpush.msra.mxu0 0.0
    %1358 = vmatpush.msra.mxu0 0.0
    %1359 = vmatpush.msra.mxu0 0.0
    %1360 = vmatpush.msra.mxu0 0.0
    %1361 = vmatpush.msra.mxu0 0.0
    %1362 = vmatpush.msra.mxu0 0.0
    %1363 = vmatpush.msra.mxu0 0.0
    %1364 = vmatpush.msra.mxu0 0.0
    %1365 = vmatpush.msra.mxu0 0.0
    %1366 = vmatpush.msra.mxu0 0.0
    %1367 = vmatpush.msra.mxu0 0.0
    %1368 = vmatpush.msra.mxu0 0.0
    %1369 = vmatpush.msra.mxu0 0.0
    %1370 = vmatpush.msra.mxu0 0.0
    %1371 = vmatpush.msra.mxu0 0.0
    %1372 = vmatpush.msra.mxu0 %v1299
    %1373 = vmatmul.f32.gmra.mxu0 %v1335
    %v1374 = vpop.f32.mrf.mxu0
    %v1375 = vadd.f32 %v1355, %v1374
    %1376 = vdwg.mxu0
    %1377 = vmatpush.msra.mxu0 %v1277
    %1378 = vmatpush.msra.mxu0 %v1273
    %1379 = vmatpush.msra.mxu0 %v1269
    %1380 = vmatpush.msra.mxu0 %v1265
    %1381 = vmatpush.msra.mxu0 %v1261
    %1382 = vmatpush.msra.mxu0 %v1257
    %1383 = vmatpush.msra.mxu0 %v1253
    %1384 = vmatpush.msra.mxu0 %v1249
    %1385 = vmatpush.msra.mxu0 %v1245
    %1386 = vmatpush.msra.mxu0 %v1241
    %1387 = vmatpush.msra.mxu0 %v1237
    %1388 = vmatpush.msra.mxu0 %v1233
    %1389 = vmatpush.msra.mxu0 %v1229
    %1390 = vmatpush.msra.mxu0 %v1225
    %1391 = vmatpush.msra.mxu0 %v1221
    %1392 = vmatpush.msra.mxu0 %v1217
    %1393 = vmatmul.f32.gmra.mxu0 %v1176
    %v1394 = vpop.f32.mrf.mxu0
    %v1395 = vadd.f32 %v1179, %v1394
    %1396 = vdwg.mxu0
    %1397 = vmatpush.msra.mxu0 0.0
    %1398 = vmatpush.msra.mxu0 0.0
    %1399 = vmatpush.msra.mxu0 0.0
    %1400 = vmatpush.msra.mxu0 0.0
    %1401 = vmatpush.msra.mxu0 0.0
    %1402 = vmatpush.msra.mxu0 0.0
    %1403 = vmatpush.msra.mxu0 0.0
    %1404 = vmatpush.msra.mxu0 0.0
    %1405 = vmatpush.msra.mxu0 0.0
    %1406 = vmatpush.msra.mxu0 0.0
    %1407 = vmatpush.msra.mxu0 0.0
    %1408 = vmatpush.msra.mxu0 0.0
    %1409 = vmatpush.msra.mxu0 0.0
    %1410 = vmatpush.msra.mxu0 0.0
    %1411 = vmatpush.msra.mxu0 0.0
    %1412 = vmatpush.msra.mxu0 %v1281
    %1413 = vmatmul.f32.gmra.mxu0 %v1335
    %v1414 = vpop.f32.mrf.mxu0
    %v1415 = vadd.f32 %v1395, %v1414
    %1416 = vdwg.mxu0
    %v1417 = vmax.f32 %v1375, 0.0
    %v1418 = vmax.f32 %v1415, 0.0
    %v1419 = vperm.slane %v401, 6
    %v1420 = vperm.slane %v402, 6
    %1445 = vrot.lane.b32.xlu0 %v103, 56
    %v1446 = vpop.permute.xlu0 %1445
    %1447 = vrot.lane.b32.xlu0 %v104, 56
    %v1448 = vpop.permute.xlu0 %1447
    %1449 = vrot.lane.b32.xlu0 %v107, 56
    %v1450 = vpop.permute.xlu0 %1449
    %1451 = vrot.lane.b32.xlu0 %v108, 56
    %v1452 = vpop.permute.xlu0 %1451
    %1453 = vrot.lane.b32.xlu0 %v111, 56
    %v1454 = vpop.permute.xlu0 %1453
    %1455 = vrot.lane.b32.xlu0 %v112, 56
    %v1456 = vpop.permute.xlu0 %1455
    %1457 = vrot.lane.b32.xlu0 %v115, 56
    %v1458 = vpop.permute.xlu0 %1457
    %1459 = vrot.lane.b32.xlu0 %v116, 56
    %v1460 = vpop.permute.xlu0 %1459
    %1461 = vrot.lane.b32.xlu0 %v119, 56
    %v1462 = vpop.permute.xlu0 %1461
    %1463 = vrot.lane.b32.xlu0 %v120, 56
    %v1464 = vpop.permute.xlu0 %1463
    %1465 = vrot.lane.b32.xlu0 %v123, 56
    %v1466 = vpop.permute.xlu0 %1465
    %1467 = vrot.lane.b32.xlu0 %v124, 56
    %v1468 = vpop.permute.xlu0 %1467
    %1469 = vrot.lane.b32.xlu0 %v127, 56
    %v1470 = vpop.permute.xlu0 %1469
    %1471 = vrot.lane.b32.xlu0 %v128, 56
    %v1472 = vpop.permute.xlu0 %1471
    %1473 = vrot.lane.b32.xlu0 %v131, 56
    %v1474 = vpop.permute.xlu0 %1473
    %1475 = vrot.lane.b32.xlu0 %v132, 56
    %v1476 = vpop.permute.xlu0 %1475
    %1477 = vrot.lane.b32.xlu0 %v135, 56
    %v1478 = vpop.permute.xlu0 %1477
    %1479 = vrot.lane.b32.xlu0 %v136, 56
    %v1480 = vpop.permute.xlu0 %1479
    %1481 = vrot.lane.b32.xlu0 %v139, 56
    %v1482 = vpop.permute.xlu0 %1481
    %1483 = vrot.lane.b32.xlu0 %v140, 56
    %v1484 = vpop.permute.xlu0 %1483
    %1485 = vrot.lane.b32.xlu0 %v143, 56
    %v1486 = vpop.permute.xlu0 %1485
    %1487 = vrot.lane.b32.xlu0 %v144, 56
    %v1488 = vpop.permute.xlu0 %1487
    %1489 = vrot.lane.b32.xlu0 %v147, 56
    %v1490 = vpop.permute.xlu0 %1489
    %1491 = vrot.lane.b32.xlu0 %v148, 56
    %v1492 = vpop.permute.xlu0 %1491
    %1493 = vrot.lane.b32.xlu0 %v151, 56
    %v1494 = vpop.permute.xlu0 %1493
    %1495 = vrot.lane.b32.xlu0 %v152, 56
    %v1496 = vpop.permute.xlu0 %1495
    %1497 = vrot.lane.b32.xlu0 %v155, 56
    %v1498 = vpop.permute.xlu0 %1497
    %1499 = vrot.lane.b32.xlu0 %v156, 56
    %v1500 = vpop.permute.xlu0 %1499
    %1501 = vrot.lane.b32.xlu0 %v159, 56
    %v1502 = vpop.permute.xlu0 %1501
    %1503 = vrot.lane.b32.xlu0 %v160, 56
    %v1504 = vpop.permute.xlu0 %1503
    %1505 = vrot.lane.b32.xlu0 %v163, 56
    %v1506 = vpop.permute.xlu0 %1505
    %1507 = vrot.lane.b32.xlu0 %v164, 56
    %v1508 = vpop.permute.xlu0 %1507
    %1509 = vrot.lane.b32.xlu0 %v167, 56
    %v1510 = vpop.permute.xlu0 %1509
    %1511 = vrot.lane.b32.xlu0 %v168, 56
    %v1512 = vpop.permute.xlu0 %1511
    %1513 = vrot.lane.b32.xlu0 %v171, 56
    %v1514 = vpop.permute.xlu0 %1513
    %1515 = vrot.lane.b32.xlu0 %v172, 56
    %v1516 = vpop.permute.xlu0 %1515
    %1517 = vrot.lane.b32.xlu0 %v175, 56
    %v1518 = vpop.permute.xlu0 %1517
    %1519 = vrot.lane.b32.xlu0 %v176, 56
    %v1520 = vpop.permute.xlu0 %1519
    %1521 = vrot.lane.b32.xlu0 %v179, 56
    %v1522 = vpop.permute.xlu0 %1521
    %1523 = vrot.lane.b32.xlu0 %v180, 56
    %v1524 = vpop.permute.xlu0 %1523
    %1525 = vrot.lane.b32.xlu0 %v183, 56
    %v1526 = vpop.permute.xlu0 %1525
    %1527 = vrot.lane.b32.xlu0 %v184, 56
    %v1528 = vpop.permute.xlu0 %1527
    %1529 = vrot.lane.b32.xlu0 %v187, 56
    %v1530 = vpop.permute.xlu0 %1529
    %1531 = vrot.lane.b32.xlu0 %v188, 56
    %v1532 = vpop.permute.xlu0 %1531
    %1533 = vrot.lane.b32.xlu0 %v191, 56
    %v1534 = vpop.permute.xlu0 %1533
    %1535 = vrot.lane.b32.xlu0 %v192, 56
    %v1536 = vpop.permute.xlu0 %1535
    %1537 = vrot.lane.b32.xlu0 %v195, 56
    %v1538 = vpop.permute.xlu0 %1537
    %1539 = vrot.lane.b32.xlu0 %v196, 56
    %v1540 = vpop.permute.xlu0 %1539
    %vm1541 = vcmask 457728
    %v1542 = vsel %vm1541, %v1446, %v1448
    %v1543 = vsel %vm1541, %v1450, %v1452
    %v1544 = vsel %vm1541, %v1454, %v1456
    %v1545 = vsel %vm1541, %v1458, %v1460
    %v1546 = vsel %vm1541, %v1462, %v1464
    %v1547 = vsel %vm1541, %v1466, %v1468
    %v1548 = vsel %vm1541, %v1470, %v1472
    %v1549 = vsel %vm1541, %v1474, %v1476
    %v1550 = vsel %vm1541, %v1478, %v1480
    %v1551 = vsel %vm1541, %v1482, %v1484
    %v1552 = vsel %vm1541, %v1486, %v1488
    %v1553 = vsel %vm1541, %v1490, %v1492
    %v1554 = vsel %vm1541, %v1494, %v1496
    %v1555 = vsel %vm1541, %v1498, %v1500
    %v1556 = vsel %vm1541, %v1502, %v1504
    %v1557 = vsel %vm1541, %v1506, %v1508
    %v1558 = vsel %vm1541, %v1510, %v1512
    %v1559 = vsel %vm1541, %v1514, %v1516
    %v1560 = vsel %vm1541, %v1518, %v1520
    %v1561 = vsel %vm1541, %v1522, %v1524
    %v1562 = vsel %vm1541, %v1526, %v1528
    %v1563 = vsel %vm1541, %v1530, %v1532
    %v1564 = vsel %vm1541, %v1534, %v1536
    %v1565 = vsel %vm1541, %v1538, %v1540
    %v1615 = vsel %vm412, %v1418, 0
    %1617 = vmatpush.msra.mxu0 %v1557
    %1618 = vmatpush.msra.mxu0 %v1556
    %1619 = vmatpush.msra.mxu0 %v1555
    %1620 = vmatpush.msra.mxu0 %v1554
    %1621 = vmatpush.msra.mxu0 %v1553
    %1622 = vmatpush.msra.mxu0 %v1552
    %1623 = vmatpush.msra.mxu0 %v1551
    %1624 = vmatpush.msra.mxu0 %v1550
    %1625 = vmatpush.msra.mxu0 %v1549
    %1626 = vmatpush.msra.mxu0 %v1548
    %1627 = vmatpush.msra.mxu0 %v1547
    %1628 = vmatpush.msra.mxu0 %v1546
    %1629 = vmatpush.msra.mxu0 %v1545
    %1630 = vmatpush.msra.mxu0 %v1544
    %1631 = vmatpush.msra.mxu0 %v1543
    %1632 = vmatpush.msra.mxu0 %v1542
    %1633 = vmatmul.f32.gmra.mxu0 %v1417
    %v1634 = vpop.f32.mrf.mxu0
    %v1635 = vadd.f32 %v1419, %v1634
    %1636 = vdwg.mxu0
    %1637 = vmatpush.msra.mxu0 0.0
    %1638 = vmatpush.msra.mxu0 0.0
    %1639 = vmatpush.msra.mxu0 0.0
    %1640 = vmatpush.msra.mxu0 0.0
    %1641 = vmatpush.msra.mxu0 0.0
    %1642 = vmatpush.msra.mxu0 0.0
    %1643 = vmatpush.msra.mxu0 0.0
    %1644 = vmatpush.msra.mxu0 0.0
    %1645 = vmatpush.msra.mxu0 %v1565
    %1646 = vmatpush.msra.mxu0 %v1564
    %1647 = vmatpush.msra.mxu0 %v1563
    %1648 = vmatpush.msra.mxu0 %v1562
    %1649 = vmatpush.msra.mxu0 %v1561
    %1650 = vmatpush.msra.mxu0 %v1560
    %1651 = vmatpush.msra.mxu0 %v1559
    %1652 = vmatpush.msra.mxu0 %v1558
    %1653 = vmatmul.f32.gmra.mxu0 %v1615
    %v1654 = vpop.f32.mrf.mxu0
    %v1655 = vadd.f32 %v1635, %v1654
    %1656 = vdwg.mxu0
    %1657 = vmatpush.msra.mxu0 %v1508
    %1658 = vmatpush.msra.mxu0 %v1504
    %1659 = vmatpush.msra.mxu0 %v1500
    %1660 = vmatpush.msra.mxu0 %v1496
    %1661 = vmatpush.msra.mxu0 %v1492
    %1662 = vmatpush.msra.mxu0 %v1488
    %1663 = vmatpush.msra.mxu0 %v1484
    %1664 = vmatpush.msra.mxu0 %v1480
    %1665 = vmatpush.msra.mxu0 %v1476
    %1666 = vmatpush.msra.mxu0 %v1472
    %1667 = vmatpush.msra.mxu0 %v1468
    %1668 = vmatpush.msra.mxu0 %v1464
    %1669 = vmatpush.msra.mxu0 %v1460
    %1670 = vmatpush.msra.mxu0 %v1456
    %1671 = vmatpush.msra.mxu0 %v1452
    %1672 = vmatpush.msra.mxu0 %v1448
    %1673 = vmatmul.f32.gmra.mxu0 %v1417
    %v1674 = vpop.f32.mrf.mxu0
    %v1675 = vadd.f32 %v1420, %v1674
    %1676 = vdwg.mxu0
    %1677 = vmatpush.msra.mxu0 0.0
    %1678 = vmatpush.msra.mxu0 0.0
    %1679 = vmatpush.msra.mxu0 0.0
    %1680 = vmatpush.msra.mxu0 0.0
    %1681 = vmatpush.msra.mxu0 0.0
    %1682 = vmatpush.msra.mxu0 0.0
    %1683 = vmatpush.msra.mxu0 0.0
    %1684 = vmatpush.msra.mxu0 0.0
    %1685 = vmatpush.msra.mxu0 %v1540
    %1686 = vmatpush.msra.mxu0 %v1536
    %1687 = vmatpush.msra.mxu0 %v1532
    %1688 = vmatpush.msra.mxu0 %v1528
    %1689 = vmatpush.msra.mxu0 %v1524
    %1690 = vmatpush.msra.mxu0 %v1520
    %1691 = vmatpush.msra.mxu0 %v1516
    %1692 = vmatpush.msra.mxu0 %v1512
    %1693 = vmatmul.f32.gmra.mxu0 %v1615
    %v1694 = vpop.f32.mrf.mxu0
    %v1695 = vadd.f32 %v1675, %v1694
    %1696 = vdwg.mxu0
    %v1699 = vrot.slane %v1655, 2
    %v1700 = vrot.slane %v1695, 2
    %v1703 = vadd.f32 %v1655, %v1699
    %v1704 = vadd.f32 %v1695, %v1700
    %1739 = vrot.lane.b32.xlu0 %v269, 40
    %v1740 = vpop.permute.xlu0 %1739
    %1741 = vrot.lane.b32.xlu0 %v270, 40
    %v1742 = vpop.permute.xlu0 %1741
    %1743 = vrot.lane.b32.xlu0 %v271, 40
    %v1744 = vpop.permute.xlu0 %1743
    %1745 = vrot.lane.b32.xlu0 %v277, 40
    %v1746 = vpop.permute.xlu0 %1745
    %1747 = vrot.lane.b32.xlu0 %v278, 40
    %v1748 = vpop.permute.xlu0 %1747
    %1749 = vrot.lane.b32.xlu0 %v279, 40
    %v1750 = vpop.permute.xlu0 %1749
    %1751 = vrot.lane.b32.xlu0 %v285, 40
    %v1752 = vpop.permute.xlu0 %1751
    %1753 = vrot.lane.b32.xlu0 %v286, 40
    %v1754 = vpop.permute.xlu0 %1753
    %1755 = vrot.lane.b32.xlu0 %v287, 40
    %v1756 = vpop.permute.xlu0 %1755
    %1757 = vrot.lane.b32.xlu0 %v293, 40
    %v1758 = vpop.permute.xlu0 %1757
    %1759 = vrot.lane.b32.xlu0 %v294, 40
    %v1760 = vpop.permute.xlu0 %1759
    %1761 = vrot.lane.b32.xlu0 %v295, 40
    %v1762 = vpop.permute.xlu0 %1761
    %1763 = vrot.lane.b32.xlu0 %v301, 40
    %v1764 = vpop.permute.xlu0 %1763
    %1765 = vrot.lane.b32.xlu0 %v302, 40
    %v1766 = vpop.permute.xlu0 %1765
    %1767 = vrot.lane.b32.xlu0 %v303, 40
    %v1768 = vpop.permute.xlu0 %1767
    %1769 = vrot.lane.b32.xlu0 %v309, 40
    %v1770 = vpop.permute.xlu0 %1769
    %1771 = vrot.lane.b32.xlu0 %v310, 40
    %v1772 = vpop.permute.xlu0 %1771
    %1773 = vrot.lane.b32.xlu0 %v311, 40
    %v1774 = vpop.permute.xlu0 %1773
    %1775 = vrot.lane.b32.xlu0 %v317, 40
    %v1776 = vpop.permute.xlu0 %1775
    %1777 = vrot.lane.b32.xlu0 %v318, 40
    %v1778 = vpop.permute.xlu0 %1777
    %1779 = vrot.lane.b32.xlu0 %v319, 40
    %v1780 = vpop.permute.xlu0 %1779
    %1781 = vrot.lane.b32.xlu0 %v325, 40
    %v1782 = vpop.permute.xlu0 %1781
    %1783 = vrot.lane.b32.xlu0 %v326, 40
    %v1784 = vpop.permute.xlu0 %1783
    %1785 = vrot.lane.b32.xlu0 %v327, 40
    %v1786 = vpop.permute.xlu0 %1785
    %1787 = vrot.lane.b32.xlu0 %v333, 40
    %v1788 = vpop.permute.xlu0 %1787
    %1789 = vrot.lane.b32.xlu0 %v334, 40
    %v1790 = vpop.permute.xlu0 %1789
    %1791 = vrot.lane.b32.xlu0 %v335, 40
    %v1792 = vpop.permute.xlu0 %1791
    %1793 = vrot.lane.b32.xlu0 %v341, 40
    %v1794 = vpop.permute.xlu0 %1793
    %1795 = vrot.lane.b32.xlu0 %v342, 40
    %v1796 = vpop.permute.xlu0 %1795
    %1797 = vrot.lane.b32.xlu0 %v343, 40
    %v1798 = vpop.permute.xlu0 %1797
    %1799 = vrot.lane.b32.xlu0 %v349, 40
    %v1800 = vpop.permute.xlu0 %1799
    %1801 = vrot.lane.b32.xlu0 %v350, 40
    %v1802 = vpop.permute.xlu0 %1801
    %1803 = vrot.lane.b32.xlu0 %v351, 40
    %v1804 = vpop.permute.xlu0 %1803
    %1805 = vrot.lane.b32.xlu0 %v357, 40
    %v1806 = vpop.permute.xlu0 %1805
    %1807 = vrot.lane.b32.xlu0 %v358, 40
    %v1808 = vpop.permute.xlu0 %1807
    %1809 = vrot.lane.b32.xlu0 %v359, 40
    %v1810 = vpop.permute.xlu0 %1809
    %1811 = vrot.lane.b32.xlu0 %v365, 40
    %v1812 = vpop.permute.xlu0 %1811
    %1813 = vrot.lane.b32.xlu0 %v366, 40
    %v1814 = vpop.permute.xlu0 %1813
    %1815 = vrot.lane.b32.xlu0 %v367, 40
    %v1816 = vpop.permute.xlu0 %1815
    %1817 = vrot.lane.b32.xlu0 %v373, 40
    %v1818 = vpop.permute.xlu0 %1817
    %1819 = vrot.lane.b32.xlu0 %v374, 40
    %v1820 = vpop.permute.xlu0 %1819
    %1821 = vrot.lane.b32.xlu0 %v375, 40
    %v1822 = vpop.permute.xlu0 %1821
    %1823 = vrot.lane.b32.xlu0 %v381, 40
    %v1824 = vpop.permute.xlu0 %1823
    %1825 = vrot.lane.b32.xlu0 %v382, 40
    %v1826 = vpop.permute.xlu0 %1825
    %1827 = vrot.lane.b32.xlu0 %v383, 40
    %v1828 = vpop.permute.xlu0 %1827
    %1829 = vrot.lane.b32.xlu0 %v389, 40
    %v1830 = vpop.permute.xlu0 %1829
    %1831 = vrot.lane.b32.xlu0 %v390, 40
    %v1832 = vpop.permute.xlu0 %1831
    %1833 = vrot.lane.b32.xlu0 %v391, 40
    %v1834 = vpop.permute.xlu0 %1833
    %1835 = vrot.lane.b32.xlu0 %v397, 40
    %v1836 = vpop.permute.xlu0 %1835
    %1837 = vrot.lane.b32.xlu0 %v398, 40
    %v1838 = vpop.permute.xlu0 %1837
    %1839 = vrot.lane.b32.xlu0 %v399, 40
    %v1840 = vpop.permute.xlu0 %1839
    %vm1841 = vcmask 326656
    %v1842 = vsel %vm1841, %v1740, %v1742
    %v1843 = vsel %vm1841, %v1742, %v1744
    %v1844 = vsel %vm1841, %v1746, %v1748
    %v1845 = vsel %vm1841, %v1748, %v1750
    %v1846 = vsel %vm1841, %v1752, %v1754
    %v1847 = vsel %vm1841, %v1754, %v1756
    %v1848 = vsel %vm1841, %v1758, %v1760
    %v1849 = vsel %vm1841, %v1760, %v1762
    %v1850 = vsel %vm1841, %v1764, %v1766
    %v1851 = vsel %vm1841, %v1766, %v1768
    %v1852 = vsel %vm1841, %v1770, %v1772
    %v1853 = vsel %vm1841, %v1772, %v1774
    %v1854 = vsel %vm1841, %v1776, %v1778
    %v1855 = vsel %vm1841, %v1778, %v1780
    %v1856 = vsel %vm1841, %v1782, %v1784
    %v1857 = vsel %vm1841, %v1784, %v1786
    %v1858 = vsel %vm1841, %v1788, %v1790
    %v1859 = vsel %vm1841, %v1790, %v1792
    %v1860 = vsel %vm1841, %v1794, %v1796
    %v1861 = vsel %vm1841, %v1796, %v1798
    %v1862 = vsel %vm1841, %v1800, %v1802
    %v1863 = vsel %vm1841, %v1802, %v1804
    %v1864 = vsel %vm1841, %v1806, %v1808
    %v1865 = vsel %vm1841, %v1808, %v1810
    %v1866 = vsel %vm1841, %v1812, %v1814
    %v1867 = vsel %vm1841, %v1814, %v1816
    %v1868 = vsel %vm1841, %v1818, %v1820
    %v1869 = vsel %vm1841, %v1820, %v1822
    %v1870 = vsel %vm1841, %v1824, %v1826
    %v1871 = vsel %vm1841, %v1826, %v1828
    %v1872 = vsel %vm1841, %v1830, %v1832
    %v1873 = vsel %vm1841, %v1832, %v1834
    %v1874 = vsel %vm1841, %v1836, %v1838
    %v1875 = vsel %vm1841, %v1838, %v1840
    %v1928 = vsel %vm831, %v1704, 0
    %1930 = vmatpush.msra.mxu0 %v1872
    %1931 = vmatpush.msra.mxu0 %v1870
    %1932 = vmatpush.msra.mxu0 %v1868
    %1933 = vmatpush.msra.mxu0 %v1866
    %1934 = vmatpush.msra.mxu0 %v1864
    %1935 = vmatpush.msra.mxu0 %v1862
    %1936 = vmatpush.msra.mxu0 %v1860
    %1937 = vmatpush.msra.mxu0 %v1858
    %1938 = vmatpush.msra.mxu0 %v1856
    %1939 = vmatpush.msra.mxu0 %v1854
    %1940 = vmatpush.msra.mxu0 %v1852
    %1941 = vmatpush.msra.mxu0 %v1850
    %1942 = vmatpush.msra.mxu0 %v1848
    %1943 = vmatpush.msra.mxu0 %v1846
    %1944 = vmatpush.msra.mxu0 %v1844
    %1945 = vmatpush.msra.mxu0 %v1842
    %1946 = vmatmul.f32.gmra.mxu0 %v1703
    %v1947 = vpop.f32.mrf.mxu0
    %v1948 = vadd.f32 0.0, %v1947
    %1949 = vdwg.mxu0
    %1950 = vmatpush.msra.mxu0 0.0
    %1951 = vmatpush.msra.mxu0 0.0
    %1952 = vmatpush.msra.mxu0 0.0
    %1953 = vmatpush.msra.mxu0 0.0
    %1954 = vmatpush.msra.mxu0 0.0
    %1955 = vmatpush.msra.mxu0 0.0
    %1956 = vmatpush.msra.mxu0 0.0
    %1957 = vmatpush.msra.mxu0 0.0
    %1958 = vmatpush.msra.mxu0 0.0
    %1959 = vmatpush.msra.mxu0 0.0
    %1960 = vmatpush.msra.mxu0 0.0
    %1961 = vmatpush.msra.mxu0 0.0
    %1962 = vmatpush.msra.mxu0 0.0
    %1963 = vmatpush.msra.mxu0 0.0
    %1964 = vmatpush.msra.mxu0 0.0
    %1965 = vmatpush.msra.mxu0 %v1874
    %1966 = vmatmul.f32.gmra.mxu0 %v1928
    %v1967 = vpop.f32.mrf.mxu0
    %v1968 = vadd.f32 %v1948, %v1967
    %1969 = vdwg.mxu0
    %1970 = vmatpush.msra.mxu0 %v1873
    %1971 = vmatpush.msra.mxu0 %v1871
    %1972 = vmatpush.msra.mxu0 %v1869
    %1973 = vmatpush.msra.mxu0 %v1867
    %1974 = vmatpush.msra.mxu0 %v1865
    %1975 = vmatpush.msra.mxu0 %v1863
    %1976 = vmatpush.msra.mxu0 %v1861
    %1977 = vmatpush.msra.mxu0 %v1859
    %1978 = vmatpush.msra.mxu0 %v1857
    %1979 = vmatpush.msra.mxu0 %v1855
    %1980 = vmatpush.msra.mxu0 %v1853
    %1981 = vmatpush.msra.mxu0 %v1851
    %1982 = vmatpush.msra.mxu0 %v1849
    %1983 = vmatpush.msra.mxu0 %v1847
    %1984 = vmatpush.msra.mxu0 %v1845
    %1985 = vmatpush.msra.mxu0 %v1843
    %1986 = vmatmul.f32.gmra.mxu0 %v1703
    %v1987 = vpop.f32.mrf.mxu0
    %v1988 = vadd.f32 0.0, %v1987
    %1989 = vdwg.mxu0
    %1990 = vmatpush.msra.mxu0 0.0
    %1991 = vmatpush.msra.mxu0 0.0
    %1992 = vmatpush.msra.mxu0 0.0
    %1993 = vmatpush.msra.mxu0 0.0
    %1994 = vmatpush.msra.mxu0 0.0
    %1995 = vmatpush.msra.mxu0 0.0
    %1996 = vmatpush.msra.mxu0 0.0
    %1997 = vmatpush.msra.mxu0 0.0
    %1998 = vmatpush.msra.mxu0 0.0
    %1999 = vmatpush.msra.mxu0 0.0
    %2000 = vmatpush.msra.mxu0 0.0
    %2001 = vmatpush.msra.mxu0 0.0
    %2002 = vmatpush.msra.mxu0 0.0
    %2003 = vmatpush.msra.mxu0 0.0
    %2004 = vmatpush.msra.mxu0 0.0
    %2005 = vmatpush.msra.mxu0 %v1875
    %2006 = vmatmul.f32.gmra.mxu0 %v1928
    %v2007 = vpop.f32.mrf.mxu0
    %v2008 = vadd.f32 %v1988, %v2007
    %2009 = vdwg.mxu0
    %2010 = vmatpush.msra.mxu0 %v1834
    %2011 = vmatpush.msra.mxu0 %v1828
    %2012 = vmatpush.msra.mxu0 %v1822
    %2013 = vmatpush.msra.mxu0 %v1816
    %2014 = vmatpush.msra.mxu0 %v1810
    %2015 = vmatpush.msra.mxu0 %v1804
    %2016 = vmatpush.msra.mxu0 %v1798
    %2017 = vmatpush.msra.mxu0 %v1792
    %2018 = vmatpush.msra.mxu0 %v1786
    %2019 = vmatpush.msra.mxu0 %v1780
    %2020 = vmatpush.msra.mxu0 %v1774
    %2021 = vmatpush.msra.mxu0 %v1768
    %2022 = vmatpush.msra.mxu0 %v1762
    %2023 = vmatpush.msra.mxu0 %v1756
    %2024 = vmatpush.msra.mxu0 %v1750
    %2025 = vmatpush.msra.mxu0 %v1744
    %2026 = vmatmul.f32.gmra.mxu0 %v1703
    %v2027 = vpop.f32.mrf.mxu0
    %v2028 = vadd.f32 0.0, %v2027
    %2029 = vdwg.mxu0
    %2030 = vmatpush.msra.mxu0 0.0
    %2031 = vmatpush.msra.mxu0 0.0
    %2032 = vmatpush.msra.mxu0 0.0
    %2033 = vmatpush.msra.mxu0 0.0
    %2034 = vmatpush.msra.mxu0 0.0
    %2035 = vmatpush.msra.mxu0 0.0
    %2036 = vmatpush.msra.mxu0 0.0
    %2037 = vmatpush.msra.mxu0 0.0
    %2038 = vmatpush.msra.mxu0 0.0
    %2039 = vmatpush.msra.mxu0 0.0
    %2040 = vmatpush.msra.mxu0 0.0
    %2041 = vmatpush.msra.mxu0 0.0
    %2042 = vmatpush.msra.mxu0 0.0
    %2043 = vmatpush.msra.mxu0 0.0
    %2044 = vmatpush.msra.mxu0 0.0
    %2045 = vmatpush.msra.mxu0 %v1840
    %2046 = vmatmul.f32.gmra.mxu0 %v1928
    %v2047 = vpop.f32.mrf.mxu0
    %v2048 = vadd.f32 %v2028, %v2047
    %2049 = vdwg.mxu0
    %v2050 = vperm.slane %v401, 7
    %v2051 = vperm.slane %v402, 7
    %v2052 = vadd.f32 %v1968, %v2050
    %v2053 = vadd.f32 %v2008, %v2051
    %v2054 = vperm.slane %v403, 0
    %v2055 = vperm.slane %v404, 0
    %2058 = vrot.lane.b32.xlu0 %v2054, 8
    %v2059 = vpop.permute.xlu0 %2058
    %2060 = vrot.lane.b32.xlu0 %v2055, 8
    %v2061 = vpop.permute.xlu0 %2060
    %v2062 = vsel %vm831, %v2059, %v2061
    %v2065 = vadd.f32 %v2008, %v2059
    %v2066 = vadd.f32 %v2048, %v2062
    %v2067 = vxor.u32 %v2065, 2147483648
    %v2068 = vxor.u32 %v2066, 2147483648
    %v2069 = vmul.f32 %v2067, 1.442695
    %v2070 = vpow.pop %v2069
    %v2071 = vmul.f32 %v2068, 1.442695
    %v2072 = vpow.pop %v2071
    %v2073 = vadd.f32 %v2070, 1.0
    %v2074 = vadd.f32 %v2072, 1.0
    %v2075 = vrcp.pop %v2073
    %v2076 = vmul.f32 %v2073, %v2075
    %v2077 = vsub.f32 1.0, %v2076
    %v2078 = vmul.f32 %v2075, %v2077
    %v2079 = vadd.f32 %v2075, %v2078
    %vm2080 = vweird.f32 %v2073
    %vm2081 = vweird.f32 %v2075
    %vm2082 = vmor %vm2080, %vm2081
    %v2083 = vsel %vm2082, %v2075, %v2079
    %v2084 = vand.u32 2147483647, %v2073
    %vm2085 = vcmp.eq.f32.partialorder %v2084, 8.507059e+37
    %v2086 = vand.u32 %v2073, 2147483648
    %v2087 = vor.u32 1.1754944e-38, %v2086
    %v2088 = vsel %vm2085, %v2087, %v2083
    %v2089 = vmul.f32 1.0, %v2088
    %v2090 = vrcp.pop %v2074
    %v2091 = vmul.f32 %v2074, %v2090
    %v2092 = vsub.f32 1.0, %v2091
    %v2093 = vmul.f32 %v2090, %v2092
    %v2094 = vadd.f32 %v2090, %v2093
    %vm2095 = vweird.f32 %v2074
    %vm2096 = vweird.f32 %v2090
    %vm2097 = vmor %vm2095, %vm2096
    %v2098 = vsel %vm2097, %v2090, %v2094
    %v2099 = vand.u32 2147483647, %v2074
    %vm2100 = vcmp.eq.f32.partialorder %v2099, 8.507059e+37
    %v2101 = vand.u32 %v2074, 2147483648
    %v2102 = vor.u32 1.1754944e-38, %v2101
    %v2103 = vsel %vm2100, %v2102, %v2098
    %v2104 = vmul.f32 1.0, %v2103
    %2107 = vrot.lane.b32.xlu0 %v2089, 120
    %v2108 = vpop.permute.xlu0 %2107
    %2109 = vrot.lane.b32.xlu0 %v2104, 120
    %v2110 = vpop.permute.xlu0 %2109
    %v2111 = vsel %vm1085, %v2108, %v2110
    %v2114 = vmul.f32 %v2052, %v2111
    %v2115 = vmul.f32 %v2053, %v2110
    %v2116 = vperm.slane %v401, 5
    %v2117 = vperm.slane %v402, 5
    %2135 = vrot.lane.b32.xlu0 %v267, 112
    %v2136 = vpop.permute.xlu0 %2135
    %2137 = vrot.lane.b32.xlu0 %v268, 112
    %v2138 = vpop.permute.xlu0 %2137
    %2139 = vrot.lane.b32.xlu0 %v275, 112
    %v2140 = vpop.permute.xlu0 %2139
    %2141 = vrot.lane.b32.xlu0 %v276, 112
    %v2142 = vpop.permute.xlu0 %2141
    %2143 = vrot.lane.b32.xlu0 %v283, 112
    %v2144 = vpop.permute.xlu0 %2143
    %2145 = vrot.lane.b32.xlu0 %v284, 112
    %v2146 = vpop.permute.xlu0 %2145
    %2147 = vrot.lane.b32.xlu0 %v291, 112
    %v2148 = vpop.permute.xlu0 %2147
    %2149 = vrot.lane.b32.xlu0 %v292, 112
    %v2150 = vpop.permute.xlu0 %2149
    %2151 = vrot.lane.b32.xlu0 %v299, 112
    %v2152 = vpop.permute.xlu0 %2151
    %2153 = vrot.lane.b32.xlu0 %v300, 112
    %v2154 = vpop.permute.xlu0 %2153
    %2155 = vrot.lane.b32.xlu0 %v307, 112
    %v2156 = vpop.permute.xlu0 %2155
    %2157 = vrot.lane.b32.xlu0 %v308, 112
    %v2158 = vpop.permute.xlu0 %2157
    %2159 = vrot.lane.b32.xlu0 %v315, 112
    %v2160 = vpop.permute.xlu0 %2159
    %2161 = vrot.lane.b32.xlu0 %v316, 112
    %v2162 = vpop.permute.xlu0 %2161
    %2163 = vrot.lane.b32.xlu0 %v323, 112
    %v2164 = vpop.permute.xlu0 %2163
    %2165 = vrot.lane.b32.xlu0 %v324, 112
    %v2166 = vpop.permute.xlu0 %2165
    %2167 = vrot.lane.b32.xlu0 %v331, 112
    %v2168 = vpop.permute.xlu0 %2167
    %2169 = vrot.lane.b32.xlu0 %v332, 112
    %v2170 = vpop.permute.xlu0 %2169
    %2171 = vrot.lane.b32.xlu0 %v339, 112
    %v2172 = vpop.permute.xlu0 %2171
    %2173 = vrot.lane.b32.xlu0 %v340, 112
    %v2174 = vpop.permute.xlu0 %2173
    %2175 = vrot.lane.b32.xlu0 %v347, 112
    %v2176 = vpop.permute.xlu0 %2175
    %2177 = vrot.lane.b32.xlu0 %v348, 112
    %v2178 = vpop.permute.xlu0 %2177
    %2179 = vrot.lane.b32.xlu0 %v355, 112
    %v2180 = vpop.permute.xlu0 %2179
    %2181 = vrot.lane.b32.xlu0 %v356, 112
    %v2182 = vpop.permute.xlu0 %2181
    %2183 = vrot.lane.b32.xlu0 %v363, 112
    %v2184 = vpop.permute.xlu0 %2183
    %2185 = vrot.lane.b32.xlu0 %v364, 112
    %v2186 = vpop.permute.xlu0 %2185
    %2187 = vrot.lane.b32.xlu0 %v371, 112
    %v2188 = vpop.permute.xlu0 %2187
    %2189 = vrot.lane.b32.xlu0 %v372, 112
    %v2190 = vpop.permute.xlu0 %2189
    %2191 = vrot.lane.b32.xlu0 %v379, 112
    %v2192 = vpop.permute.xlu0 %2191
    %2193 = vrot.lane.b32.xlu0 %v380, 112
    %v2194 = vpop.permute.xlu0 %2193
    %2195 = vrot.lane.b32.xlu0 %v387, 112
    %v2196 = vpop.permute.xlu0 %2195
    %2197 = vrot.lane.b32.xlu0 %v388, 112
    %v2198 = vpop.permute.xlu0 %2197
    %2199 = vrot.lane.b32.xlu0 %v395, 112
    %v2200 = vpop.permute.xlu0 %2199
    %2201 = vrot.lane.b32.xlu0 %v396, 112
    %v2202 = vpop.permute.xlu0 %2201
    %vm2203 = vcmask 916480
    %v2204 = vsel %vm2203, %v2136, %v2138
    %v2205 = vsel %vm2203, %v2140, %v2142
    %v2206 = vsel %vm2203, %v2144, %v2146
    %v2207 = vsel %vm2203, %v2148, %v2150
    %v2208 = vsel %vm2203, %v2152, %v2154
    %v2209 = vsel %vm2203, %v2156, %v2158
    %v2210 = vsel %vm2203, %v2160, %v2162
    %v2211 = vsel %vm2203, %v2164, %v2166
    %v2212 = vsel %vm2203, %v2168, %v2170
    %v2213 = vsel %vm2203, %v2172, %v2174
    %v2214 = vsel %vm2203, %v2176, %v2178
    %v2215 = vsel %vm2203, %v2180, %v2182
    %v2216 = vsel %vm2203, %v2184, %v2186
    %v2217 = vsel %vm2203, %v2188, %v2190
    %v2218 = vsel %vm2203, %v2192, %v2194
    %v2219 = vsel %vm2203, %v2196, %v2198
    %v2220 = vsel %vm2203, %v2200, %v2202
    %v2256 = vsel %vm831, %v1093, 0
    %v2259 = vsel %vm831, %v1095, 0
    %2261 = vmatpush.msra.mxu0 %v2219
    %2262 = vmatpush.msra.mxu0 %v2218
    %2263 = vmatpush.msra.mxu0 %v2217
    %2264 = vmatpush.msra.mxu0 %v2216
    %2265 = vmatpush.msra.mxu0 %v2215
    %2266 = vmatpush.msra.mxu0 %v2214
    %2267 = vmatpush.msra.mxu0 %v2213
    %2268 = vmatpush.msra.mxu0 %v2212
    %2269 = vmatpush.msra.mxu0 %v2211
    %2270 = vmatpush.msra.mxu0 %v2210
    %2271 = vmatpush.msra.mxu0 %v2209
    %2272 = vmatpush.msra.mxu0 %v2208
    %2273 = vmatpush.msra.mxu0 %v2207
    %2274 = vmatpush.msra.mxu0 %v2206
    %2275 = vmatpush.msra.mxu0 %v2205
    %2276 = vmatpush.msra.mxu0 %v2204
    %2277 = vmatmul.f32.gmra.mxu0 %v1092
    %v2278 = vpop.f32.mrf.mxu0
    %v2279 = vadd.f32 %v2116, %v2278
    %2280 = vmatmul.f32.gmra.mxu0 %v1094
    %v2281 = vpop.f32.mrf.mxu0
    %v2282 = vadd.f32 %v2116, %v2281
    %2283 = vdwg.mxu0
    %2284 = vmatpush.msra.mxu0 0.0
    %2285 = vmatpush.msra.mxu0 0.0
    %2286 = vmatpush.msra.mxu0 0.0
    %2287 = vmatpush.msra.mxu0 0.0
    %2288 = vmatpush.msra.mxu0 0.0
    %2289 = vmatpush.msra.mxu0 0.0
    %2290 = vmatpush.msra.mxu0 0.0
    %2291 = vmatpush.msra.mxu0 0.0
    %2292 = vmatpush.msra.mxu0 0.0
    %2293 = vmatpush.msra.mxu0 0.0
    %2294 = vmatpush.msra.mxu0 0.0
    %2295 = vmatpush.msra.mxu0 0.0
    %2296 = vmatpush.msra.mxu0 0.0
    %2297 = vmatpush.msra.mxu0 0.0
    %2298 = vmatpush.msra.mxu0 0.0
    %2299 = vmatpush.msra.mxu0 %v2220
    %2300 = vmatmul.f32.gmra.mxu0 %v2256
    %v2301 = vpop.f32.mrf.mxu0
    %v2302 = vadd.f32 %v2279, %v2301
    %2303 = vmatmul.f32.gmra.mxu0 %v2259
    %v2304 = vpop.f32.mrf.mxu0
    %v2305 = vadd.f32 %v2282, %v2304
    %2306 = vdwg.mxu0
    %2307 = vmatpush.msra.mxu0 %v2198
    %2308 = vmatpush.msra.mxu0 %v2194
    %2309 = vmatpush.msra.mxu0 %v2190
    %2310 = vmatpush.msra.mxu0 %v2186
    %2311 = vmatpush.msra.mxu0 %v2182
    %2312 = vmatpush.msra.mxu0 %v2178
    %2313 = vmatpush.msra.mxu0 %v2174
    %2314 = vmatpush.msra.mxu0 %v2170
    %2315 = vmatpush.msra.mxu0 %v2166
    %2316 = vmatpush.msra.mxu0 %v2162
    %2317 = vmatpush.msra.mxu0 %v2158
    %2318 = vmatpush.msra.mxu0 %v2154
    %2319 = vmatpush.msra.mxu0 %v2150
    %2320 = vmatpush.msra.mxu0 %v2146
    %2321 = vmatpush.msra.mxu0 %v2142
    %2322 = vmatpush.msra.mxu0 %v2138
    %2323 = vmatmul.f32.gmra.mxu0 %v1092
    %v2324 = vpop.f32.mrf.mxu0
    %v2325 = vadd.f32 %v2117, %v2324
    %2326 = vmatmul.f32.gmra.mxu0 %v1094
    %v2327 = vpop.f32.mrf.mxu0
    %v2328 = vadd.f32 %v2117, %v2327
    %2329 = vdwg.mxu0
    %2330 = vmatpush.msra.mxu0 0.0
    %2331 = vmatpush.msra.mxu0 0.0
    %2332 = vmatpush.msra.mxu0 0.0
    %2333 = vmatpush.msra.mxu0 0.0
    %2334 = vmatpush.msra.mxu0 0.0
    %2335 = vmatpush.msra.mxu0 0.0
    %2336 = vmatpush.msra.mxu0 0.0
    %2337 = vmatpush.msra.mxu0 0.0
    %2338 = vmatpush.msra.mxu0 0.0
    %2339 = vmatpush.msra.mxu0 0.0
    %2340 = vmatpush.msra.mxu0 0.0
    %2341 = vmatpush.msra.mxu0 0.0
    %2342 = vmatpush.msra.mxu0 0.0
    %2343 = vmatpush.msra.mxu0 0.0
    %2344 = vmatpush.msra.mxu0 0.0
    %2345 = vmatpush.msra.mxu0 %v2202
    %2346 = vmatmul.f32.gmra.mxu0 %v2256
    %v2347 = vpop.f32.mrf.mxu0
    %v2348 = vadd.f32 %v2325, %v2347
    %2349 = vmatmul.f32.gmra.mxu0 %v2259
    %v2350 = vpop.f32.mrf.mxu0
    %v2351 = vadd.f32 %v2328, %v2350
    %2352 = vdwg.mxu0
    %v2353 = vperm.slane %v2114, 0
    %v2354 = vperm.slane %v2115, 0
    %v2355 = vperm.slane %v2114, 1
    %v2356 = vperm.slane %v2115, 1
    %v2357 = vmul.f32 %v2302, %v2353
    %v2358 = vmul.f32 %v2348, %v2354
    %v2359 = vmul.f32 %v2305, %v2355
    %v2360 = vmul.f32 %v2351, %v2356
    %2378 = vrot.lane.b32.xlu0 %v272, 16
    %v2379 = vpop.permute.xlu0 %2378
    %2380 = vrot.lane.b32.xlu0 %v280, 16
    %v2381 = vpop.permute.xlu0 %2380
    %2382 = vrot.lane.b32.xlu0 %v288, 16
    %v2383 = vpop.permute.xlu0 %2382
    %2384 = vrot.lane.b32.xlu0 %v296, 16
    %v2385 = vpop.permute.xlu0 %2384
    %2386 = vrot.lane.b32.xlu0 %v304, 16
    %v2387 = vpop.permute.xlu0 %2386
    %2388 = vrot.lane.b32.xlu0 %v312, 16
    %v2389 = vpop.permute.xlu0 %2388
    %2390 = vrot.lane.b32.xlu0 %v320, 16
    %v2391 = vpop.permute.xlu0 %2390
    %2392 = vrot.lane.b32.xlu0 %v328, 16
    %v2393 = vpop.permute.xlu0 %2392
    %2394 = vrot.lane.b32.xlu0 %v336, 16
    %v2395 = vpop.permute.xlu0 %2394
    %2396 = vrot.lane.b32.xlu0 %v344, 16
    %v2397 = vpop.permute.xlu0 %2396
    %2398 = vrot.lane.b32.xlu0 %v352, 16
    %v2399 = vpop.permute.xlu0 %2398
    %2400 = vrot.lane.b32.xlu0 %v360, 16
    %v2401 = vpop.permute.xlu0 %2400
    %2402 = vrot.lane.b32.xlu0 %v368, 16
    %v2403 = vpop.permute.xlu0 %2402
    %2404 = vrot.lane.b32.xlu0 %v376, 16
    %v2405 = vpop.permute.xlu0 %2404
    %2406 = vrot.lane.b32.xlu0 %v384, 16
    %v2407 = vpop.permute.xlu0 %2406
    %2408 = vrot.lane.b32.xlu0 %v392, 16
    %v2409 = vpop.permute.xlu0 %2408
    %2410 = vrot.lane.b32.xlu0 %v400, 16
    %v2411 = vpop.permute.xlu0 %2410
    %v2430 = vsel %vm831, %v2358, 0
    %v2433 = vsel %vm831, %v2360, 0
    %2435 = vmatpush.msra.mxu0 %v2409
    %2436 = vmatpush.msra.mxu0 %v2407
    %2437 = vmatpush.msra.mxu0 %v2405
    %2438 = vmatpush.msra.mxu0 %v2403
    %2439 = vmatpush.msra.mxu0 %v2401
    %2440 = vmatpush.msra.mxu0 %v2399
    %2441 = vmatpush.msra.mxu0 %v2397
    %2442 = vmatpush.msra.mxu0 %v2395
    %2443 = vmatpush.msra.mxu0 %v2393
    %2444 = vmatpush.msra.mxu0 %v2391
    %2445 = vmatpush.msra.mxu0 %v2389
    %2446 = vmatpush.msra.mxu0 %v2387
    %2447 = vmatpush.msra.mxu0 %v2385
    %2448 = vmatpush.msra.mxu0 %v2383
    %2449 = vmatpush.msra.mxu0 %v2381
    %2450 = vmatpush.msra.mxu0 %v2379
    %2451 = vmatmul.f32.gmra.mxu0 %v2357
    %v2452 = vpop.f32.mrf.mxu0
    %v2453 = vadd.f32 0.0, %v2452
    %2454 = vmatmul.f32.gmra.mxu0 %v2359
    %v2455 = vpop.f32.mrf.mxu0
    %v2456 = vadd.f32 0.0, %v2455
    %2457 = vdwg.mxu0
    %2458 = vmatpush.msra.mxu0 0.0
    %2459 = vmatpush.msra.mxu0 0.0
    %2460 = vmatpush.msra.mxu0 0.0
    %2461 = vmatpush.msra.mxu0 0.0
    %2462 = vmatpush.msra.mxu0 0.0
    %2463 = vmatpush.msra.mxu0 0.0
    %2464 = vmatpush.msra.mxu0 0.0
    %2465 = vmatpush.msra.mxu0 0.0
    %2466 = vmatpush.msra.mxu0 0.0
    %2467 = vmatpush.msra.mxu0 0.0
    %2468 = vmatpush.msra.mxu0 0.0
    %2469 = vmatpush.msra.mxu0 0.0
    %2470 = vmatpush.msra.mxu0 0.0
    %2471 = vmatpush.msra.mxu0 0.0
    %2472 = vmatpush.msra.mxu0 0.0
    %2473 = vmatpush.msra.mxu0 %v2411
    %2474 = vmatmul.f32.gmra.mxu0 %v2430
    %v2475 = vpop.f32.mrf.mxu0
    %v2476 = vadd.f32 %v2453, %v2475
    %2477 = vmatmul.f32.gmra.mxu0 %v2433
    %v2478 = vpop.f32.mrf.mxu0
    %v2479 = vadd.f32 %v2456, %v2478
    %2480 = vdwg.mxu0
    %v2481 = vsel %vm1096, %v2357, -inf
    %2482 = vmax.xlane.f32.xlu0 %v2481
    %v2483 = vpop.xlane.xlu0 %2482
    %v2484 = vsel %vm1096, %v2359, -inf
    %2485 = vmax.xlane.f32.xlu0 %v2484
    %v2486 = vpop.xlane.xlu0 %2485
    %vm2487 = vcmask 261248
    %v2488 = vsel %vm2487, %v2357, -inf
    %2489 = vmax.xlane.f32.xlu0 %v2488
    %v2490 = vpop.xlane.xlu0 %2489
    %v2491 = vsel %vm2487, %v2359, -inf
    %2492 = vmax.xlane.f32.xlu0 %v2491
    %v2493 = vpop.xlane.xlu0 %2492
    %vm2494 = vcmask 523520
    %v2495 = vsel %vm2494, %v2357, -inf
    %2496 = vmax.xlane.f32.xlu0 %v2495
    %v2497 = vpop.xlane.xlu0 %2496
    %v2498 = vsel %vm2494, %v2359, -inf
    %2499 = vmax.xlane.f32.xlu0 %v2498
    %v2500 = vpop.xlane.xlu0 %2499
    %vm2501 = vcmask 785920
    %v2502 = vsel %vm2501, %v2357, -inf
    %2503 = vmax.xlane.f32.xlu0 %v2502
    %v2504 = vpop.xlane.xlu0 %2503
    %v2505 = vsel %vm2501, %v2359, -inf
    %2506 = vmax.xlane.f32.xlu0 %v2505
    %v2507 = vpop.xlane.xlu0 %2506
    %vm2508 = vcmask 1048320
    %v2509 = vsel %vm2508, %v2357, -inf
    %2510 = vmax.xlane.f32.xlu0 %v2509
    %v2511 = vpop.xlane.xlu0 %2510
    %v2512 = vsel %vm2508, %v2359, -inf
    %2513 = vmax.xlane.f32.xlu0 %v2512
    %v2514 = vpop.xlane.xlu0 %2513
    %v2515 = vsel %vm831, %v2358, -inf
    %2516 = vmax.xlane.f32.xlu0 %v2515
    %v2517 = vpop.xlane.xlu0 %2516
    %v2518 = vsel %vm831, %v2360, -inf
    %2519 = vmax.xlane.f32.xlu0 %v2518
    %v2520 = vpop.xlane.xlu0 %2519
    %vm2521 = vcmask 7168
    %v2522 = vsel %vm2521, %v2483, %v2490
    %v2523 = vsel %vm2521, %v2486, %v2493
    %vm2524 = vcmask 15360
    %v2525 = vsel %vm2524, %v2522, %v2497
    %v2526 = vsel %vm2524, %v2523, %v2500
    %vm2527 = vcmask 23552
    %v2528 = vsel %vm2527, %v2525, %v2504
    %v2529 = vsel %vm2527, %v2526, %v2507
    %vm2530 = vcmask 31744
    %v2531 = vsel %vm2530, %v2528, %v2511
    %v2532 = vsel %vm2530, %v2529, %v2514
    %vm2533 = vcmask 39936
    %v2534 = vsel %vm2533, %v2531, %v2517
    %v2535 = vsel %vm2533, %v2532, %v2520
    %v2536 = vperm.slane %v405, 7
    %v2537 = vrot.slane %v2476, 5
    %v2538 = vrot.slane %v2479, 5
    %v2539 = vlaneseq
    %v2540 = vshrl.u32 %v2539, 7
    %vm2541 = vcmp.lt.s32.totalorder %v2540, 3
    %v2542 = vsel %vm2541, %v2537, %v2538
    %v2543 = vsel %vm2541, %v2538, %v2537
    %v2544 = vrot.slane %v2534, 5
    %v2545 = vrot.slane %v2535, 5
    %v2546 = vsel %vm2541, %v2544, %v2545
    %v2547 = vsel %vm2541, %v2545, %v2544
    %v2548 = vperm.slane %v403, 1
    %v2549 = vmul.f32 %v2548, %v2543
    %v2550 = vmul.f32 %v2548, %v2542
    %v2551 = vperm.slane %v405, 0
    %v2552 = vmul.f32 %v2551, %v2547
    %v2553 = vmul.f32 %v2551, %v2546
    %v2554 = vadd.f32 %v2549, %v2552
    %v2555 = vadd.f32 %v2550, %v2553
    %2557 = vset.pattern.permute.xlu0 0
    %2558 = vperm.xlu0 %2557, %v408
    %v2559 = vpop.permute.xlu0 %2558
    %2562 = vset.pattern.permute.xlu0 0
    %2563 = vperm.xlu0 %2562, %v409
    %v2564 = vpop.permute.xlu0 %2563
    %v2566 = vmul.f32 %v2554, %v2559
    %v2567 = vmul.f32 %v2555, %v2564
    %v2568 = vadd.f32 %v2536, %v2566
    %v2569 = vadd.f32 %v2536, %v2567
    %v2570 = vrot.slane %v2476, 6
    %v2571 = vrot.slane %v2479, 6
    %vm2572 = vcmp.lt.s32.totalorder %v2540, 2
    %v2573 = vsel %vm2572, %v2570, %v2571
    %v2574 = vsel %vm2572, %v2571, %v2570
    %v2575 = vrot.slane %v2534, 6
    %v2576 = vrot.slane %v2535, 6
    %v2577 = vsel %vm2572, %v2575, %v2576
    %v2578 = vsel %vm2572, %v2576, %v2575
    %v2579 = vperm.slane %v403, 2
    %v2580 = vmul.f32 %v2579, %v2574
    %v2581 = vmul.f32 %v2579, %v2573
    %v2582 = vperm.slane %v405, 1
    %v2583 = vmul.f32 %v2582, %v2578
    %v2584 = vmul.f32 %v2582, %v2577
    %v2585 = vadd.f32 %v2580, %v2583
    %v2586 = vadd.f32 %v2581, %v2584
    %2587 = vset.pattern.permute.xlu0 1
    %2588 = vperm.xlu0 %2587, %v408
    %v2589 = vpop.permute.xlu0 %2588
    %2591 = vset.pattern.permute.xlu0 1
    %2592 = vperm.xlu0 %2591, %v409
    %v2593 = vpop.permute.xlu0 %2592
    %v2595 = vmul.f32 %v2585, %v2589
    %v2596 = vmul.f32 %v2586, %v2593
    %v2597 = vadd.f32 %v2568, %v2595
    %v2598 = vadd.f32 %v2569, %v2596
    %v2599 = vrot.slane %v2476, 7
    %v2600 = vrot.slane %v2479, 7
    %vm2601 = vcmp.lt.s32.totalorder %v2540, 1
    %v2602 = vsel %vm2601, %v2599, %v2600
    %v2603 = vsel %vm2601, %v2600, %v2599
    %v2604 = vrot.slane %v2534, 7
    %v2605 = vrot.slane %v2535, 7
    %v2606 = vsel %vm2601, %v2604, %v2605
    %v2607 = vsel %vm2601, %v2605, %v2604
    %v2608 = vperm.slane %v403, 3
    %v2609 = vmul.f32 %v2608, %v2603
    %v2610 = vmul.f32 %v2608, %v2602
    %v2611 = vperm.slane %v405, 2
    %v2612 = vmul.f32 %v2611, %v2607
    %v2613 = vmul.f32 %v2611, %v2606
    %v2614 = vadd.f32 %v2609, %v2612
    %v2615 = vadd.f32 %v2610, %v2613
    %2616 = vset.pattern.permute.xlu0 2
    %2617 = vperm.xlu0 %2616, %v408
    %v2618 = vpop.permute.xlu0 %2617
    %2620 = vset.pattern.permute.xlu0 2
    %2621 = vperm.xlu0 %2620, %v409
    %v2622 = vpop.permute.xlu0 %2621
    %v2624 = vmul.f32 %v2614, %v2618
    %v2625 = vmul.f32 %v2615, %v2622
    %v2626 = vadd.f32 %v2597, %v2624
    %v2627 = vadd.f32 %v2598, %v2625
    %v2628 = vperm.slane %v403, 4
    %v2629 = vmul.f32 %v2628, %v2476
    %v2630 = vmul.f32 %v2628, %v2479
    %v2631 = vperm.slane %v405, 3
    %v2632 = vmul.f32 %v2631, %v2534
    %v2633 = vmul.f32 %v2631, %v2535
    %v2634 = vadd.f32 %v2629, %v2632
    %v2635 = vadd.f32 %v2630, %v2633
    %v2636 = vadd.f32 %v2626, %v2634
    %v2637 = vadd.f32 %v2627, %v2635
    %v2638 = vrot.slane %v2476, 1
    %v2639 = vrot.slane %v2479, 1
    %vm2640 = vcmp.lt.s32.totalorder %v2540, 7
    %v2641 = vsel %vm2640, %v2638, %v2639
    %v2642 = vsel %vm2640, %v2639, %v2638
    %v2643 = vrot.slane %v2534, 1
    %v2644 = vrot.slane %v2535, 1
    %v2645 = vsel %vm2640, %v2643, %v2644
    %v2646 = vsel %vm2640, %v2644, %v2643
    %v2647 = vperm.slane %v403, 5
    %v2648 = vmul.f32 %v2647, %v2641
    %v2649 = vmul.f32 %v2647, %v2642
    %v2650 = vperm.slane %v405, 4
    %v2651 = vmul.f32 %v2650, %v2645
    %v2652 = vmul.f32 %v2650, %v2646
    %v2653 = vadd.f32 %v2648, %v2651
    %v2654 = vadd.f32 %v2649, %v2652
    %2655 = vset.pattern.permute.xlu0 4
    %2656 = vperm.xlu0 %2655, %v408
    %v2657 = vpop.permute.xlu0 %2656
    %2659 = vset.pattern.permute.xlu0 4
    %2660 = vperm.xlu0 %2659, %v409
    %v2661 = vpop.permute.xlu0 %2660
    %v2663 = vmul.f32 %v2653, %v2657
    %v2664 = vmul.f32 %v2654, %v2661
    %v2665 = vadd.f32 %v2636, %v2663
    %v2666 = vadd.f32 %v2637, %v2664
    %v2667 = vrot.slane %v2476, 2
    %v2668 = vrot.slane %v2479, 2
    %vm2669 = vcmp.lt.s32.totalorder %v2540, 6
    %v2670 = vsel %vm2669, %v2667, %v2668
    %v2671 = vsel %vm2669, %v2668, %v2667
    %v2672 = vrot.slane %v2534, 2
    %v2673 = vrot.slane %v2535, 2
    %v2674 = vsel %vm2669, %v2672, %v2673
    %v2675 = vsel %vm2669, %v2673, %v2672
    %v2676 = vperm.slane %v403, 6
    %v2677 = vmul.f32 %v2676, %v2670
    %v2678 = vmul.f32 %v2676, %v2671
    %v2679 = vperm.slane %v405, 5
    %v2680 = vmul.f32 %v2679, %v2674
    %v2681 = vmul.f32 %v2679, %v2675
    %v2682 = vadd.f32 %v2677, %v2680
    %v2683 = vadd.f32 %v2678, %v2681
    %2684 = vset.pattern.permute.xlu0 5
    %2685 = vperm.xlu0 %2684, %v408
    %v2686 = vpop.permute.xlu0 %2685
    %2688 = vset.pattern.permute.xlu0 5
    %2689 = vperm.xlu0 %2688, %v409
    %v2690 = vpop.permute.xlu0 %2689
    %v2692 = vmul.f32 %v2682, %v2686
    %v2693 = vmul.f32 %v2683, %v2690
    %v2694 = vadd.f32 %v2665, %v2692
    %v2695 = vadd.f32 %v2666, %v2693
    %v2696 = vrot.slane %v2476, 3
    %v2697 = vrot.slane %v2479, 3
    %vm2698 = vcmp.lt.s32.totalorder %v2540, 5
    %v2699 = vsel %vm2698, %v2696, %v2697
    %v2700 = vsel %vm2698, %v2697, %v2696
    %v2701 = vrot.slane %v2534, 3
    %v2702 = vrot.slane %v2535, 3
    %v2703 = vsel %vm2698, %v2701, %v2702
    %v2704 = vsel %vm2698, %v2702, %v2701
    %v2705 = vperm.slane %v403, 7
    %v2706 = vmul.f32 %v2705, %v2699
    %v2707 = vmul.f32 %v2705, %v2700
    %v2708 = vperm.slane %v405, 6
    %v2709 = vmul.f32 %v2708, %v2703
    %v2710 = vmul.f32 %v2708, %v2704
    %v2711 = vadd.f32 %v2706, %v2709
    %v2712 = vadd.f32 %v2707, %v2710
    %2713 = vset.pattern.permute.xlu0 6
    %2714 = vperm.xlu0 %2713, %v408
    %v2715 = vpop.permute.xlu0 %2714
    %2717 = vset.pattern.permute.xlu0 6
    %2718 = vperm.xlu0 %2717, %v409
    %v2719 = vpop.permute.xlu0 %2718
    %v2721 = vmul.f32 %v2711, %v2715
    %v2722 = vmul.f32 %v2712, %v2719
    %v2723 = vadd.f32 %v2694, %v2721
    %v2724 = vadd.f32 %v2695, %v2722
    %v2725 = vxor.u32 %v2723, 2147483648
    %v2726 = vxor.u32 %v2724, 2147483648
    %v2727 = vmul.f32 %v2725, 1.442695
    %v2728 = vpow.pop %v2727
    %v2729 = vmul.f32 %v2726, 1.442695
    %v2730 = vpow.pop %v2729
    %v2731 = vadd.f32 %v2728, 1.0
    %v2732 = vadd.f32 %v2730, 1.0
    %v2733 = vrcp.pop %v2731
    %v2734 = vmul.f32 %v2731, %v2733
    %v2735 = vsub.f32 1.0, %v2734
    %v2736 = vmul.f32 %v2733, %v2735
    %v2737 = vadd.f32 %v2733, %v2736
    %vm2738 = vweird.f32 %v2731
    %vm2739 = vweird.f32 %v2733
    %vm2740 = vmor %vm2738, %vm2739
    %v2741 = vsel %vm2740, %v2733, %v2737
    %v2742 = vand.u32 2147483647, %v2731
    %vm2743 = vcmp.eq.f32.partialorder %v2742, 8.507059e+37
    %v2744 = vand.u32 %v2731, 2147483648
    %v2745 = vor.u32 1.1754944e-38, %v2744
    %v2746 = vsel %vm2743, %v2745, %v2741
    %v2747 = vmul.f32 1.0, %v2746
    %v2748 = vrcp.pop %v2732
    %v2749 = vmul.f32 %v2732, %v2748
    %v2750 = vsub.f32 1.0, %v2749
    %v2751 = vmul.f32 %v2748, %v2750
    %v2752 = vadd.f32 %v2748, %v2751
    %vm2753 = vweird.f32 %v2732
    %vm2754 = vweird.f32 %v2748
    %vm2755 = vmor %vm2753, %vm2754
    %v2756 = vsel %vm2755, %v2748, %v2752
    %v2757 = vand.u32 2147483647, %v2732
    %vm2758 = vcmp.eq.f32.partialorder %v2757, 8.507059e+37
    %v2759 = vand.u32 %v2732, 2147483648
    %v2760 = vor.u32 1.1754944e-38, %v2759
    %v2761 = vsel %vm2758, %v2760, %v2756
    %v2762 = vmul.f32 1.0, %v2761
    %v2764 = vrot.slane %v406, 2
    %v2765 = vrot.slane %v407, 2
    %vm2766 = vcmask 48128
    %v2768 = vsel %vm2766, %v2747, 0
    %v2771 = vsel %vm2766, %v2762, 0
    %vm2773 = vcmask 1045504
    %v2774 = vsel %vm2773, %v2764, 0
    %v2776 = vsel %vm2773, %v2765, 0
    %2778 = vmatpush.msra.mxu0 0.0
    %2779 = vmatpush.msra.mxu0 0.0
    %2780 = vmatpush.msra.mxu0 0.0
    %2781 = vmatpush.msra.mxu0 0.0
    %2782 = vmatpush.msra.mxu0 0.0
    %2783 = vmatpush.msra.mxu0 0.0
    %2784 = vmatpush.msra.mxu0 0.0
    %2785 = vmatpush.msra.mxu0 0.0
    %2786 = vmatpush.msra.mxu0 0.0
    %2787 = vmatpush.msra.mxu0 0.0
    %2788 = vmatpush.msra.mxu0 0.0
    %2789 = vmatpush.msra.mxu0 0.0
    %2790 = vmatpush.msra.mxu0 0.0
    %2791 = vmatpush.msra.mxu0 0.0
    %2792 = vmatpush.msra.mxu0 0.0
    %2793 = vmatpush.msra.mxu0 %v2774
    %2794 = vmatmul.f32.gmra.mxu0 %v2768
    %v2795 = vpop.f32.mrf.mxu0
    %v2796 = vadd.f32 0.0, %v2795
    %2797 = vmatmul.f32.gmra.mxu0 %v2771
    %v2798 = vpop.f32.mrf.mxu0
    %v2799 = vadd.f32 0.0, %v2798
    %2800 = vdwg.mxu0
    %2801 = vmatpush.msra.mxu0 0.0
    %2802 = vmatpush.msra.mxu0 0.0
    %2803 = vmatpush.msra.mxu0 0.0
    %2804 = vmatpush.msra.mxu0 0.0
    %2805 = vmatpush.msra.mxu0 0.0
    %2806 = vmatpush.msra.mxu0 0.0
    %2807 = vmatpush.msra.mxu0 0.0
    %2808 = vmatpush.msra.mxu0 0.0
    %2809 = vmatpush.msra.mxu0 0.0
    %2810 = vmatpush.msra.mxu0 0.0
    %2811 = vmatpush.msra.mxu0 0.0
    %2812 = vmatpush.msra.mxu0 0.0
    %2813 = vmatpush.msra.mxu0 0.0
    %2814 = vmatpush.msra.mxu0 0.0
    %2815 = vmatpush.msra.mxu0 0.0
    %2816 = vmatpush.msra.mxu0 %v2776
    %2817 = vmatmul.f32.gmra.mxu0 %v2768
    %v2818 = vpop.f32.mrf.mxu0
    %v2819 = vadd.f32 0.0, %v2818
    %2820 = vmatmul.f32.gmra.mxu0 %v2771
    %v2821 = vpop.f32.mrf.mxu0
    %v2822 = vadd.f32 0.0, %v2821
    %2823 = vdwg.mxu0
    %v2824 = vmul.f32 %v2357, %v2796
    %v2825 = vmul.f32 %v2358, %v2819
    %v2826 = vmul.f32 %v2359, %v2799
    %v2827 = vmul.f32 %v2360, %v2822
    %2828 = vrot.lane.b32.xlu0 %v271, 24
    %v2829 = vpop.permute.xlu0 %2828
    %2830 = vrot.lane.b32.xlu0 %v272, 24
    %v2831 = vpop.permute.xlu0 %2830
    %2832 = vrot.lane.b32.xlu0 %v279, 24
    %v2833 = vpop.permute.xlu0 %2832
    %2834 = vrot.lane.b32.xlu0 %v280, 24
    %v2835 = vpop.permute.xlu0 %2834
    %2836 = vrot.lane.b32.xlu0 %v287, 24
    %v2837 = vpop.permute.xlu0 %2836
    %2838 = vrot.lane.b32.xlu0 %v288, 24
    %v2839 = vpop.permute.xlu0 %2838
    %2840 = vrot.lane.b32.xlu0 %v295, 24
    %v2841 = vpop.permute.xlu0 %2840
    %2842 = vrot.lane.b32.xlu0 %v296, 24
    %v2843 = vpop.permute.xlu0 %2842
    %2844 = vrot.lane.b32.xlu0 %v303, 24
    %v2845 = vpop.permute.xlu0 %2844
    %2846 = vrot.lane.b32.xlu0 %v304, 24
    %v2847 = vpop.permute.xlu0 %2846
    %2848 = vrot.lane.b32.xlu0 %v311, 24
    %v2849 = vpop.permute.xlu0 %2848
    %2850 = vrot.lane.b32.xlu0 %v312, 24
    %v2851 = vpop.permute.xlu0 %2850
    %2852 = vrot.lane.b32.xlu0 %v319, 24
    %v2853 = vpop.permute.xlu0 %2852
    %2854 = vrot.lane.b32.xlu0 %v320, 24
    %v2855 = vpop.permute.xlu0 %2854
    %2856 = vrot.lane.b32.xlu0 %v327, 24
    %v2857 = vpop.permute.xlu0 %2856
    %2858 = vrot.lane.b32.xlu0 %v328, 24
    %v2859 = vpop.permute.xlu0 %2858
    %2860 = vrot.lane.b32.xlu0 %v335, 24
    %v2861 = vpop.permute.xlu0 %2860
    %2862 = vrot.lane.b32.xlu0 %v336, 24
    %v2863 = vpop.permute.xlu0 %2862
    %2864 = vrot.lane.b32.xlu0 %v343, 24
    %v2865 = vpop.permute.xlu0 %2864
    %2866 = vrot.lane.b32.xlu0 %v344, 24
    %v2867 = vpop.permute.xlu0 %2866
    %2868 = vrot.lane.b32.xlu0 %v351, 24
    %v2869 = vpop.permute.xlu0 %2868
    %2870 = vrot.lane.b32.xlu0 %v352, 24
    %v2871 = vpop.permute.xlu0 %2870
    %2872 = vrot.lane.b32.xlu0 %v359, 24
    %v2873 = vpop.permute.xlu0 %2872
    %2874 = vrot.lane.b32.xlu0 %v360, 24
    %v2875 = vpop.permute.xlu0 %2874
    %2876 = vrot.lane.b32.xlu0 %v367, 24
    %v2877 = vpop.permute.xlu0 %2876
    %2878 = vrot.lane.b32.xlu0 %v368, 24
    %v2879 = vpop.permute.xlu0 %2878
    %2880 = vrot.lane.b32.xlu0 %v375, 24
    %v2881 = vpop.permute.xlu0 %2880
    %2882 = vrot.lane.b32.xlu0 %v376, 24
    %v2883 = vpop.permute.xlu0 %2882
    %2884 = vrot.lane.b32.xlu0 %v383, 24
    %v2885 = vpop.permute.xlu0 %2884
    %2886 = vrot.lane.b32.xlu0 %v384, 24
    %v2887 = vpop.permute.xlu0 %2886
    %2888 = vrot.lane.b32.xlu0 %v391, 24
    %v2889 = vpop.permute.xlu0 %2888
    %2890 = vrot.lane.b32.xlu0 %v392, 24
    %v2891 = vpop.permute.xlu0 %2890
    %2892 = vrot.lane.b32.xlu0 %v399, 24
    %v2893 = vpop.permute.xlu0 %2892
    %2894 = vrot.lane.b32.xlu0 %v400, 24
    %v2895 = vpop.permute.xlu0 %2894
    %vm2896 = vcmask 195584
    %v2897 = vsel %vm2896, %v2829, %v2831
    %v2898 = vsel %vm2896, %v2833, %v2835
    %v2899 = vsel %vm2896, %v2837, %v2839
    %v2900 = vsel %vm2896, %v2841, %v2843
    %v2901 = vsel %vm2896, %v2845, %v2847
    %v2902 = vsel %vm2896, %v2849, %v2851
    %v2903 = vsel %vm2896, %v2853, %v2855
    %v2904 = vsel %vm2896, %v2857, %v2859
    %v2905 = vsel %vm2896, %v2861, %v2863
    %v2906 = vsel %vm2896, %v2865, %v2867
    %v2907 = vsel %vm2896, %v2869, %v2871
    %v2908 = vsel %vm2896, %v2873, %v2875
    %v2909 = vsel %vm2896, %v2877, %v2879
    %v2910 = vsel %vm2896, %v2881, %v2883
    %v2911 = vsel %vm2896, %v2885, %v2887
    %v2912 = vsel %vm2896, %v2889, %v2891
    %v2913 = vsel %vm2896, %v2893, %v2895
    %v2949 = vsel %vm831, %v2825, 0
    %v2952 = vsel %vm831, %v2827, 0
    %2954 = vmatpush.msra.mxu0 %v2912
    %2955 = vmatpush.msra.mxu0 %v2911
    %2956 = vmatpush.msra.mxu0 %v2910
    %2957 = vmatpush.msra.mxu0 %v2909
    %2958 = vmatpush.msra.mxu0 %v2908
    %2959 = vmatpush.msra.mxu0 %v2907
    %2960 = vmatpush.msra.mxu0 %v2906
    %2961 = vmatpush.msra.mxu0 %v2905
    %2962 = vmatpush.msra.mxu0 %v2904
    %2963 = vmatpush.msra.mxu0 %v2903
    %2964 = vmatpush.msra.mxu0 %v2902
    %2965 = vmatpush.msra.mxu0 %v2901
    %2966 = vmatpush.msra.mxu0 %v2900
    %2967 = vmatpush.msra.mxu0 %v2899
    %2968 = vmatpush.msra.mxu0 %v2898
    %2969 = vmatpush.msra.mxu0 %v2897
    %2970 = vmatmul.f32.gmra.mxu0 %v2824
    %v2971 = vpop.f32.mrf.mxu0
    %v2972 = vadd.f32 0.0, %v2971
    %2973 = vmatmul.f32.gmra.mxu0 %v2826
    %v2974 = vpop.f32.mrf.mxu0
    %v2975 = vadd.f32 0.0, %v2974
    %2976 = vdwg.mxu0
    %2977 = vmatpush.msra.mxu0 0.0
    %2978 = vmatpush.msra.mxu0 0.0
    %2979 = vmatpush.msra.mxu0 0.0
    %2980 = vmatpush.msra.mxu0 0.0
    %2981 = vmatpush.msra.mxu0 0.0
    %2982 = vmatpush.msra.mxu0 0.0
    %2983 = vmatpush.msra.mxu0 0.0
    %2984 = vmatpush.msra.mxu0 0.0
    %2985 = vmatpush.msra.mxu0 0.0
    %2986 = vmatpush.msra.mxu0 0.0
    %2987 = vmatpush.msra.mxu0 0.0
    %2988 = vmatpush.msra.mxu0 0.0
    %2989 = vmatpush.msra.mxu0 0.0
    %2990 = vmatpush.msra.mxu0 0.0
    %2991 = vmatpush.msra.mxu0 0.0
    %2992 = vmatpush.msra.mxu0 %v2913
    %2993 = vmatmul.f32.gmra.mxu0 %v2949
    %v2994 = vpop.f32.mrf.mxu0
    %v2995 = vadd.f32 %v2972, %v2994
    %2996 = vmatmul.f32.gmra.mxu0 %v2952
    %v2997 = vpop.f32.mrf.mxu0
    %v2998 = vadd.f32 %v2975, %v2997
    %2999 = vdwg.mxu0
    %3000 = vmatpush.msra.mxu0 %v2891
    %3001 = vmatpush.msra.mxu0 %v2887
    %3002 = vmatpush.msra.mxu0 %v2883
    %3003 = vmatpush.msra.mxu0 %v2879
    %3004 = vmatpush.msra.mxu0 %v2875
    %3005 = vmatpush.msra.mxu0 %v2871
    %3006 = vmatpush.msra.mxu0 %v2867
    %3007 = vmatpush.msra.mxu0 %v2863
    %3008 = vmatpush.msra.mxu0 %v2859
    %3009 = vmatpush.msra.mxu0 %v2855
    %3010 = vmatpush.msra.mxu0 %v2851
    %3011 = vmatpush.msra.mxu0 %v2847
    %3012 = vmatpush.msra.mxu0 %v2843
    %3013 = vmatpush.msra.mxu0 %v2839
    %3014 = vmatpush.msra.mxu0 %v2835
    %3015 = vmatpush.msra.mxu0 %v2831
    %3016 = vmatmul.f32.gmra.mxu0 %v2824
    %v3017 = vpop.f32.mrf.mxu0
    %v3018 = vadd.f32 0.0, %v3017
    %3019 = vmatmul.f32.gmra.mxu0 %v2826
    %v3020 = vpop.f32.mrf.mxu0
    %v3021 = vadd.f32 0.0, %v3020
    %3022 = vdwg.mxu0
    %3023 = vmatpush.msra.mxu0 0.0
    %3024 = vmatpush.msra.mxu0 0.0
    %3025 = vmatpush.msra.mxu0 0.0
    %3026 = vmatpush.msra.mxu0 0.0
    %3027 = vmatpush.msra.mxu0 0.0
    %3028 = vmatpush.msra.mxu0 0.0
    %3029 = vmatpush.msra.mxu0 0.0
    %3030 = vmatpush.msra.mxu0 0.0
    %3031 = vmatpush.msra.mxu0 0.0
    %3032 = vmatpush.msra.mxu0 0.0
    %3033 = vmatpush.msra.mxu0 0.0
    %3034 = vmatpush.msra.mxu0 0.0
    %3035 = vmatpush.msra.mxu0 0.0
    %3036 = vmatpush.msra.mxu0 0.0
    %3037 = vmatpush.msra.mxu0 0.0
    %3038 = vmatpush.msra.mxu0 %v2895
    %3039 = vmatmul.f32.gmra.mxu0 %v2949
    %v3040 = vpop.f32.mrf.mxu0
    %v3041 = vadd.f32 %v3018, %v3040
    %3042 = vmatmul.f32.gmra.mxu0 %v2952
    %v3043 = vpop.f32.mrf.mxu0
    %v3044 = vadd.f32 %v3021, %v3043
    %3045 = vdwg.mxu0
    %3046 = vst [vmem:[%s4] sm:$0xff] %v2995
    %3047 = vst.msk [vmem:[%s4 + $0x8] sm:$0xff] %vm831, %v3041
    %3048 = vst [vmem:[%s4 + $0x10] sm:$0xff] %v2998
    %3049 = vst.msk [vmem:[%s4 + $0x18] sm:$0xff] %vm831, %v3044
    // Predicated region
    $region26: #{forward_pallas.1} parent=1 // pred_check
      _
    $region27: #{forward_pallas.1} parent=1 // pred_check_branch
      %3051 = sbr.rel (0) target = $region29
    $region28: #{forward_pallas.1} parent=1 // pred_region
      _
    $region29: #{forward_pallas.1} parent=1 // pred_fallthru
      _
    // Predicated region
    $region30: #{forward_pallas.1} parent=1 // pred_check
      _
    $region31: #{forward_pallas.1} parent=1 // pred_check_branch
      %3053 = sbr.rel (0) target = $region33
    $region32: #{forward_pallas.1} parent=1 // pred_region
      _
    $region33: #{forward_pallas.1} parent=1 // pred_fallthru
      _
    %3054 = vsyncpa [#allocation3], 1
    %3055 = vsyncpa [#allocation5], 1

</llo_original>
